<compile_context>
chip_gen: v7x
topology: tpu7x:2x2x1
jax: 0.10.0
libtpu: 0.0.40
codegen_flags: <defaults>
</compile_context>

<pallas_src>
import math

import jax
import jax.numpy as jnp
from jax import lax
from jax.experimental import pallas as pl
from jax.experimental.pallas import tpu as pltpu

# ---- small synthetic stand-in for bert-base-chinese config -------------------
VOCAB = 100
HIDDEN = 32
N_HEADS = 4
D_HEAD = HIDDEN // N_HEADS
INTERMEDIATE = 64
N_LAYERS = 2
MAX_POS = 64
SEQ = 8
LN_EPS = 1e-12
ATTN_SCALE = 1.0 / math.sqrt(D_HEAD)


# ---------------------------- in-kernel helpers --------------------------------
def _layernorm(x, g, b):
    mu = jnp.mean(x, axis=-1, keepdims=True)
    var = jnp.mean(jnp.square(x - mu), axis=-1, keepdims=True)
    return (x - mu) * lax.rsqrt(var + LN_EPS) * g + b


def _gelu(x):  # exact (erf) GELU as used by HF BERT
    return 0.5 * x * (1.0 + lax.erf(x * (1.0 / math.sqrt(2.0))))


def _softmax_rows(s):
    m = jnp.max(s, axis=-1, keepdims=True)
    p = jnp.exp(s - m)
    # exact reciprocal (approx=True would break softmax-sums-to-1 parity)
    return p * pl.reciprocal(jnp.sum(p, axis=-1, keepdims=True))


# ---------------------------- fused encoder kernel -----------------------------
def _encoder_kernel(
    # scalar-prefetch (SMEM) refs
    ids_ref, mask_ref,
    # VMEM inputs
    word_emb_ref, pos_emb_ref, type_emb_ref,
    emb_ln_g_ref, emb_ln_b_ref,
    qkv_w_ref, qkv_b_ref,
    ao_w_ref, ao_b_ref,
    attn_ln_g_ref, attn_ln_b_ref,
    i_w_ref, i_b_ref,
    o_w_ref, o_b_ref,
    out_ln_g_ref, out_ln_b_ref,
    pool_w_ref, pool_b_ref,
    # outputs
    seq_ref, pooled_ref,
):
    # ---- embedding gather fused in-kernel: one-hot (from SMEM ids) @ word table.
    row_ids = lax.broadcasted_iota(jnp.int32, (SEQ, 1), 0)
    ids_col = jnp.zeros((SEQ, 1), jnp.int32)
    for i in range(SEQ):                      # static, tiny: 8 scalar reads + selects
        ids_col = jnp.where(row_ids == i, ids_ref[i], ids_col)
    vocab_iota = lax.broadcasted_iota(jnp.int32, (SEQ, VOCAB), 1)
    onehot = (vocab_iota == ids_col).astype(jnp.float32)
    w_emb = jnp.dot(onehot, word_emb_ref[...], preferred_element_type=jnp.float32)

    # token_type_ids hard-coded to segment 0 (reference passes no token_type_ids).
    x = w_emb + pos_emb_ref[...] + type_emb_ref[0:1, :]
    x = _layernorm(x, emb_ln_g_ref[...], emb_ln_b_ref[...])

    # ---- additive attention mask built in-kernel from SMEM scalars.
    col = lax.broadcasted_iota(jnp.int32, (1, SEQ), 1)
    add_mask = jnp.zeros((1, SEQ), jnp.float32)
    for i in range(SEQ):
        neg = jnp.where(mask_ref[i] == 0, jnp.float32(-10000.0), jnp.float32(0.0))
        add_mask = jnp.where(col == i, neg, add_mask)

    for l in range(N_LAYERS):  # static, unrolled — weights stacked on leading axis
        # Fused QKV projection: one [S, 3H] matmul (bf16 operands, f32 accumulate).
        qkv = (jnp.dot(x.astype(jnp.bfloat16), qkv_w_ref[l],
                       preferred_element_type=jnp.float32) + qkv_b_ref[l])

        # Head-batched attention: build [NH, S, DH] once, then TWO batched einsums
        # and ONE softmax over all heads (no per-head serialized chains, no
        # per-head concat of partial contexts until the very end).
        heads_q, heads_k, heads_v = [], [], []
        for h in range(N_HEADS):
            lo = h * D_HEAD
            heads_q.append(qkv[:, 0 * HIDDEN + lo: 0 * HIDDEN + lo + D_HEAD])
            heads_k.append(qkv[:, 1 * HIDDEN + lo: 1 * HIDDEN + lo + D_HEAD])
            heads_v.append(qkv[:, 2 * HIDDEN + lo: 2 * HIDDEN + lo + D_HEAD])
        qh = jnp.stack(heads_q, axis=0).astype(jnp.bfloat16)   # [NH, S, DH]
        kh = jnp.stack(heads_k, axis=0).astype(jnp.bfloat16)
        vh = jnp.stack(heads_v, axis=0).astype(jnp.bfloat16)

        s = jnp.einsum("hqd,hkd->hqk", qh, kh,
                       preferred_element_type=jnp.float32) * ATTN_SCALE
        s = s + add_mask                       # [1,S] broadcasts over [NH,S,S]
        p = _softmax_rows(s)                   # single softmax for all heads
        ctx_h = jnp.einsum("hqk,hkd->hqd", p.astype(jnp.bfloat16), vh,
                           preferred_element_type=jnp.float32)  # [NH, S, DH]
        ctx = jnp.concatenate([ctx_h[h] for h in range(N_HEADS)], axis=-1)  # [S, H]

        # Attention output projection + residual + LayerNorm.
        attn_out = (jnp.dot(ctx.astype(jnp.bfloat16), ao_w_ref[l],
                            preferred_element_type=jnp.float32) + ao_b_ref[l])
        x = _layernorm(attn_out + x, attn_ln_g_ref[l], attn_ln_b_ref[l])

        # FFN (exact-erf GELU) + residual + LayerNorm.
        ffn = _gelu(jnp.dot(x.astype(jnp.bfloat16), i_w_ref[l],
                            preferred_element_type=jnp.float32) + i_b_ref[l])
        ffn_out = (jnp.dot(ffn.astype(jnp.bfloat16), o_w_ref[l],
                           preferred_element_type=jnp.float32) + o_b_ref[l])
        x = _layernorm(ffn_out + x, out_ln_g_ref[l], out_ln_b_ref[l])

    seq_ref[...] = x

    # Pooler folded into the same kernel: tanh(CLS @ W + b).
    cls = x[0:1, :]
    pooled_ref[...] = jnp.tanh(
        jnp.dot(cls.astype(jnp.bfloat16), pool_w_ref[...],
                preferred_element_type=jnp.float32) + pool_b_ref[...])


# ---------------------------- parameter init -----------------------------------
def init_params(key):
    def normal(k, shape, dtype=jnp.float32):
        return (0.02 * jax.random.normal(k, shape, dtype=jnp.float32)).astype(dtype)

    keys = iter(jax.random.split(key, 64))
    L, H, I = N_LAYERS, HIDDEN, INTERMEDIATE
    bf16 = jnp.bfloat16
    return {
        # embedding tables kept f32 (gathered rows feed LayerNorm exactly)
        "word_emb": normal(next(keys), (VOCAB, H)),
        "pos_emb": normal(next(keys), (MAX_POS, H)),
        "type_emb": normal(next(keys), (2, H)),
        "emb_ln_g": jnp.ones((1, H), jnp.float32),
        "emb_ln_b": jnp.zeros((1, H), jnp.float32),
        # per-layer matmul weights stacked on a leading layer axis; QKV pre-fused;
        # stored bf16 for native MXU operands on v6e/v7x (biases / LN stay f32).
        "qkv_w": normal(next(keys), (L, H, 3 * H), bf16),
        "qkv_b": jnp.zeros((L, 1, 3 * H), jnp.float32),
        "ao_w": normal(next(keys), (L, H, H), bf16),
        "ao_b": jnp.zeros((L, 1, H), jnp.float32),
        "attn_ln_g": jnp.ones((L, 1, H), jnp.float32),
        "attn_ln_b": jnp.zeros((L, 1, H), jnp.float32),
        "i_w": normal(next(keys), (L, H, I), bf16),
        "i_b": jnp.zeros((L, 1, I), jnp.float32),
        "o_w": normal(next(keys), (L, I, H), bf16),
        "o_b": jnp.zeros((L, 1, H), jnp.float32),
        "out_ln_g": jnp.ones((L, 1, H), jnp.float32),
        "out_ln_b": jnp.zeros((L, 1, H), jnp.float32),
        "pool_w": normal(next(keys), (H, H), bf16),
        "pool_b": jnp.zeros((1, H), jnp.float32),
    }


# ---------------------------- BERT forward --------------------------------------
def _full2(shape):
    return pl.BlockSpec(shape, lambda i, ids, msk: (0, 0))


def _full3(shape):
    return pl.BlockSpec(shape, lambda i, ids, msk: (0, 0, 0))


def bert_forward(params, input_ids, attn_mask):
    # input_ids / attn_mask: [1, S]  (as produced by .reshape(1, -1) in ChinBERT)
    S = input_ids.shape[-1]
    assert S == SEQ
    ids = input_ids.reshape(S).astype(jnp.int32)
    mask = attn_mask.reshape(S).astype(jnp.int32)
    # TODO(synk): dropout (outer p=0.3 and BERT's internal dropouts) skipped —
    # eval-mode semantics only.

    grid_spec = pltpu.PrefetchScalarGridSpec(
        num_scalar_prefetch=2,       # ids + mask land in SMEM before the grid runs
        grid=(1,),
        in_specs=[
            _full2((VOCAB, HIDDEN)),                              # word_emb
            pl.BlockSpec((SEQ, HIDDEN), lambda i, ids, msk: (0, 0)),  # pos_emb[:SEQ]
            _full2((2, HIDDEN)),                                  # type_emb
            _full2((1, HIDDEN)), _full2((1, HIDDEN)),             # emb LN g/b
            _full3((N_LAYERS, HIDDEN, 3 * HIDDEN)),               # qkv_w
            _full3((N_LAYERS, 1, 3 * HIDDEN)),                    # qkv_b
            _full3((N_LAYERS, HIDDEN, HIDDEN)),                   # ao_w
            _full3((N_LAYERS, 1, HIDDEN)),                        # ao_b
            _full3((N_LAYERS, 1, HIDDEN)),                        # attn LN g
            _full3((N_LAYERS, 1, HIDDEN)),                        # attn LN b
            _full3((N_LAYERS, HIDDEN, INTERMEDIATE)),             # i_w
            _full3((N_LAYERS, 1, INTERMEDIATE)),                  # i_b
            _full3((N_LAYERS, INTERMEDIATE, HIDDEN)),             # o_w
            _full3((N_LAYERS, 1, HIDDEN)),                        # o_b
            _full3((N_LAYERS, 1, HIDDEN)),                        # out LN g
            _full3((N_LAYERS, 1, HIDDEN)),                        # out LN b
            _full2((HIDDEN, HIDDEN)),                             # pool_w
            _full2((1, HIDDEN)),                                  # pool_b
        ],
        out_specs=(
            pl.BlockSpec((SEQ, HIDDEN), lambda i, ids, msk: (0, 0)),
            pl.BlockSpec((1, HIDDEN), lambda i, ids, msk: (0, 0)),
        ),
    )

    # TODO(synk): batch=1 / single grid point — no parallel axis to shard across
    # v7x's second TensorCore; add a "parallel" batch axis if batch > 1.
    seq, pooled = pl.pallas_call(
        _encoder_kernel,
        out_shape=(
            jax.ShapeDtypeStruct((SEQ, HIDDEN), jnp.float32),   # sequence output
            jax.ShapeDtypeStruct((1, HIDDEN), jnp.float32),     # pooled output
        ),
        grid_spec=grid_spec,
        compiler_params=pltpu.CompilerParams(
            dimension_semantics=("arbitrary",)),
    )(
        ids, mask,
        params["word_emb"], params["pos_emb"], params["type_emb"],
        params["emb_ln_g"], params["emb_ln_b"],
        params["qkv_w"], params["qkv_b"],
        params["ao_w"], params["ao_b"],
        params["attn_ln_g"], params["attn_ln_b"],
        params["i_w"], params["i_b"],
        params["o_w"], params["o_b"],
        params["out_ln_g"], params["out_ln_b"],
        params["pool_w"], params["pool_b"],
    )

    sequence_output = seq.reshape(1, S, HIDDEN)   # [1, S, H]
    pooled_output = pooled                        # [1, H]
    return sequence_output, pooled_output


# ---------------------------- main ----------------------------------------------
if __name__ == "__main__":
    key = jax.random.PRNGKey(0)
    k_param, k_ids = jax.random.split(key)

    params = init_params(k_param)

    # synthetic tokenized sentence: [1, SEQ] ids, mask with padding at the tail
    input_ids = jax.random.randint(k_ids, (1, SEQ), 1, VOCAB, dtype=jnp.int32)
    attention_mask = jnp.array([[1, 1, 1, 1, 1, 1, 0, 0]], dtype=jnp.int32)

    fwd = jax.jit(bert_forward)
    sequence_output, pooled_output = fwd(params, input_ids, attention_mask)
    jax.block_until_ready((sequence_output, pooled_output))

    assert sequence_output.shape == (1, SEQ, HIDDEN)
    assert pooled_output.shape == (1, HIDDEN)
    assert bool(jnp.all(jnp.isfinite(sequence_output)))
    assert bool(jnp.all(jnp.isfinite(pooled_output)))
    print("KERNEL_OK")
</pallas_src>

<mosaic_0001>
module attributes {stable_mosaic.version = 11 : i64} {
  func.func @_encoder_kernel(%arg0: i32, %arg1: memref<8xi32, #tpu.memory_space<smem>>, %arg2: memref<8xi32, #tpu.memory_space<smem>>, %arg3: memref<100x32xf32, #tpu.memory_space<vmem>>, %arg4: memref<8x32xf32, #tpu.memory_space<vmem>>, %arg5: memref<2x32xf32, #tpu.memory_space<vmem>>, %arg6: memref<1x32xf32, #tpu.memory_space<vmem>>, %arg7: memref<1x32xf32, #tpu.memory_space<vmem>>, %arg8: memref<2x32x96xbf16, #tpu.memory_space<vmem>>, %arg9: memref<2x1x96xf32, #tpu.memory_space<vmem>>, %arg10: memref<2x32x32xbf16, #tpu.memory_space<vmem>>, %arg11: memref<2x1x32xf32, #tpu.memory_space<vmem>>, %arg12: memref<2x1x32xf32, #tpu.memory_space<vmem>>, %arg13: memref<2x1x32xf32, #tpu.memory_space<vmem>>, %arg14: memref<2x32x64xbf16, #tpu.memory_space<vmem>>, %arg15: memref<2x1x64xf32, #tpu.memory_space<vmem>>, %arg16: memref<2x64x32xbf16, #tpu.memory_space<vmem>>, %arg17: memref<2x1x32xf32, #tpu.memory_space<vmem>>, %arg18: memref<2x1x32xf32, #tpu.memory_space<vmem>>, %arg19: memref<2x1x32xf32, #tpu.memory_space<vmem>>, %arg20: memref<32x32xbf16, #tpu.memory_space<vmem>>, %arg21: memref<1x32xf32, #tpu.memory_space<vmem>>, %arg22: memref<8x32xf32, #tpu.memory_space<vmem>>, %arg23: memref<1x32xf32, #tpu.memory_space<vmem>>) attributes {dimension_semantics = [#tpu.dimension_semantics<arbitrary>], iteration_bounds = array<i64: 1>, scalar_prefetch = 2 : i64, scratch_operands = 0 : i64, tpu.core_type = #tpu.core_type<tc>, window_params = [{pipeline_mode = #tpu.pipeline_mode<synchronous>, transform_indices = @transform_0, window_bounds = array<i64: 100, 32>}, {transform_indices = @transform_1, window_bounds = array<i64: 8, 32>}, {pipeline_mode = #tpu.pipeline_mode<synchronous>, transform_indices = @transform_2, window_bounds = array<i64: 2, 32>}, {pipeline_mode = #tpu.pipeline_mode<synchronous>, transform_indices = @transform_3, window_bounds = array<i64: 1, 32>}, {pipeline_mode = #tpu.pipeline_mode<synchronous>, transform_indices = @transform_4, window_bounds = array<i64: 1, 32>}, {pipeline_mode = #tpu.pipeline_mode<synchronous>, transform_indices = @transform_5, window_bounds = array<i64: 2, 32, 96>}, {pipeline_mode = #tpu.pipeline_mode<synchronous>, transform_indices = @transform_6, window_bounds = array<i64: 2, 1, 96>}, {pipeline_mode = #tpu.pipeline_mode<synchronous>, transform_indices = @transform_7, window_bounds = array<i64: 2, 32, 32>}, {pipeline_mode = #tpu.pipeline_mode<synchronous>, transform_indices = @transform_8, window_bounds = array<i64: 2, 1, 32>}, {pipeline_mode = #tpu.pipeline_mode<synchronous>, transform_indices = @transform_9, window_bounds = array<i64: 2, 1, 32>}, {pipeline_mode = #tpu.pipeline_mode<synchronous>, transform_indices = @transform_10, window_bounds = array<i64: 2, 1, 32>}, {pipeline_mode = #tpu.pipeline_mode<synchronous>, transform_indices = @transform_11, window_bounds = array<i64: 2, 32, 64>}, {pipeline_mode = #tpu.pipeline_mode<synchronous>, transform_indices = @transform_12, window_bounds = array<i64: 2, 1, 64>}, {pipeline_mode = #tpu.pipeline_mode<synchronous>, transform_indices = @transform_13, window_bounds = array<i64: 2, 64, 32>}, {pipeline_mode = #tpu.pipeline_mode<synchronous>, transform_indices = @transform_14, window_bounds = array<i64: 2, 1, 32>}, {pipeline_mode = #tpu.pipeline_mode<synchronous>, transform_indices = @transform_15, window_bounds = array<i64: 2, 1, 32>}, {pipeline_mode = #tpu.pipeline_mode<synchronous>, transform_indices = @transform_16, window_bounds = array<i64: 2, 1, 32>}, {pipeline_mode = #tpu.pipeline_mode<synchronous>, transform_indices = @transform_17, window_bounds = array<i64: 32, 32>}, {pipeline_mode = #tpu.pipeline_mode<synchronous>, transform_indices = @transform_18, window_bounds = array<i64: 1, 32>}, {pipeline_mode = #tpu.pipeline_mode<synchronous>, transform_indices = @transform_19, window_bounds = array<i64: 8, 32>}, {pipeline_mode = #tpu.pipeline_mode<synchronous>, transform_indices = @transform_20, window_bounds = array<i64: 1, 32>}]} {
    %0 = tpu.iota {dimensions = array<i32: 0>} : vector<8x1xi32>
    %c0_i32 = arith.constant 0 : i32
    %1 = vector.broadcast %c0_i32 : i32 to vector<8x1xi32>
    %c0_i32_0 = arith.constant 0 : i32
    %2 = vector.broadcast %c0_i32_0 : i32 to vector<8x1xi32>
    %3 = arith.cmpi eq, %0, %2 : vector<8x1xi32>
    %c0 = arith.constant 0 : index
    %4 = memref.load %arg1[%c0] : memref<8xi32, #tpu.memory_space<smem>>
    %5 = vector.broadcast %4 : i32 to vector<8x1xi32>
    %6 = arith.select %3, %5, %1 : vector<8x1xi1>, vector<8x1xi32>
    %c1_i32 = arith.constant 1 : i32
    %7 = vector.broadcast %c1_i32 : i32 to vector<8x1xi32>
    %8 = arith.cmpi eq, %0, %7 : vector<8x1xi32>
    %c1 = arith.constant 1 : index
    %9 = memref.load %arg1[%c1] : memref<8xi32, #tpu.memory_space<smem>>
    %10 = vector.broadcast %9 : i32 to vector<8x1xi32>
    %11 = arith.select %8, %10, %6 : vector<8x1xi1>, vector<8x1xi32>
    %c2_i32 = arith.constant 2 : i32
    %12 = vector.broadcast %c2_i32 : i32 to vector<8x1xi32>
    %13 = arith.cmpi eq, %0, %12 : vector<8x1xi32>
    %c2 = arith.constant 2 : index
    %14 = memref.load %arg1[%c2] : memref<8xi32, #tpu.memory_space<smem>>
    %15 = vector.broadcast %14 : i32 to vector<8x1xi32>
    %16 = arith.select %13, %15, %11 : vector<8x1xi1>, vector<8x1xi32>
    %c3_i32 = arith.constant 3 : i32
    %17 = vector.broadcast %c3_i32 : i32 to vector<8x1xi32>
    %18 = arith.cmpi eq, %0, %17 : vector<8x1xi32>
    %c3 = arith.constant 3 : index
    %19 = memref.load %arg1[%c3] : memref<8xi32, #tpu.memory_space<smem>>
    %20 = vector.broadcast %19 : i32 to vector<8x1xi32>
    %21 = arith.select %18, %20, %16 : vector<8x1xi1>, vector<8x1xi32>
    %c4_i32 = arith.constant 4 : i32
    %22 = vector.broadcast %c4_i32 : i32 to vector<8x1xi32>
    %23 = arith.cmpi eq, %0, %22 : vector<8x1xi32>
    %c4 = arith.constant 4 : index
    %24 = memref.load %arg1[%c4] : memref<8xi32, #tpu.memory_space<smem>>
    %25 = vector.broadcast %24 : i32 to vector<8x1xi32>
    %26 = arith.select %23, %25, %21 : vector<8x1xi1>, vector<8x1xi32>
    %c5_i32 = arith.constant 5 : i32
    %27 = vector.broadcast %c5_i32 : i32 to vector<8x1xi32>
    %28 = arith.cmpi eq, %0, %27 : vector<8x1xi32>
    %c5 = arith.constant 5 : index
    %29 = memref.load %arg1[%c5] : memref<8xi32, #tpu.memory_space<smem>>
    %30 = vector.broadcast %29 : i32 to vector<8x1xi32>
    %31 = arith.select %28, %30, %26 : vector<8x1xi1>, vector<8x1xi32>
    %c6_i32 = arith.constant 6 : i32
    %32 = vector.broadcast %c6_i32 : i32 to vector<8x1xi32>
    %33 = arith.cmpi eq, %0, %32 : vector<8x1xi32>
    %c6 = arith.constant 6 : index
    %34 = memref.load %arg1[%c6] : memref<8xi32, #tpu.memory_space<smem>>
    %35 = vector.broadcast %34 : i32 to vector<8x1xi32>
    %36 = arith.select %33, %35, %31 : vector<8x1xi1>, vector<8x1xi32>
    %c7_i32 = arith.constant 7 : i32
    %37 = vector.broadcast %c7_i32 : i32 to vector<8x1xi32>
    %38 = arith.cmpi eq, %0, %37 : vector<8x1xi32>
    %c7 = arith.constant 7 : index
    %39 = memref.load %arg1[%c7] : memref<8xi32, #tpu.memory_space<smem>>
    %40 = vector.broadcast %39 : i32 to vector<8x1xi32>
    %41 = arith.select %38, %40, %36 : vector<8x1xi1>, vector<8x1xi32>
    %42 = tpu.iota {dimensions = array<i32: 1>} : vector<8x100xi32>
    %43 = vector.broadcast %41 : vector<8x1xi32> to vector<8x100xi32>
    %44 = arith.cmpi eq, %42, %43 : vector<8x100xi32>
    %45 = arith.extui %44 : vector<8x100xi1> to vector<8x100xi32>
    %46 = arith.sitofp %45 : vector<8x100xi32> to vector<8x100xf32>
    %c0_1 = arith.constant 0 : index
    %c0_2 = arith.constant 0 : index
    %47 = vector.load %arg3[%c0_1, %c0_2] : memref<100x32xf32, #tpu.memory_space<vmem>>, vector<100x32xf32>
    %cst = arith.constant dense<0.000000e+00> : vector<8x32xf32>
    %48 = tpu.matmul %46, %47, %cst {dimension_numbers = #tpu.dot_dimension_numbers<[1], [0], [0], [1], [0, 0, 1, 1], [], []>} : vector<8x100xf32>, vector<100x32xf32>, vector<8x32xf32> -> vector<8x32xf32>
    %c0_3 = arith.constant 0 : index
    %c0_4 = arith.constant 0 : index
    %49 = vector.load %arg4[%c0_3, %c0_4] : memref<8x32xf32, #tpu.memory_space<vmem>>, vector<8x32xf32>
    %50 = arith.addf %48, %49 : vector<8x32xf32>
    %c0_5 = arith.constant 0 : index
    %c0_6 = arith.constant 0 : index
    %51 = vector.load %arg5[%c0_5, %c0_6] : memref<2x32xf32, #tpu.memory_space<vmem>>, vector<1x32xf32>
    %52 = vector.broadcast %51 : vector<1x32xf32> to vector<8x32xf32>
    %53 = arith.addf %50, %52 : vector<8x32xf32>
    %c0_7 = arith.constant 0 : index
    %c0_8 = arith.constant 0 : index
    %54 = vector.load %arg6[%c0_7, %c0_8] : memref<1x32xf32, #tpu.memory_space<vmem>>, vector<1x32xf32>
    %c0_9 = arith.constant 0 : index
    %c0_10 = arith.constant 0 : index
    %55 = vector.load %arg7[%c0_9, %c0_10] : memref<1x32xf32, #tpu.memory_space<vmem>>, vector<1x32xf32>
    %cst_11 = arith.constant dense<0.000000e+00> : vector<8xf32>
    %56 = vector.multi_reduction <add>, %53, %cst_11 [1] : vector<8x32xf32> to vector<8xf32>
    %57 = vector.shape_cast %56 : vector<8xf32> to vector<8x1xf32>
    %cst_12 = arith.constant 3.200000e+01 : f32
    %58 = vector.broadcast %cst_12 : f32 to vector<8x1xf32>
    %59 = arith.divf %57, %58 : vector<8x1xf32>
    %60 = vector.broadcast %59 : vector<8x1xf32> to vector<8x32xf32>
    %61 = arith.subf %53, %60 : vector<8x32xf32>
    %62 = arith.mulf %61, %61 : vector<8x32xf32>
    %cst_13 = arith.constant dense<0.000000e+00> : vector<8xf32>
    %63 = vector.multi_reduction <add>, %62, %cst_13 [1] : vector<8x32xf32> to vector<8xf32>
    %64 = vector.shape_cast %63 : vector<8xf32> to vector<8x1xf32>
    %cst_14 = arith.constant 3.200000e+01 : f32
    %65 = vector.broadcast %cst_14 : f32 to vector<8x1xf32>
    %66 = arith.divf %64, %65 : vector<8x1xf32>
    %67 = vector.broadcast %59 : vector<8x1xf32> to vector<8x32xf32>
    %68 = arith.subf %53, %67 : vector<8x32xf32>
    %cst_15 = arith.constant 9.99999996E-13 : f32
    %69 = vector.broadcast %cst_15 : f32 to vector<8x1xf32>
    %70 = arith.addf %66, %69 : vector<8x1xf32>
    %71 = math.rsqrt %70 : vector<8x1xf32>
    %72 = vector.broadcast %71 : vector<8x1xf32> to vector<8x32xf32>
    %73 = arith.mulf %68, %72 : vector<8x32xf32>
    %74 = vector.broadcast %54 : vector<1x32xf32> to vector<8x32xf32>
    %75 = arith.mulf %73, %74 : vector<8x32xf32>
    %76 = vector.broadcast %55 : vector<1x32xf32> to vector<8x32xf32>
    %77 = arith.addf %75, %76 : vector<8x32xf32>
    %78 = tpu.iota {dimensions = array<i32: 1>} : vector<1x8xi32>
    %cst_16 = arith.constant 0.000000e+00 : f32
    %79 = vector.broadcast %cst_16 : f32 to vector<1x8xf32>
    %c0_17 = arith.constant 0 : index
    %80 = memref.load %arg2[%c0_17] : memref<8xi32, #tpu.memory_space<smem>>
    %c0_i32_18 = arith.constant 0 : i32
    %81 = arith.cmpi eq, %80, %c0_i32_18 : i32
    %cst_19 = arith.constant -1.000000e+04 : f32
    %cst_20 = arith.constant 0.000000e+00 : f32
    %82 = arith.select %81, %cst_19, %cst_20 : f32
    %c0_i32_21 = arith.constant 0 : i32
    %83 = vector.broadcast %c0_i32_21 : i32 to vector<1x8xi32>
    %84 = arith.cmpi eq, %78, %83 : vector<1x8xi32>
    %85 = vector.broadcast %82 : f32 to vector<1x8xf32>
    %86 = arith.select %84, %85, %79 : vector<1x8xi1>, vector<1x8xf32>
    %c1_22 = arith.constant 1 : index
    %87 = memref.load %arg2[%c1_22] : memref<8xi32, #tpu.memory_space<smem>>
    %c0_i32_23 = arith.constant 0 : i32
    %88 = arith.cmpi eq, %87, %c0_i32_23 : i32
    %cst_24 = arith.constant -1.000000e+04 : f32
    %cst_25 = arith.constant 0.000000e+00 : f32
    %89 = arith.select %88, %cst_24, %cst_25 : f32
    %c1_i32_26 = arith.constant 1 : i32
    %90 = vector.broadcast %c1_i32_26 : i32 to vector<1x8xi32>
    %91 = arith.cmpi eq, %78, %90 : vector<1x8xi32>
    %92 = vector.broadcast %89 : f32 to vector<1x8xf32>
    %93 = arith.select %91, %92, %86 : vector<1x8xi1>, vector<1x8xf32>
    %c2_27 = arith.constant 2 : index
    %94 = memref.load %arg2[%c2_27] : memref<8xi32, #tpu.memory_space<smem>>
    %c0_i32_28 = arith.constant 0 : i32
    %95 = arith.cmpi eq, %94, %c0_i32_28 : i32
    %cst_29 = arith.constant -1.000000e+04 : f32
    %cst_30 = arith.constant 0.000000e+00 : f32
    %96 = arith.select %95, %cst_29, %cst_30 : f32
    %c2_i32_31 = arith.constant 2 : i32
    %97 = vector.broadcast %c2_i32_31 : i32 to vector<1x8xi32>
    %98 = arith.cmpi eq, %78, %97 : vector<1x8xi32>
    %99 = vector.broadcast %96 : f32 to vector<1x8xf32>
    %100 = arith.select %98, %99, %93 : vector<1x8xi1>, vector<1x8xf32>
    %c3_32 = arith.constant 3 : index
    %101 = memref.load %arg2[%c3_32] : memref<8xi32, #tpu.memory_space<smem>>
    %c0_i32_33 = arith.constant 0 : i32
    %102 = arith.cmpi eq, %101, %c0_i32_33 : i32
    %cst_34 = arith.constant -1.000000e+04 : f32
    %cst_35 = arith.constant 0.000000e+00 : f32
    %103 = arith.select %102, %cst_34, %cst_35 : f32
    %c3_i32_36 = arith.constant 3 : i32
    %104 = vector.broadcast %c3_i32_36 : i32 to vector<1x8xi32>
    %105 = arith.cmpi eq, %78, %104 : vector<1x8xi32>
    %106 = vector.broadcast %103 : f32 to vector<1x8xf32>
    %107 = arith.select %105, %106, %100 : vector<1x8xi1>, vector<1x8xf32>
    %c4_37 = arith.constant 4 : index
    %108 = memref.load %arg2[%c4_37] : memref<8xi32, #tpu.memory_space<smem>>
    %c0_i32_38 = arith.constant 0 : i32
    %109 = arith.cmpi eq, %108, %c0_i32_38 : i32
    %cst_39 = arith.constant -1.000000e+04 : f32
    %cst_40 = arith.constant 0.000000e+00 : f32
    %110 = arith.select %109, %cst_39, %cst_40 : f32
    %c4_i32_41 = arith.constant 4 : i32
    %111 = vector.broadcast %c4_i32_41 : i32 to vector<1x8xi32>
    %112 = arith.cmpi eq, %78, %111 : vector<1x8xi32>
    %113 = vector.broadcast %110 : f32 to vector<1x8xf32>
    %114 = arith.select %112, %113, %107 : vector<1x8xi1>, vector<1x8xf32>
    %c5_42 = arith.constant 5 : index
    %115 = memref.load %arg2[%c5_42] : memref<8xi32, #tpu.memory_space<smem>>
    %c0_i32_43 = arith.constant 0 : i32
    %116 = arith.cmpi eq, %115, %c0_i32_43 : i32
    %cst_44 = arith.constant -1.000000e+04 : f32
    %cst_45 = arith.constant 0.000000e+00 : f32
    %117 = arith.select %116, %cst_44, %cst_45 : f32
    %c5_i32_46 = arith.constant 5 : i32
    %118 = vector.broadcast %c5_i32_46 : i32 to vector<1x8xi32>
    %119 = arith.cmpi eq, %78, %118 : vector<1x8xi32>
    %120 = vector.broadcast %117 : f32 to vector<1x8xf32>
    %121 = arith.select %119, %120, %114 : vector<1x8xi1>, vector<1x8xf32>
    %c6_47 = arith.constant 6 : index
    %122 = memref.load %arg2[%c6_47] : memref<8xi32, #tpu.memory_space<smem>>
    %c0_i32_48 = arith.constant 0 : i32
    %123 = arith.cmpi eq, %122, %c0_i32_48 : i32
    %cst_49 = arith.constant -1.000000e+04 : f32
    %cst_50 = arith.constant 0.000000e+00 : f32
    %124 = arith.select %123, %cst_49, %cst_50 : f32
    %c6_i32_51 = arith.constant 6 : i32
    %125 = vector.broadcast %c6_i32_51 : i32 to vector<1x8xi32>
    %126 = arith.cmpi eq, %78, %125 : vector<1x8xi32>
    %127 = vector.broadcast %124 : f32 to vector<1x8xf32>
    %128 = arith.select %126, %127, %121 : vector<1x8xi1>, vector<1x8xf32>
    %c7_52 = arith.constant 7 : index
    %129 = memref.load %arg2[%c7_52] : memref<8xi32, #tpu.memory_space<smem>>
    %c0_i32_53 = arith.constant 0 : i32
    %130 = arith.cmpi eq, %129, %c0_i32_53 : i32
    %cst_54 = arith.constant -1.000000e+04 : f32
    %cst_55 = arith.constant 0.000000e+00 : f32
    %131 = arith.select %130, %cst_54, %cst_55 : f32
    %c7_i32_56 = arith.constant 7 : i32
    %132 = vector.broadcast %c7_i32_56 : i32 to vector<1x8xi32>
    %133 = arith.cmpi eq, %78, %132 : vector<1x8xi32>
    %134 = vector.broadcast %131 : f32 to vector<1x8xf32>
    %135 = arith.select %133, %134, %128 : vector<1x8xi1>, vector<1x8xf32>
    %136 = arith.truncf %77 : vector<8x32xf32> to vector<8x32xbf16>
    %c0_57 = arith.constant 0 : index
    %c0_58 = arith.constant 0 : index
    %c0_59 = arith.constant 0 : index
    %137 = vector.load %arg8[%c0_57, %c0_58, %c0_59] : memref<2x32x96xbf16, #tpu.memory_space<vmem>>, vector<1x32x96xbf16>
    %138 = vector.shape_cast %137 : vector<1x32x96xbf16> to vector<32x96xbf16>
    %cst_60 = arith.constant dense<0.000000e+00> : vector<8x96xf32>
    %139 = tpu.matmul %136, %138, %cst_60 {dimension_numbers = #tpu.dot_dimension_numbers<[1], [0], [0], [1], [0, 0, 1, 1], [], []>} : vector<8x32xbf16>, vector<32x96xbf16>, vector<8x96xf32> -> vector<8x96xf32>
    %c0_61 = arith.constant 0 : index
    %c0_62 = arith.constant 0 : index
    %c0_63 = arith.constant 0 : index
    %140 = vector.load %arg9[%c0_61, %c0_62, %c0_63] : memref<2x1x96xf32, #tpu.memory_space<vmem>>, vector<1x1x96xf32>
    %141 = vector.shape_cast %140 : vector<1x1x96xf32> to vector<1x96xf32>
    %142 = vector.broadcast %141 : vector<1x96xf32> to vector<8x96xf32>
    %143 = arith.addf %139, %142 : vector<8x96xf32>
    %144 = vector.extract_strided_slice %143 {offsets = [0, 0], sizes = [8, 8], strides = [1, 1]} : vector<8x96xf32> to vector<8x8xf32>
    %145 = vector.extract_strided_slice %143 {offsets = [0, 32], sizes = [8, 8], strides = [1, 1]} : vector<8x96xf32> to vector<8x8xf32>
    %146 = vector.extract_strided_slice %143 {offsets = [0, 64], sizes = [8, 8], strides = [1, 1]} : vector<8x96xf32> to vector<8x8xf32>
    %147 = vector.extract_strided_slice %143 {offsets = [0, 8], sizes = [8, 8], strides = [1, 1]} : vector<8x96xf32> to vector<8x8xf32>
    %148 = vector.extract_strided_slice %143 {offsets = [0, 40], sizes = [8, 8], strides = [1, 1]} : vector<8x96xf32> to vector<8x8xf32>
    %149 = vector.extract_strided_slice %143 {offsets = [0, 72], sizes = [8, 8], strides = [1, 1]} : vector<8x96xf32> to vector<8x8xf32>
    %150 = vector.extract_strided_slice %143 {offsets = [0, 16], sizes = [8, 8], strides = [1, 1]} : vector<8x96xf32> to vector<8x8xf32>
    %151 = vector.extract_strided_slice %143 {offsets = [0, 48], sizes = [8, 8], strides = [1, 1]} : vector<8x96xf32> to vector<8x8xf32>
    %152 = vector.extract_strided_slice %143 {offsets = [0, 80], sizes = [8, 8], strides = [1, 1]} : vector<8x96xf32> to vector<8x8xf32>
    %153 = vector.extract_strided_slice %143 {offsets = [0, 24], sizes = [8, 8], strides = [1, 1]} : vector<8x96xf32> to vector<8x8xf32>
    %154 = vector.extract_strided_slice %143 {offsets = [0, 56], sizes = [8, 8], strides = [1, 1]} : vector<8x96xf32> to vector<8x8xf32>
    %155 = vector.extract_strided_slice %143 {offsets = [0, 88], sizes = [8, 8], strides = [1, 1]} : vector<8x96xf32> to vector<8x8xf32>
    %156 = vector.shape_cast %144 : vector<8x8xf32> to vector<1x8x8xf32>
    %157 = vector.shape_cast %147 : vector<8x8xf32> to vector<1x8x8xf32>
    %158 = vector.shape_cast %150 : vector<8x8xf32> to vector<1x8x8xf32>
    %159 = vector.shape_cast %153 : vector<8x8xf32> to vector<1x8x8xf32>
    %160 = tpu.concatenate %156, %157, %158, %159 in 0 : vector<1x8x8xf32>, vector<1x8x8xf32>, vector<1x8x8xf32>, vector<1x8x8xf32> -> vector<4x8x8xf32>
    %161 = arith.truncf %160 : vector<4x8x8xf32> to vector<4x8x8xbf16>
    %162 = vector.shape_cast %145 : vector<8x8xf32> to vector<1x8x8xf32>
    %163 = vector.shape_cast %148 : vector<8x8xf32> to vector<1x8x8xf32>
    %164 = vector.shape_cast %151 : vector<8x8xf32> to vector<1x8x8xf32>
    %165 = vector.shape_cast %154 : vector<8x8xf32> to vector<1x8x8xf32>
    %166 = tpu.concatenate %162, %163, %164, %165 in 0 : vector<1x8x8xf32>, vector<1x8x8xf32>, vector<1x8x8xf32>, vector<1x8x8xf32> -> vector<4x8x8xf32>
    %167 = arith.truncf %166 : vector<4x8x8xf32> to vector<4x8x8xbf16>
    %168 = vector.shape_cast %146 : vector<8x8xf32> to vector<1x8x8xf32>
    %169 = vector.shape_cast %149 : vector<8x8xf32> to vector<1x8x8xf32>
    %170 = vector.shape_cast %152 : vector<8x8xf32> to vector<1x8x8xf32>
    %171 = vector.shape_cast %155 : vector<8x8xf32> to vector<1x8x8xf32>
    %172 = tpu.concatenate %168, %169, %170, %171 in 0 : vector<1x8x8xf32>, vector<1x8x8xf32>, vector<1x8x8xf32>, vector<1x8x8xf32> -> vector<4x8x8xf32>
    %173 = arith.truncf %172 : vector<4x8x8xf32> to vector<4x8x8xbf16>
    "tpu.trace_start"() <{level = 10 : i32, message = "hqd,hkd->hqk"}> : () -> ()
    %cst_64 = arith.constant dense<0.000000e+00> : vector<4x8x8xf32>
    %174 = tpu.matmul %161, %167, %cst_64 {dimension_numbers = #tpu.dot_dimension_numbers<[2], [2], [1], [1], [0, 0, 0, 1, 1, 1], [0], [0]>} : vector<4x8x8xbf16>, vector<4x8x8xbf16>, vector<4x8x8xf32> -> vector<4x8x8xf32>
    "tpu.trace_stop"() : () -> ()
    %cst_65 = arith.constant 0.353553385 : f32
    %175 = vector.broadcast %cst_65 : f32 to vector<4x8x8xf32>
    %176 = arith.mulf %174, %175 : vector<4x8x8xf32>
    %177 = vector.shape_cast %135 : vector<1x8xf32> to vector<1x1x8xf32>
    %178 = vector.broadcast %177 : vector<1x1x8xf32> to vector<4x8x8xf32>
    %179 = arith.addf %176, %178 : vector<4x8x8xf32>
    %cst_66 = arith.constant dense<0xFF800000> : vector<4x8xf32>
    %180 = vector.multi_reduction <maximumf>, %179, %cst_66 [2] : vector<4x8x8xf32> to vector<4x8xf32>
    %181 = vector.shape_cast %180 : vector<4x8xf32> to vector<4x8x1xf32>
    %182 = vector.broadcast %181 : vector<4x8x1xf32> to vector<4x8x8xf32>
    %183 = arith.subf %179, %182 : vector<4x8x8xf32>
    %184 = math.exp %183 : vector<4x8x8xf32>
    %cst_67 = arith.constant dense<0.000000e+00> : vector<4x8xf32>
    %185 = vector.multi_reduction <add>, %184, %cst_67 [2] : vector<4x8x8xf32> to vector<4x8xf32>
    %186 = vector.shape_cast %185 : vector<4x8xf32> to vector<4x8x1xf32>
    %187 = tpu.reciprocal %186 : vector<4x8x1xf32> -> vector<4x8x1xf32>
    %188 = vector.broadcast %187 : vector<4x8x1xf32> to vector<4x8x8xf32>
    %189 = arith.mulf %184, %188 : vector<4x8x8xf32>
    %190 = arith.truncf %189 : vector<4x8x8xf32> to vector<4x8x8xbf16>
    "tpu.trace_start"() <{level = 10 : i32, message = "hqk,hkd->hqd"}> : () -> ()
    %cst_68 = arith.constant dense<0.000000e+00> : vector<4x8x8xf32>
    %191 = tpu.matmul %190, %173, %cst_68 {dimension_numbers = #tpu.dot_dimension_numbers<[2], [1], [1], [2], [0, 0, 0, 1, 1, 2], [0], [0]>} : vector<4x8x8xbf16>, vector<4x8x8xbf16>, vector<4x8x8xf32> -> vector<4x8x8xf32>
    "tpu.trace_stop"() : () -> ()
    %192 = vector.extract_strided_slice %191 {offsets = [0, 0, 0], sizes = [1, 8, 8], strides = [1, 1, 1]} : vector<4x8x8xf32> to vector<1x8x8xf32>
    %193 = vector.shape_cast %192 : vector<1x8x8xf32> to vector<8x8xf32>
    %194 = vector.extract_strided_slice %191 {offsets = [1, 0, 0], sizes = [1, 8, 8], strides = [1, 1, 1]} : vector<4x8x8xf32> to vector<1x8x8xf32>
    %195 = vector.shape_cast %194 : vector<1x8x8xf32> to vector<8x8xf32>
    %196 = vector.extract_strided_slice %191 {offsets = [2, 0, 0], sizes = [1, 8, 8], strides = [1, 1, 1]} : vector<4x8x8xf32> to vector<1x8x8xf32>
    %197 = vector.shape_cast %196 : vector<1x8x8xf32> to vector<8x8xf32>
    %198 = vector.extract_strided_slice %191 {offsets = [3, 0, 0], sizes = [1, 8, 8], strides = [1, 1, 1]} : vector<4x8x8xf32> to vector<1x8x8xf32>
    %199 = vector.shape_cast %198 : vector<1x8x8xf32> to vector<8x8xf32>
    %200 = tpu.concatenate %193, %195, %197, %199 in 1 : vector<8x8xf32>, vector<8x8xf32>, vector<8x8xf32>, vector<8x8xf32> -> vector<8x32xf32>
    %201 = arith.truncf %200 : vector<8x32xf32> to vector<8x32xbf16>
    %c0_69 = arith.constant 0 : index
    %c0_70 = arith.constant 0 : index
    %c0_71 = arith.constant 0 : index
    %202 = vector.load %arg10[%c0_69, %c0_70, %c0_71] : memref<2x32x32xbf16, #tpu.memory_space<vmem>>, vector<1x32x32xbf16>
    %203 = vector.shape_cast %202 : vector<1x32x32xbf16> to vector<32x32xbf16>
    %cst_72 = arith.constant dense<0.000000e+00> : vector<8x32xf32>
    %204 = tpu.matmul %201, %203, %cst_72 {dimension_numbers = #tpu.dot_dimension_numbers<[1], [0], [0], [1], [0, 0, 1, 1], [], []>} : vector<8x32xbf16>, vector<32x32xbf16>, vector<8x32xf32> -> vector<8x32xf32>
    %c0_73 = arith.constant 0 : index
    %c0_74 = arith.constant 0 : index
    %c0_75 = arith.constant 0 : index
    %205 = vector.load %arg11[%c0_73, %c0_74, %c0_75] : memref<2x1x32xf32, #tpu.memory_space<vmem>>, vector<1x1x32xf32>
    %206 = vector.shape_cast %205 : vector<1x1x32xf32> to vector<1x32xf32>
    %207 = vector.broadcast %206 : vector<1x32xf32> to vector<8x32xf32>
    %208 = arith.addf %204, %207 : vector<8x32xf32>
    %209 = arith.addf %208, %77 : vector<8x32xf32>
    %c0_76 = arith.constant 0 : index
    %c0_77 = arith.constant 0 : index
    %c0_78 = arith.constant 0 : index
    %210 = vector.load %arg12[%c0_76, %c0_77, %c0_78] : memref<2x1x32xf32, #tpu.memory_space<vmem>>, vector<1x1x32xf32>
    %211 = vector.shape_cast %210 : vector<1x1x32xf32> to vector<1x32xf32>
    %c0_79 = arith.constant 0 : index
    %c0_80 = arith.constant 0 : index
    %c0_81 = arith.constant 0 : index
    %212 = vector.load %arg13[%c0_79, %c0_80, %c0_81] : memref<2x1x32xf32, #tpu.memory_space<vmem>>, vector<1x1x32xf32>
    %213 = vector.shape_cast %212 : vector<1x1x32xf32> to vector<1x32xf32>
    %cst_82 = arith.constant dense<0.000000e+00> : vector<8xf32>
    %214 = vector.multi_reduction <add>, %209, %cst_82 [1] : vector<8x32xf32> to vector<8xf32>
    %215 = vector.shape_cast %214 : vector<8xf32> to vector<8x1xf32>
    %cst_83 = arith.constant 3.200000e+01 : f32
    %216 = vector.broadcast %cst_83 : f32 to vector<8x1xf32>
    %217 = arith.divf %215, %216 : vector<8x1xf32>
    %218 = vector.broadcast %217 : vector<8x1xf32> to vector<8x32xf32>
    %219 = arith.subf %209, %218 : vector<8x32xf32>
    %220 = arith.mulf %219, %219 : vector<8x32xf32>
    %cst_84 = arith.constant dense<0.000000e+00> : vector<8xf32>
    %221 = vector.multi_reduction <add>, %220, %cst_84 [1] : vector<8x32xf32> to vector<8xf32>
    %222 = vector.shape_cast %221 : vector<8xf32> to vector<8x1xf32>
    %cst_85 = arith.constant 3.200000e+01 : f32
    %223 = vector.broadcast %cst_85 : f32 to vector<8x1xf32>
    %224 = arith.divf %222, %223 : vector<8x1xf32>
    %225 = vector.broadcast %217 : vector<8x1xf32> to vector<8x32xf32>
    %226 = arith.subf %209, %225 : vector<8x32xf32>
    %cst_86 = arith.constant 9.99999996E-13 : f32
    %227 = vector.broadcast %cst_86 : f32 to vector<8x1xf32>
    %228 = arith.addf %224, %227 : vector<8x1xf32>
    %229 = math.rsqrt %228 : vector<8x1xf32>
    %230 = vector.broadcast %229 : vector<8x1xf32> to vector<8x32xf32>
    %231 = arith.mulf %226, %230 : vector<8x32xf32>
    %232 = vector.broadcast %211 : vector<1x32xf32> to vector<8x32xf32>
    %233 = arith.mulf %231, %232 : vector<8x32xf32>
    %234 = vector.broadcast %213 : vector<1x32xf32> to vector<8x32xf32>
    %235 = arith.addf %233, %234 : vector<8x32xf32>
    %236 = arith.truncf %235 : vector<8x32xf32> to vector<8x32xbf16>
    %c0_87 = arith.constant 0 : index
    %c0_88 = arith.constant 0 : index
    %c0_89 = arith.constant 0 : index
    %237 = vector.load %arg14[%c0_87, %c0_88, %c0_89] : memref<2x32x64xbf16, #tpu.memory_space<vmem>>, vector<1x32x64xbf16>
    %238 = vector.shape_cast %237 : vector<1x32x64xbf16> to vector<32x64xbf16>
    %cst_90 = arith.constant dense<0.000000e+00> : vector<8x64xf32>
    %239 = tpu.matmul %236, %238, %cst_90 {dimension_numbers = #tpu.dot_dimension_numbers<[1], [0], [0], [1], [0, 0, 1, 1], [], []>} : vector<8x32xbf16>, vector<32x64xbf16>, vector<8x64xf32> -> vector<8x64xf32>
    %c0_91 = arith.constant 0 : index
    %c0_92 = arith.constant 0 : index
    %c0_93 = arith.constant 0 : index
    %240 = vector.load %arg15[%c0_91, %c0_92, %c0_93] : memref<2x1x64xf32, #tpu.memory_space<vmem>>, vector<1x1x64xf32>
    %241 = vector.shape_cast %240 : vector<1x1x64xf32> to vector<1x64xf32>
    %242 = vector.broadcast %241 : vector<1x64xf32> to vector<8x64xf32>
    %243 = arith.addf %239, %242 : vector<8x64xf32>
    %cst_94 = arith.constant 5.000000e-01 : f32
    %244 = vector.broadcast %cst_94 : f32 to vector<8x64xf32>
    %245 = arith.mulf %244, %243 : vector<8x64xf32>
    %cst_95 = arith.constant 0.707106769 : f32
    %246 = vector.broadcast %cst_95 : f32 to vector<8x64xf32>
    %247 = arith.mulf %243, %246 : vector<8x64xf32>
    %248 = math.erf %247 : vector<8x64xf32>
    %cst_96 = arith.constant 1.000000e+00 : f32
    %249 = vector.broadcast %cst_96 : f32 to vector<8x64xf32>
    %250 = arith.addf %249, %248 : vector<8x64xf32>
    %251 = arith.mulf %245, %250 : vector<8x64xf32>
    %252 = arith.truncf %251 : vector<8x64xf32> to vector<8x64xbf16>
    %c0_97 = arith.constant 0 : index
    %c0_98 = arith.constant 0 : index
    %c0_99 = arith.constant 0 : index
    %253 = vector.load %arg16[%c0_97, %c0_98, %c0_99] : memref<2x64x32xbf16, #tpu.memory_space<vmem>>, vector<1x64x32xbf16>
    %254 = vector.shape_cast %253 : vector<1x64x32xbf16> to vector<64x32xbf16>
    %cst_100 = arith.constant dense<0.000000e+00> : vector<8x32xf32>
    %255 = tpu.matmul %252, %254, %cst_100 {dimension_numbers = #tpu.dot_dimension_numbers<[1], [0], [0], [1], [0, 0, 1, 1], [], []>} : vector<8x64xbf16>, vector<64x32xbf16>, vector<8x32xf32> -> vector<8x32xf32>
    %c0_101 = arith.constant 0 : index
    %c0_102 = arith.constant 0 : index
    %c0_103 = arith.constant 0 : index
    %256 = vector.load %arg17[%c0_101, %c0_102, %c0_103] : memref<2x1x32xf32, #tpu.memory_space<vmem>>, vector<1x1x32xf32>
    %257 = vector.shape_cast %256 : vector<1x1x32xf32> to vector<1x32xf32>
    %258 = vector.broadcast %257 : vector<1x32xf32> to vector<8x32xf32>
    %259 = arith.addf %255, %258 : vector<8x32xf32>
    %260 = arith.addf %259, %235 : vector<8x32xf32>
    %c0_104 = arith.constant 0 : index
    %c0_105 = arith.constant 0 : index
    %c0_106 = arith.constant 0 : index
    %261 = vector.load %arg18[%c0_104, %c0_105, %c0_106] : memref<2x1x32xf32, #tpu.memory_space<vmem>>, vector<1x1x32xf32>
    %262 = vector.shape_cast %261 : vector<1x1x32xf32> to vector<1x32xf32>
    %c0_107 = arith.constant 0 : index
    %c0_108 = arith.constant 0 : index
    %c0_109 = arith.constant 0 : index
    %263 = vector.load %arg19[%c0_107, %c0_108, %c0_109] : memref<2x1x32xf32, #tpu.memory_space<vmem>>, vector<1x1x32xf32>
    %264 = vector.shape_cast %263 : vector<1x1x32xf32> to vector<1x32xf32>
    %cst_110 = arith.constant dense<0.000000e+00> : vector<8xf32>
    %265 = vector.multi_reduction <add>, %260, %cst_110 [1] : vector<8x32xf32> to vector<8xf32>
    %266 = vector.shape_cast %265 : vector<8xf32> to vector<8x1xf32>
    %cst_111 = arith.constant 3.200000e+01 : f32
    %267 = vector.broadcast %cst_111 : f32 to vector<8x1xf32>
    %268 = arith.divf %266, %267 : vector<8x1xf32>
    %269 = vector.broadcast %268 : vector<8x1xf32> to vector<8x32xf32>
    %270 = arith.subf %260, %269 : vector<8x32xf32>
    %271 = arith.mulf %270, %270 : vector<8x32xf32>
    %cst_112 = arith.constant dense<0.000000e+00> : vector<8xf32>
    %272 = vector.multi_reduction <add>, %271, %cst_112 [1] : vector<8x32xf32> to vector<8xf32>
    %273 = vector.shape_cast %272 : vector<8xf32> to vector<8x1xf32>
    %cst_113 = arith.constant 3.200000e+01 : f32
    %274 = vector.broadcast %cst_113 : f32 to vector<8x1xf32>
    %275 = arith.divf %273, %274 : vector<8x1xf32>
    %276 = vector.broadcast %268 : vector<8x1xf32> to vector<8x32xf32>
    %277 = arith.subf %260, %276 : vector<8x32xf32>
    %cst_114 = arith.constant 9.99999996E-13 : f32
    %278 = vector.broadcast %cst_114 : f32 to vector<8x1xf32>
    %279 = arith.addf %275, %278 : vector<8x1xf32>
    %280 = math.rsqrt %279 : vector<8x1xf32>
    %281 = vector.broadcast %280 : vector<8x1xf32> to vector<8x32xf32>
    %282 = arith.mulf %277, %281 : vector<8x32xf32>
    %283 = vector.broadcast %262 : vector<1x32xf32> to vector<8x32xf32>
    %284 = arith.mulf %282, %283 : vector<8x32xf32>
    %285 = vector.broadcast %264 : vector<1x32xf32> to vector<8x32xf32>
    %286 = arith.addf %284, %285 : vector<8x32xf32>
    %287 = arith.truncf %286 : vector<8x32xf32> to vector<8x32xbf16>
    %c1_115 = arith.constant 1 : index
    %c0_116 = arith.constant 0 : index
    %c0_117 = arith.constant 0 : index
    %288 = vector.load %arg8[%c1_115, %c0_116, %c0_117] : memref<2x32x96xbf16, #tpu.memory_space<vmem>>, vector<1x32x96xbf16>
    %289 = vector.shape_cast %288 : vector<1x32x96xbf16> to vector<32x96xbf16>
    %cst_118 = arith.constant dense<0.000000e+00> : vector<8x96xf32>
    %290 = tpu.matmul %287, %289, %cst_118 {dimension_numbers = #tpu.dot_dimension_numbers<[1], [0], [0], [1], [0, 0, 1, 1], [], []>} : vector<8x32xbf16>, vector<32x96xbf16>, vector<8x96xf32> -> vector<8x96xf32>
    %c1_119 = arith.constant 1 : index
    %c0_120 = arith.constant 0 : index
    %c0_121 = arith.constant 0 : index
    %291 = vector.load %arg9[%c1_119, %c0_120, %c0_121] : memref<2x1x96xf32, #tpu.memory_space<vmem>>, vector<1x1x96xf32>
    %292 = vector.shape_cast %291 : vector<1x1x96xf32> to vector<1x96xf32>
    %293 = vector.broadcast %292 : vector<1x96xf32> to vector<8x96xf32>
    %294 = arith.addf %290, %293 : vector<8x96xf32>
    %295 = vector.extract_strided_slice %294 {offsets = [0, 0], sizes = [8, 8], strides = [1, 1]} : vector<8x96xf32> to vector<8x8xf32>
    %296 = vector.extract_strided_slice %294 {offsets = [0, 32], sizes = [8, 8], strides = [1, 1]} : vector<8x96xf32> to vector<8x8xf32>
    %297 = vector.extract_strided_slice %294 {offsets = [0, 64], sizes = [8, 8], strides = [1, 1]} : vector<8x96xf32> to vector<8x8xf32>
    %298 = vector.extract_strided_slice %294 {offsets = [0, 8], sizes = [8, 8], strides = [1, 1]} : vector<8x96xf32> to vector<8x8xf32>
    %299 = vector.extract_strided_slice %294 {offsets = [0, 40], sizes = [8, 8], strides = [1, 1]} : vector<8x96xf32> to vector<8x8xf32>
    %300 = vector.extract_strided_slice %294 {offsets = [0, 72], sizes = [8, 8], strides = [1, 1]} : vector<8x96xf32> to vector<8x8xf32>
    %301 = vector.extract_strided_slice %294 {offsets = [0, 16], sizes = [8, 8], strides = [1, 1]} : vector<8x96xf32> to vector<8x8xf32>
    %302 = vector.extract_strided_slice %294 {offsets = [0, 48], sizes = [8, 8], strides = [1, 1]} : vector<8x96xf32> to vector<8x8xf32>
    %303 = vector.extract_strided_slice %294 {offsets = [0, 80], sizes = [8, 8], strides = [1, 1]} : vector<8x96xf32> to vector<8x8xf32>
    %304 = vector.extract_strided_slice %294 {offsets = [0, 24], sizes = [8, 8], strides = [1, 1]} : vector<8x96xf32> to vector<8x8xf32>
    %305 = vector.extract_strided_slice %294 {offsets = [0, 56], sizes = [8, 8], strides = [1, 1]} : vector<8x96xf32> to vector<8x8xf32>
    %306 = vector.extract_strided_slice %294 {offsets = [0, 88], sizes = [8, 8], strides = [1, 1]} : vector<8x96xf32> to vector<8x8xf32>
    %307 = vector.shape_cast %295 : vector<8x8xf32> to vector<1x8x8xf32>
    %308 = vector.shape_cast %298 : vector<8x8xf32> to vector<1x8x8xf32>
    %309 = vector.shape_cast %301 : vector<8x8xf32> to vector<1x8x8xf32>
    %310 = vector.shape_cast %304 : vector<8x8xf32> to vector<1x8x8xf32>
    %311 = tpu.concatenate %307, %308, %309, %310 in 0 : vector<1x8x8xf32>, vector<1x8x8xf32>, vector<1x8x8xf32>, vector<1x8x8xf32> -> vector<4x8x8xf32>
    %312 = arith.truncf %311 : vector<4x8x8xf32> to vector<4x8x8xbf16>
    %313 = vector.shape_cast %296 : vector<8x8xf32> to vector<1x8x8xf32>
    %314 = vector.shape_cast %299 : vector<8x8xf32> to vector<1x8x8xf32>
    %315 = vector.shape_cast %302 : vector<8x8xf32> to vector<1x8x8xf32>
    %316 = vector.shape_cast %305 : vector<8x8xf32> to vector<1x8x8xf32>
    %317 = tpu.concatenate %313, %314, %315, %316 in 0 : vector<1x8x8xf32>, vector<1x8x8xf32>, vector<1x8x8xf32>, vector<1x8x8xf32> -> vector<4x8x8xf32>
    %318 = arith.truncf %317 : vector<4x8x8xf32> to vector<4x8x8xbf16>
    %319 = vector.shape_cast %297 : vector<8x8xf32> to vector<1x8x8xf32>
    %320 = vector.shape_cast %300 : vector<8x8xf32> to vector<1x8x8xf32>
    %321 = vector.shape_cast %303 : vector<8x8xf32> to vector<1x8x8xf32>
    %322 = vector.shape_cast %306 : vector<8x8xf32> to vector<1x8x8xf32>
    %323 = tpu.concatenate %319, %320, %321, %322 in 0 : vector<1x8x8xf32>, vector<1x8x8xf32>, vector<1x8x8xf32>, vector<1x8x8xf32> -> vector<4x8x8xf32>
    %324 = arith.truncf %323 : vector<4x8x8xf32> to vector<4x8x8xbf16>
    "tpu.trace_start"() <{level = 10 : i32, message = "hqd,hkd->hqk"}> : () -> ()
    %cst_122 = arith.constant dense<0.000000e+00> : vector<4x8x8xf32>
    %325 = tpu.matmul %312, %318, %cst_122 {dimension_numbers = #tpu.dot_dimension_numbers<[2], [2], [1], [1], [0, 0, 0, 1, 1, 1], [0], [0]>} : vector<4x8x8xbf16>, vector<4x8x8xbf16>, vector<4x8x8xf32> -> vector<4x8x8xf32>
    "tpu.trace_stop"() : () -> ()
    %cst_123 = arith.constant 0.353553385 : f32
    %326 = vector.broadcast %cst_123 : f32 to vector<4x8x8xf32>
    %327 = arith.mulf %325, %326 : vector<4x8x8xf32>
    %328 = vector.shape_cast %135 : vector<1x8xf32> to vector<1x1x8xf32>
    %329 = vector.broadcast %328 : vector<1x1x8xf32> to vector<4x8x8xf32>
    %330 = arith.addf %327, %329 : vector<4x8x8xf32>
    %cst_124 = arith.constant dense<0xFF800000> : vector<4x8xf32>
    %331 = vector.multi_reduction <maximumf>, %330, %cst_124 [2] : vector<4x8x8xf32> to vector<4x8xf32>
    %332 = vector.shape_cast %331 : vector<4x8xf32> to vector<4x8x1xf32>
    %333 = vector.broadcast %332 : vector<4x8x1xf32> to vector<4x8x8xf32>
    %334 = arith.subf %330, %333 : vector<4x8x8xf32>
    %335 = math.exp %334 : vector<4x8x8xf32>
    %cst_125 = arith.constant dense<0.000000e+00> : vector<4x8xf32>
    %336 = vector.multi_reduction <add>, %335, %cst_125 [2] : vector<4x8x8xf32> to vector<4x8xf32>
    %337 = vector.shape_cast %336 : vector<4x8xf32> to vector<4x8x1xf32>
    %338 = tpu.reciprocal %337 : vector<4x8x1xf32> -> vector<4x8x1xf32>
    %339 = vector.broadcast %338 : vector<4x8x1xf32> to vector<4x8x8xf32>
    %340 = arith.mulf %335, %339 : vector<4x8x8xf32>
    %341 = arith.truncf %340 : vector<4x8x8xf32> to vector<4x8x8xbf16>
    "tpu.trace_start"() <{level = 10 : i32, message = "hqk,hkd->hqd"}> : () -> ()
    %cst_126 = arith.constant dense<0.000000e+00> : vector<4x8x8xf32>
    %342 = tpu.matmul %341, %324, %cst_126 {dimension_numbers = #tpu.dot_dimension_numbers<[2], [1], [1], [2], [0, 0, 0, 1, 1, 2], [0], [0]>} : vector<4x8x8xbf16>, vector<4x8x8xbf16>, vector<4x8x8xf32> -> vector<4x8x8xf32>
    "tpu.trace_stop"() : () -> ()
    %343 = vector.extract_strided_slice %342 {offsets = [0, 0, 0], sizes = [1, 8, 8], strides = [1, 1, 1]} : vector<4x8x8xf32> to vector<1x8x8xf32>
    %344 = vector.shape_cast %343 : vector<1x8x8xf32> to vector<8x8xf32>
    %345 = vector.extract_strided_slice %342 {offsets = [1, 0, 0], sizes = [1, 8, 8], strides = [1, 1, 1]} : vector<4x8x8xf32> to vector<1x8x8xf32>
    %346 = vector.shape_cast %345 : vector<1x8x8xf32> to vector<8x8xf32>
    %347 = vector.extract_strided_slice %342 {offsets = [2, 0, 0], sizes = [1, 8, 8], strides = [1, 1, 1]} : vector<4x8x8xf32> to vector<1x8x8xf32>
    %348 = vector.shape_cast %347 : vector<1x8x8xf32> to vector<8x8xf32>
    %349 = vector.extract_strided_slice %342 {offsets = [3, 0, 0], sizes = [1, 8, 8], strides = [1, 1, 1]} : vector<4x8x8xf32> to vector<1x8x8xf32>
    %350 = vector.shape_cast %349 : vector<1x8x8xf32> to vector<8x8xf32>
    %351 = tpu.concatenate %344, %346, %348, %350 in 1 : vector<8x8xf32>, vector<8x8xf32>, vector<8x8xf32>, vector<8x8xf32> -> vector<8x32xf32>
    %352 = arith.truncf %351 : vector<8x32xf32> to vector<8x32xbf16>
    %c1_127 = arith.constant 1 : index
    %c0_128 = arith.constant 0 : index
    %c0_129 = arith.constant 0 : index
    %353 = vector.load %arg10[%c1_127, %c0_128, %c0_129] : memref<2x32x32xbf16, #tpu.memory_space<vmem>>, vector<1x32x32xbf16>
    %354 = vector.shape_cast %353 : vector<1x32x32xbf16> to vector<32x32xbf16>
    %cst_130 = arith.constant dense<0.000000e+00> : vector<8x32xf32>
    %355 = tpu.matmul %352, %354, %cst_130 {dimension_numbers = #tpu.dot_dimension_numbers<[1], [0], [0], [1], [0, 0, 1, 1], [], []>} : vector<8x32xbf16>, vector<32x32xbf16>, vector<8x32xf32> -> vector<8x32xf32>
    %c1_131 = arith.constant 1 : index
    %c0_132 = arith.constant 0 : index
    %c0_133 = arith.constant 0 : index
    %356 = vector.load %arg11[%c1_131, %c0_132, %c0_133] : memref<2x1x32xf32, #tpu.memory_space<vmem>>, vector<1x1x32xf32>
    %357 = vector.shape_cast %356 : vector<1x1x32xf32> to vector<1x32xf32>
    %358 = vector.broadcast %357 : vector<1x32xf32> to vector<8x32xf32>
    %359 = arith.addf %355, %358 : vector<8x32xf32>
    %360 = arith.addf %359, %286 : vector<8x32xf32>
    %c1_134 = arith.constant 1 : index
    %c0_135 = arith.constant 0 : index
    %c0_136 = arith.constant 0 : index
    %361 = vector.load %arg12[%c1_134, %c0_135, %c0_136] : memref<2x1x32xf32, #tpu.memory_space<vmem>>, vector<1x1x32xf32>
    %362 = vector.shape_cast %361 : vector<1x1x32xf32> to vector<1x32xf32>
    %c1_137 = arith.constant 1 : index
    %c0_138 = arith.constant 0 : index
    %c0_139 = arith.constant 0 : index
    %363 = vector.load %arg13[%c1_137, %c0_138, %c0_139] : memref<2x1x32xf32, #tpu.memory_space<vmem>>, vector<1x1x32xf32>
    %364 = vector.shape_cast %363 : vector<1x1x32xf32> to vector<1x32xf32>
    %cst_140 = arith.constant dense<0.000000e+00> : vector<8xf32>
    %365 = vector.multi_reduction <add>, %360, %cst_140 [1] : vector<8x32xf32> to vector<8xf32>
    %366 = vector.shape_cast %365 : vector<8xf32> to vector<8x1xf32>
    %cst_141 = arith.constant 3.200000e+01 : f32
    %367 = vector.broadcast %cst_141 : f32 to vector<8x1xf32>
    %368 = arith.divf %366, %367 : vector<8x1xf32>
    %369 = vector.broadcast %368 : vector<8x1xf32> to vector<8x32xf32>
    %370 = arith.subf %360, %369 : vector<8x32xf32>
    %371 = arith.mulf %370, %370 : vector<8x32xf32>
    %cst_142 = arith.constant dense<0.000000e+00> : vector<8xf32>
    %372 = vector.multi_reduction <add>, %371, %cst_142 [1] : vector<8x32xf32> to vector<8xf32>
    %373 = vector.shape_cast %372 : vector<8xf32> to vector<8x1xf32>
    %cst_143 = arith.constant 3.200000e+01 : f32
    %374 = vector.broadcast %cst_143 : f32 to vector<8x1xf32>
    %375 = arith.divf %373, %374 : vector<8x1xf32>
    %376 = vector.broadcast %368 : vector<8x1xf32> to vector<8x32xf32>
    %377 = arith.subf %360, %376 : vector<8x32xf32>
    %cst_144 = arith.constant 9.99999996E-13 : f32
    %378 = vector.broadcast %cst_144 : f32 to vector<8x1xf32>
    %379 = arith.addf %375, %378 : vector<8x1xf32>
    %380 = math.rsqrt %379 : vector<8x1xf32>
    %381 = vector.broadcast %380 : vector<8x1xf32> to vector<8x32xf32>
    %382 = arith.mulf %377, %381 : vector<8x32xf32>
    %383 = vector.broadcast %362 : vector<1x32xf32> to vector<8x32xf32>
    %384 = arith.mulf %382, %383 : vector<8x32xf32>
    %385 = vector.broadcast %364 : vector<1x32xf32> to vector<8x32xf32>
    %386 = arith.addf %384, %385 : vector<8x32xf32>
    %387 = arith.truncf %386 : vector<8x32xf32> to vector<8x32xbf16>
    %c1_145 = arith.constant 1 : index
    %c0_146 = arith.constant 0 : index
    %c0_147 = arith.constant 0 : index
    %388 = vector.load %arg14[%c1_145, %c0_146, %c0_147] : memref<2x32x64xbf16, #tpu.memory_space<vmem>>, vector<1x32x64xbf16>
    %389 = vector.shape_cast %388 : vector<1x32x64xbf16> to vector<32x64xbf16>
    %cst_148 = arith.constant dense<0.000000e+00> : vector<8x64xf32>
    %390 = tpu.matmul %387, %389, %cst_148 {dimension_numbers = #tpu.dot_dimension_numbers<[1], [0], [0], [1], [0, 0, 1, 1], [], []>} : vector<8x32xbf16>, vector<32x64xbf16>, vector<8x64xf32> -> vector<8x64xf32>
    %c1_149 = arith.constant 1 : index
    %c0_150 = arith.constant 0 : index
    %c0_151 = arith.constant 0 : index
    %391 = vector.load %arg15[%c1_149, %c0_150, %c0_151] : memref<2x1x64xf32, #tpu.memory_space<vmem>>, vector<1x1x64xf32>
    %392 = vector.shape_cast %391 : vector<1x1x64xf32> to vector<1x64xf32>
    %393 = vector.broadcast %392 : vector<1x64xf32> to vector<8x64xf32>
    %394 = arith.addf %390, %393 : vector<8x64xf32>
    %cst_152 = arith.constant 5.000000e-01 : f32
    %395 = vector.broadcast %cst_152 : f32 to vector<8x64xf32>
    %396 = arith.mulf %395, %394 : vector<8x64xf32>
    %cst_153 = arith.constant 0.707106769 : f32
    %397 = vector.broadcast %cst_153 : f32 to vector<8x64xf32>
    %398 = arith.mulf %394, %397 : vector<8x64xf32>
    %399 = math.erf %398 : vector<8x64xf32>
    %cst_154 = arith.constant 1.000000e+00 : f32
    %400 = vector.broadcast %cst_154 : f32 to vector<8x64xf32>
    %401 = arith.addf %400, %399 : vector<8x64xf32>
    %402 = arith.mulf %396, %401 : vector<8x64xf32>
    %403 = arith.truncf %402 : vector<8x64xf32> to vector<8x64xbf16>
    %c1_155 = arith.constant 1 : index
    %c0_156 = arith.constant 0 : index
    %c0_157 = arith.constant 0 : index
    %404 = vector.load %arg16[%c1_155, %c0_156, %c0_157] : memref<2x64x32xbf16, #tpu.memory_space<vmem>>, vector<1x64x32xbf16>
    %405 = vector.shape_cast %404 : vector<1x64x32xbf16> to vector<64x32xbf16>
    %cst_158 = arith.constant dense<0.000000e+00> : vector<8x32xf32>
    %406 = tpu.matmul %403, %405, %cst_158 {dimension_numbers = #tpu.dot_dimension_numbers<[1], [0], [0], [1], [0, 0, 1, 1], [], []>} : vector<8x64xbf16>, vector<64x32xbf16>, vector<8x32xf32> -> vector<8x32xf32>
    %c1_159 = arith.constant 1 : index
    %c0_160 = arith.constant 0 : index
    %c0_161 = arith.constant 0 : index
    %407 = vector.load %arg17[%c1_159, %c0_160, %c0_161] : memref<2x1x32xf32, #tpu.memory_space<vmem>>, vector<1x1x32xf32>
    %408 = vector.shape_cast %407 : vector<1x1x32xf32> to vector<1x32xf32>
    %409 = vector.broadcast %408 : vector<1x32xf32> to vector<8x32xf32>
    %410 = arith.addf %406, %409 : vector<8x32xf32>
    %411 = arith.addf %410, %386 : vector<8x32xf32>
    %c1_162 = arith.constant 1 : index
    %c0_163 = arith.constant 0 : index
    %c0_164 = arith.constant 0 : index
    %412 = vector.load %arg18[%c1_162, %c0_163, %c0_164] : memref<2x1x32xf32, #tpu.memory_space<vmem>>, vector<1x1x32xf32>
    %413 = vector.shape_cast %412 : vector<1x1x32xf32> to vector<1x32xf32>
    %c1_165 = arith.constant 1 : index
    %c0_166 = arith.constant 0 : index
    %c0_167 = arith.constant 0 : index
    %414 = vector.load %arg19[%c1_165, %c0_166, %c0_167] : memref<2x1x32xf32, #tpu.memory_space<vmem>>, vector<1x1x32xf32>
    %415 = vector.shape_cast %414 : vector<1x1x32xf32> to vector<1x32xf32>
    %cst_168 = arith.constant dense<0.000000e+00> : vector<8xf32>
    %416 = vector.multi_reduction <add>, %411, %cst_168 [1] : vector<8x32xf32> to vector<8xf32>
    %417 = vector.shape_cast %416 : vector<8xf32> to vector<8x1xf32>
    %cst_169 = arith.constant 3.200000e+01 : f32
    %418 = vector.broadcast %cst_169 : f32 to vector<8x1xf32>
    %419 = arith.divf %417, %418 : vector<8x1xf32>
    %420 = vector.broadcast %419 : vector<8x1xf32> to vector<8x32xf32>
    %421 = arith.subf %411, %420 : vector<8x32xf32>
    %422 = arith.mulf %421, %421 : vector<8x32xf32>
    %cst_170 = arith.constant dense<0.000000e+00> : vector<8xf32>
    %423 = vector.multi_reduction <add>, %422, %cst_170 [1] : vector<8x32xf32> to vector<8xf32>
    %424 = vector.shape_cast %423 : vector<8xf32> to vector<8x1xf32>
    %cst_171 = arith.constant 3.200000e+01 : f32
    %425 = vector.broadcast %cst_171 : f32 to vector<8x1xf32>
    %426 = arith.divf %424, %425 : vector<8x1xf32>
    %427 = vector.broadcast %419 : vector<8x1xf32> to vector<8x32xf32>
    %428 = arith.subf %411, %427 : vector<8x32xf32>
    %cst_172 = arith.constant 9.99999996E-13 : f32
    %429 = vector.broadcast %cst_172 : f32 to vector<8x1xf32>
    %430 = arith.addf %426, %429 : vector<8x1xf32>
    %431 = math.rsqrt %430 : vector<8x1xf32>
    %432 = vector.broadcast %431 : vector<8x1xf32> to vector<8x32xf32>
    %433 = arith.mulf %428, %432 : vector<8x32xf32>
    %434 = vector.broadcast %413 : vector<1x32xf32> to vector<8x32xf32>
    %435 = arith.mulf %433, %434 : vector<8x32xf32>
    %436 = vector.broadcast %415 : vector<1x32xf32> to vector<8x32xf32>
    %437 = arith.addf %435, %436 : vector<8x32xf32>
    %c0_173 = arith.constant 0 : index
    %c0_174 = arith.constant 0 : index
    %438 = vector.load %arg22[%c0_173, %c0_174] : memref<8x32xf32, #tpu.memory_space<vmem>>, vector<8x32xf32>
    tpu.vector_store %arg22[%c0_173, %c0_174], %437 {strides = array<i32>} : memref<8x32xf32, #tpu.memory_space<vmem>>, vector<8x32xf32>,
    %439 = vector.extract_strided_slice %437 {offsets = [0, 0], sizes = [1, 32], strides = [1, 1]} : vector<8x32xf32> to vector<1x32xf32>
    %440 = arith.truncf %439 : vector<1x32xf32> to vector<1x32xbf16>
    %c0_175 = arith.constant 0 : index
    %c0_176 = arith.constant 0 : index
    %441 = vector.load %arg20[%c0_175, %c0_176] : memref<32x32xbf16, #tpu.memory_space<vmem>>, vector<32x32xbf16>
    %cst_177 = arith.constant dense<0.000000e+00> : vector<1x32xf32>
    %442 = tpu.matmul %440, %441, %cst_177 {dimension_numbers = #tpu.dot_dimension_numbers<[1], [0], [0], [1], [0, 0, 1, 1], [], []>} : vector<1x32xbf16>, vector<32x32xbf16>, vector<1x32xf32> -> vector<1x32xf32>
    %c0_178 = arith.constant 0 : index
    %c0_179 = arith.constant 0 : index
    %443 = vector.load %arg21[%c0_178, %c0_179] : memref<1x32xf32, #tpu.memory_space<vmem>>, vector<1x32xf32>
    %444 = arith.addf %442, %443 : vector<1x32xf32>
    %445 = math.tanh %444 : vector<1x32xf32>
    %c0_180 = arith.constant 0 : index
    %c0_181 = arith.constant 0 : index
    %446 = vector.load %arg23[%c0_180, %c0_181] : memref<1x32xf32, #tpu.memory_space<vmem>>, vector<1x32xf32>
    tpu.vector_store %arg23[%c0_180, %c0_181], %445 {strides = array<i32>} : memref<1x32xf32, #tpu.memory_space<vmem>>, vector<1x32xf32>,
    return
  }
  func.func @transform_0(%arg0: i32, %arg1: memref<8xi32, #tpu.memory_space<smem>>, %arg2: memref<8xi32, #tpu.memory_space<smem>>) -> (i32, i32) {
    %c0_i32 = arith.constant 0 : i32
    %c0_i32_0 = arith.constant 0 : i32
    %c0_i32_1 = arith.constant 0 : i32
    return %c0_i32, %c0_i32_0 : i32, i32
  }
  func.func @transform_1(%arg0: i32, %arg1: memref<8xi32, #tpu.memory_space<smem>>, %arg2: memref<8xi32, #tpu.memory_space<smem>>) -> (i32, i32) {
    %c0_i32 = arith.constant 0 : i32
    %c0_i32_0 = arith.constant 0 : i32
    %c0_i32_1 = arith.constant 0 : i32
    return %c0_i32, %c0_i32_0 : i32, i32
  }
  func.func @transform_2(%arg0: i32, %arg1: memref<8xi32, #tpu.memory_space<smem>>, %arg2: memref<8xi32, #tpu.memory_space<smem>>) -> (i32, i32) {
    %c0_i32 = arith.constant 0 : i32
    %c0_i32_0 = arith.constant 0 : i32
    %c0_i32_1 = arith.constant 0 : i32
    return %c0_i32, %c0_i32_0 : i32, i32
  }
  func.func @transform_3(%arg0: i32, %arg1: memref<8xi32, #tpu.memory_space<smem>>, %arg2: memref<8xi32, #tpu.memory_space<smem>>) -> (i32, i32) {
    %c0_i32 = arith.constant 0 : i32
    %c0_i32_0 = arith.constant 0 : i32
    %c0_i32_1 = arith.constant 0 : i32
    return %c0_i32, %c0_i32_0 : i32, i32
  }
  func.func @transform_4(%arg0: i32, %arg1: memref<8xi32, #tpu.memory_space<smem>>, %arg2: memref<8xi32, #tpu.memory_space<smem>>) -> (i32, i32) {
    %c0_i32 = arith.constant 0 : i32
    %c0_i32_0 = arith.constant 0 : i32
    %c0_i32_1 = arith.constant 0 : i32
    return %c0_i32, %c0_i32_0 : i32, i32
  }
  func.func @transform_5(%arg0: i32, %arg1: memref<8xi32, #tpu.memory_space<smem>>, %arg2: memref<8xi32, #tpu.memory_space<smem>>) -> (i32, i32, i32) {
    %c0_i32 = arith.constant 0 : i32
    %c0_i32_0 = arith.constant 0 : i32
    %c0_i32_1 = arith.constant 0 : i32
    %c0_i32_2 = arith.constant 0 : i32
    return %c0_i32, %c0_i32_0, %c0_i32_1 : i32, i32, i32
  }
  func.func @transform_6(%arg0: i32, %arg1: memref<8xi32, #tpu.memory_space<smem>>, %arg2: memref<8xi32, #tpu.memory_space<smem>>) -> (i32, i32, i32) {
    %c0_i32 = arith.constant 0 : i32
    %c0_i32_0 = arith.constant 0 : i32
    %c0_i32_1 = arith.constant 0 : i32
    %c0_i32_2 = arith.constant 0 : i32
    return %c0_i32, %c0_i32_0, %c0_i32_1 : i32, i32, i32
  }
  func.func @transform_7(%arg0: i32, %arg1: memref<8xi32, #tpu.memory_space<smem>>, %arg2: memref<8xi32, #tpu.memory_space<smem>>) -> (i32, i32, i32) {
    %c0_i32 = arith.constant 0 : i32
    %c0_i32_0 = arith.constant 0 : i32
    %c0_i32_1 = arith.constant 0 : i32
    %c0_i32_2 = arith.constant 0 : i32
    return %c0_i32, %c0_i32_0, %c0_i32_1 : i32, i32, i32
  }
  func.func @transform_8(%arg0: i32, %arg1: memref<8xi32, #tpu.memory_space<smem>>, %arg2: memref<8xi32, #tpu.memory_space<smem>>) -> (i32, i32, i32) {
    %c0_i32 = arith.constant 0 : i32
    %c0_i32_0 = arith.constant 0 : i32
    %c0_i32_1 = arith.constant 0 : i32
    %c0_i32_2 = arith.constant 0 : i32
    return %c0_i32, %c0_i32_0, %c0_i32_1 : i32, i32, i32
  }
  func.func @transform_9(%arg0: i32, %arg1: memref<8xi32, #tpu.memory_space<smem>>, %arg2: memref<8xi32, #tpu.memory_space<smem>>) -> (i32, i32, i32) {
    %c0_i32 = arith.constant 0 : i32
    %c0_i32_0 = arith.constant 0 : i32
    %c0_i32_1 = arith.constant 0 : i32
    %c0_i32_2 = arith.constant 0 : i32
    return %c0_i32, %c0_i32_0, %c0_i32_1 : i32, i32, i32
  }
  func.func @transform_10(%arg0: i32, %arg1: memref<8xi32, #tpu.memory_space<smem>>, %arg2: memref<8xi32, #tpu.memory_space<smem>>) -> (i32, i32, i32) {
    %c0_i32 = arith.constant 0 : i32
    %c0_i32_0 = arith.constant 0 : i32
    %c0_i32_1 = arith.constant 0 : i32
    %c0_i32_2 = arith.constant 0 : i32
    return %c0_i32, %c0_i32_0, %c0_i32_1 : i32, i32, i32
  }
  func.func @transform_11(%arg0: i32, %arg1: memref<8xi32, #tpu.memory_space<smem>>, %arg2: memref<8xi32, #tpu.memory_space<smem>>) -> (i32, i32, i32) {
    %c0_i32 = arith.constant 0 : i32
    %c0_i32_0 = arith.constant 0 : i32
    %c0_i32_1 = arith.constant 0 : i32
    %c0_i32_2 = arith.constant 0 : i32
    return %c0_i32, %c0_i32_0, %c0_i32_1 : i32, i32, i32
  }
  func.func @transform_12(%arg0: i32, %arg1: memref<8xi32, #tpu.memory_space<smem>>, %arg2: memref<8xi32, #tpu.memory_space<smem>>) -> (i32, i32, i32) {
    %c0_i32 = arith.constant 0 : i32
    %c0_i32_0 = arith.constant 0 : i32
    %c0_i32_1 = arith.constant 0 : i32
    %c0_i32_2 = arith.constant 0 : i32
    return %c0_i32, %c0_i32_0, %c0_i32_1 : i32, i32, i32
  }
  func.func @transform_13(%arg0: i32, %arg1: memref<8xi32, #tpu.memory_space<smem>>, %arg2: memref<8xi32, #tpu.memory_space<smem>>) -> (i32, i32, i32) {
    %c0_i32 = arith.constant 0 : i32
    %c0_i32_0 = arith.constant 0 : i32
    %c0_i32_1 = arith.constant 0 : i32
    %c0_i32_2 = arith.constant 0 : i32
    return %c0_i32, %c0_i32_0, %c0_i32_1 : i32, i32, i32
  }
  func.func @transform_14(%arg0: i32, %arg1: memref<8xi32, #tpu.memory_space<smem>>, %arg2: memref<8xi32, #tpu.memory_space<smem>>) -> (i32, i32, i32) {
    %c0_i32 = arith.constant 0 : i32
    %c0_i32_0 = arith.constant 0 : i32
    %c0_i32_1 = arith.constant 0 : i32
    %c0_i32_2 = arith.constant 0 : i32
    return %c0_i32, %c0_i32_0, %c0_i32_1 : i32, i32, i32
  }
  func.func @transform_15(%arg0: i32, %arg1: memref<8xi32, #tpu.memory_space<smem>>, %arg2: memref<8xi32, #tpu.memory_space<smem>>) -> (i32, i32, i32) {
    %c0_i32 = arith.constant 0 : i32
    %c0_i32_0 = arith.constant 0 : i32
    %c0_i32_1 = arith.constant 0 : i32
    %c0_i32_2 = arith.constant 0 : i32
    return %c0_i32, %c0_i32_0, %c0_i32_1 : i32, i32, i32
  }
  func.func @transform_16(%arg0: i32, %arg1: memref<8xi32, #tpu.memory_space<smem>>, %arg2: memref<8xi32, #tpu.memory_space<smem>>) -> (i32, i32, i32) {
    %c0_i32 = arith.constant 0 : i32
    %c0_i32_0 = arith.constant 0 : i32
    %c0_i32_1 = arith.constant 0 : i32
    %c0_i32_2 = arith.constant 0 : i32
    return %c0_i32, %c0_i32_0, %c0_i32_1 : i32, i32, i32
  }
  func.func @transform_17(%arg0: i32, %arg1: memref<8xi32, #tpu.memory_space<smem>>, %arg2: memref<8xi32, #tpu.memory_space<smem>>) -> (i32, i32) {
    %c0_i32 = arith.constant 0 : i32
    %c0_i32_0 = arith.constant 0 : i32
    %c0_i32_1 = arith.constant 0 : i32
    return %c0_i32, %c0_i32_0 : i32, i32
  }
  func.func @transform_18(%arg0: i32, %arg1: memref<8xi32, #tpu.memory_space<smem>>, %arg2: memref<8xi32, #tpu.memory_space<smem>>) -> (i32, i32) {
    %c0_i32 = arith.constant 0 : i32
    %c0_i32_0 = arith.constant 0 : i32
    %c0_i32_1 = arith.constant 0 : i32
    return %c0_i32, %c0_i32_0 : i32, i32
  }
  func.func @transform_19(%arg0: i32, %arg1: memref<8xi32, #tpu.memory_space<smem>>, %arg2: memref<8xi32, #tpu.memory_space<smem>>) -> (i32, i32) {
    %c0_i32 = arith.constant 0 : i32
    %c0_i32_0 = arith.constant 0 : i32
    %c0_i32_1 = arith.constant 0 : i32
    return %c0_i32, %c0_i32_0 : i32, i32
  }
  func.func @transform_20(%arg0: i32, %arg1: memref<8xi32, #tpu.memory_space<smem>>, %arg2: memref<8xi32, #tpu.memory_space<smem>>) -> (i32, i32) {
    %c0_i32 = arith.constant 0 : i32
    %c0_i32_0 = arith.constant 0 : i32
    %c0_i32_1 = arith.constant 0 : i32
    return %c0_i32, %c0_i32_0 : i32, i32
  }
}

</mosaic_0001>

<llo_original>
// kernel: bert_forward.1
$region0: #{bert_forward.1}
  #allocation0 [shape = 'u32[]', space=smem, size = 0x4, offset = 0x4, fixed_abs, tag = 'smem constant byte address 0x4 - core index']
  #allocation1 [shape = 'u32[144,128]{1,0:T(1,128)}', space=vmem, size = 0x12000, scoped, tag = 'internal scratch']
  #allocation2 [shape = 's32[1]{0}', space=sflag, size = 0x4, scoped, tag = 'scoped memory for bert_forward.1']
  #allocation3 [shape = 'u8[512]{0}', space=smem, size = 0x200, scoped, tag = 'prefetched SMEM operand 0']
  #allocation4 [shape = 'u8[512]{0}', space=smem, size = 0x200, scoped, tag = 'prefetched SMEM operand 1']
  %s0 = inlined_call_operand.vmem [shape: s32[8], index: 0, kind: input, shape index: {}]
  %s1 = inlined_call_operand.vmem [shape: s32[8], index: 1, kind: input, shape index: {}]
  %s2 = inlined_call_operand.vmem [shape: f32[100,32], index: 2, kind: input, shape index: {}]
  %s3 = inlined_call_operand.vmem [shape: f32[64,32], index: 3, kind: input, shape index: {}]
  %s4 = inlined_call_operand.vmem [shape: f32[2,32], index: 4, kind: input, shape index: {}]
  %s5 = inlined_call_operand.vmem [shape: f32[1,32], index: 5, kind: input, shape index: {}]
  %s6 = inlined_call_operand.vmem [shape: f32[1,32], index: 6, kind: input, shape index: {}]
  %s7 = inlined_call_operand.vmem [shape: bf16[2,32,96], index: 7, kind: input, shape index: {}]
  %s8 = inlined_call_operand.vmem [shape: f32[2,1,96], index: 8, kind: input, shape index: {}]
  %s9 = inlined_call_operand.vmem [shape: bf16[2,32,32], index: 9, kind: input, shape index: {}]
  %s10 = inlined_call_operand.vmem [shape: f32[2,1,32], index: 10, kind: input, shape index: {}]
  %s11 = inlined_call_operand.vmem [shape: f32[2,1,32], index: 11, kind: input, shape index: {}]
  %s12 = inlined_call_operand.vmem [shape: f32[2,1,32], index: 12, kind: input, shape index: {}]
  %s13 = inlined_call_operand.vmem [shape: bf16[2,32,64], index: 13, kind: input, shape index: {}]
  %s14 = inlined_call_operand.vmem [shape: f32[2,1,64], index: 14, kind: input, shape index: {}]
  %s15 = inlined_call_operand.vmem [shape: bf16[2,64,32], index: 15, kind: input, shape index: {}]
  %s16 = inlined_call_operand.vmem [shape: f32[2,1,32], index: 16, kind: input, shape index: {}]
  %s17 = inlined_call_operand.vmem [shape: f32[2,1,32], index: 17, kind: input, shape index: {}]
  %s18 = inlined_call_operand.vmem [shape: f32[2,1,32], index: 18, kind: input, shape index: {}]
  %s19 = inlined_call_operand.vmem [shape: bf16[32,32], index: 19, kind: input, shape index: {}]
  %s20 = inlined_call_operand.vmem [shape: f32[1,32], index: 20, kind: input, shape index: {}]
  %s21 = inlined_call_operand.hbm [shape: f32[8,32], index: 21, kind: output, shape index: {0}]
  %s22 = inlined_call_operand.hbm [shape: f32[1,32], index: 22, kind: output, shape index: {1}]
  %23 = xla_tuple %s21, %s22
  %s24 = sld [smem:[#allocation0]]
  $region94: #{bert_forward.1} parent=0
    _
  %s26 = ssub.s32 1, %s24
  %s27 = scalar_select 0, %s26, %s24
  %s28 = sshll.u32 %s0, 4
  %s29 = int_to_ptr.vmem [resolvable:$true] %s28
  %31 = dma.vmem_to_smem %s29, 16, [#allocation3], [#allocation2]
  %s32 = sshll.u32 %s1, 4
  %s33 = int_to_ptr.vmem [resolvable:$true] %s32
  %35 = dma.vmem_to_smem %s33, 16, [#allocation4], [#allocation2]
  %36 = dma.done [#allocation2], 32
  %37 = sfence
  $region1: #{bert_forward.1} parent=0
    #allocation5 [shape = 'u8[4096]{0}', space=vmem, size = 0x1000, scoped, tag = 'output window, operand 0, single buffered']
    #allocation6 [shape = 's32[1]{0}', space=sflag, size = 0x4, scoped, tag = 'scoped memory for bert_forward.1']
    #allocation7 [shape = 'u8[512]{0}', space=vmem, size = 0x400, scoped, tag = 'output window, operand 1, single buffered']
    #allocation8 [shape = 's32[1]{0}', space=sflag, size = 0x4, scoped, tag = 'scoped memory for bert_forward.1']
    %38 = vsyncpa [#allocation6], 0
    %39 = vsyncpa [#allocation8], 0
    // Predicated region
    $region2: #{bert_forward.1} parent=1 // pred_check
      _
    $region3: #{bert_forward.1} parent=1 // pred_check_branch
      %41 = sbr.rel (0) target = $region5
    $region4: #{bert_forward.1} parent=1 // pred_region
      _
    $region5: #{bert_forward.1} parent=1 // pred_fallthru
      _
    // Predicated region
    $region6: #{bert_forward.1} parent=1 // pred_check
      _
    $region7: #{bert_forward.1} parent=1 // pred_check_branch
      %43 = sbr.rel (0) target = $region9
    $region8: #{bert_forward.1} parent=1 // pred_region
      _
    $region9: #{bert_forward.1} parent=1 // pred_fallthru
      _
    // Predicated region
    $region10: #{bert_forward.1} parent=1 // pred_check
      _
    $region11: #{bert_forward.1} parent=1 // pred_check_branch
      %45 = sbr.rel (0) target = $region13
    $region12: #{bert_forward.1} parent=1 // pred_region
      _
    $region13: #{bert_forward.1} parent=1 // pred_fallthru
      _
    // Predicated region
    $region14: #{bert_forward.1} parent=1 // pred_check
      _
    $region15: #{bert_forward.1} parent=1 // pred_check_branch
      %47 = sbr.rel (0) target = $region17
    $region16: #{bert_forward.1} parent=1 // pred_region
      _
    $region17: #{bert_forward.1} parent=1 // pred_fallthru
      _
    // Predicated region
    $region18: #{bert_forward.1} parent=1 // pred_check
      _
    $region19: #{bert_forward.1} parent=1 // pred_check_branch
      %49 = sbr.rel (0) target = $region21
    $region20: #{bert_forward.1} parent=1 // pred_region
      _
    $region21: #{bert_forward.1} parent=1 // pred_fallthru
      _
    // Predicated region
    $region22: #{bert_forward.1} parent=1 // pred_check
      _
    $region23: #{bert_forward.1} parent=1 // pred_check_branch
      %51 = sbr.rel (0) target = $region25
    $region24: #{bert_forward.1} parent=1 // pred_region
      _
    $region25: #{bert_forward.1} parent=1 // pred_fallthru
      _
    // Predicated region
    $region26: #{bert_forward.1} parent=1 // pred_check
      _
    $region27: #{bert_forward.1} parent=1 // pred_check_branch
      %53 = sbr.rel (0) target = $region29
    $region28: #{bert_forward.1} parent=1 // pred_region
      _
    $region29: #{bert_forward.1} parent=1 // pred_fallthru
      _
    // Predicated region
    $region30: #{bert_forward.1} parent=1 // pred_check
      _
    $region31: #{bert_forward.1} parent=1 // pred_check_branch
      %55 = sbr.rel (0) target = $region33
    $region32: #{bert_forward.1} parent=1 // pred_region
      _
    $region33: #{bert_forward.1} parent=1 // pred_fallthru
      _
    // Predicated region
    $region34: #{bert_forward.1} parent=1 // pred_check
      _
    $region35: #{bert_forward.1} parent=1 // pred_check_branch
      %57 = sbr.rel (0) target = $region37
    $region36: #{bert_forward.1} parent=1 // pred_region
      _
    $region37: #{bert_forward.1} parent=1 // pred_fallthru
      _
    // Predicated region
    $region38: #{bert_forward.1} parent=1 // pred_check
      _
    $region39: #{bert_forward.1} parent=1 // pred_check_branch
      %59 = sbr.rel (0) target = $region41
    $region40: #{bert_forward.1} parent=1 // pred_region
      _
    $region41: #{bert_forward.1} parent=1 // pred_fallthru
      _
    // Predicated region
    $region42: #{bert_forward.1} parent=1 // pred_check
      _
    $region43: #{bert_forward.1} parent=1 // pred_check_branch
      %61 = sbr.rel (0) target = $region45
    $region44: #{bert_forward.1} parent=1 // pred_region
      _
    $region45: #{bert_forward.1} parent=1 // pred_fallthru
      _
    // Predicated region
    $region46: #{bert_forward.1} parent=1 // pred_check
      _
    $region47: #{bert_forward.1} parent=1 // pred_check_branch
      %63 = sbr.rel (0) target = $region49
    $region48: #{bert_forward.1} parent=1 // pred_region
      _
    $region49: #{bert_forward.1} parent=1 // pred_fallthru
      _
    // Predicated region
    $region50: #{bert_forward.1} parent=1 // pred_check
      _
    $region51: #{bert_forward.1} parent=1 // pred_check_branch
      %65 = sbr.rel (0) target = $region53
    $region52: #{bert_forward.1} parent=1 // pred_region
      _
    $region53: #{bert_forward.1} parent=1 // pred_fallthru
      _
    // Predicated region
    $region54: #{bert_forward.1} parent=1 // pred_check
      _
    $region55: #{bert_forward.1} parent=1 // pred_check_branch
      %67 = sbr.rel (0) target = $region57
    $region56: #{bert_forward.1} parent=1 // pred_region
      _
    $region57: #{bert_forward.1} parent=1 // pred_fallthru
      _
    // Predicated region
    $region58: #{bert_forward.1} parent=1 // pred_check
      _
    $region59: #{bert_forward.1} parent=1 // pred_check_branch
      %69 = sbr.rel (0) target = $region61
    $region60: #{bert_forward.1} parent=1 // pred_region
      _
    $region61: #{bert_forward.1} parent=1 // pred_fallthru
      _
    // Predicated region
    $region62: #{bert_forward.1} parent=1 // pred_check
      _
    $region63: #{bert_forward.1} parent=1 // pred_check_branch
      %71 = sbr.rel (0) target = $region65
    $region64: #{bert_forward.1} parent=1 // pred_region
      _
    $region65: #{bert_forward.1} parent=1 // pred_fallthru
      _
    // Predicated region
    $region66: #{bert_forward.1} parent=1 // pred_check
      _
    $region67: #{bert_forward.1} parent=1 // pred_check_branch
      %73 = sbr.rel (0) target = $region69
    $region68: #{bert_forward.1} parent=1 // pred_region
      _
    $region69: #{bert_forward.1} parent=1 // pred_fallthru
      _
    // Predicated region
    $region70: #{bert_forward.1} parent=1 // pred_check
      _
    $region71: #{bert_forward.1} parent=1 // pred_check_branch
      %75 = sbr.rel (0) target = $region73
    $region72: #{bert_forward.1} parent=1 // pred_region
      _
    $region73: #{bert_forward.1} parent=1 // pred_fallthru
      _
    // Predicated region
    $region74: #{bert_forward.1} parent=1 // pred_check
      _
    $region75: #{bert_forward.1} parent=1 // pred_check_branch
      %77 = sbr.rel (0) target = $region77
    $region76: #{bert_forward.1} parent=1 // pred_region
      _
    $region77: #{bert_forward.1} parent=1 // pred_fallthru
      _
    %v79 = vlaneseq
    %v80 = vshrl.u32 %v79, 7
    %vm81 = vcmp.eq.s32.totalorder %v80, 0
    %s82 = sld [smem:[#allocation3]]
    %v83 = vstv %s82
    %v84 = vsel %vm81, %v83, 0
    %vm85 = vcmp.eq.s32.totalorder %v80, 1
    %s86 = sld [smem:[#allocation3 + $0x1]]
    %v87 = vstv %s86
    %v88 = vsel %vm85, %v87, %v84
    %vm89 = vcmp.eq.s32.totalorder %v80, 2
    %s90 = sld [smem:[#allocation3 + $0x2]]
    %v91 = vstv %s90
    %v92 = vsel %vm89, %v91, %v88
    %vm93 = vcmp.eq.s32.totalorder %v80, 3
    %s94 = sld [smem:[#allocation3 + $0x3]]
    %v95 = vstv %s94
    %v96 = vsel %vm93, %v95, %v92
    %vm97 = vcmp.eq.s32.totalorder %v80, 4
    %s98 = sld [smem:[#allocation3 + $0x4]]
    %v99 = vstv %s98
    %v100 = vsel %vm97, %v99, %v96
    %vm101 = vcmp.eq.s32.totalorder %v80, 5
    %s102 = sld [smem:[#allocation3 + $0x5]]
    %v103 = vstv %s102
    %v104 = vsel %vm101, %v103, %v100
    %vm105 = vcmp.eq.s32.totalorder %v80, 6
    %s106 = sld [smem:[#allocation3 + $0x6]]
    %v107 = vstv %s106
    %v108 = vsel %vm105, %v107, %v104
    %vm109 = vcmp.eq.s32.totalorder %v80, 7
    %s110 = sld [smem:[#allocation3 + $0x7]]
    %v111 = vstv %s110
    %v112 = vsel %vm109, %v111, %v108
    %v113 = vlaneseq
    %v114 = vand.u32 %v113, 127
    %vm115 = vcmp.eq.s32.totalorder %v114, %v112
    %v116 = vsel %vm115, 1, 0
    %v117 = vcvt.s32.f32 %v116
    %v118 = vld [vmem:[%s2] sm:$0xff]
    %v119 = vld [vmem:[%s2 + $0x8] sm:$0xff]
    %v120 = vld [vmem:[%s2 + $0x10] sm:$0xff]
    %v121 = vld [vmem:[%s2 + $0x18] sm:$0xff]
    %v122 = vld [vmem:[%s2 + $0x20] sm:$0xff]
    %v123 = vld [vmem:[%s2 + $0x28] sm:$0xff]
    %v124 = vld [vmem:[%s2 + $0x30] sm:$0xff]
    %v125 = vld [vmem:[%s2 + $0x38] sm:$0xff]
    %v126 = vld [vmem:[%s2 + $0x40] sm:$0xff]
    %v127 = vld [vmem:[%s2 + $0x48] sm:$0xff]
    %v128 = vld [vmem:[%s2 + $0x50] sm:$0xff]
    %v129 = vld [vmem:[%s2 + $0x58] sm:$0xff]
    %v130 = vld [vmem:[%s2 + $0x60] sm:$0xf]
    %v131 = vld [vmem:[%s3] sm:$0xff]
    %vm132 = vcmask 818176
    %v134 = vsel %vm132, %v117, 0
    %vm136 = vcmask 1043456
    %v138 = vsel %vm136, %v130, 0
    %140 = vmatprep.subr.mxu0 0.0
    %141 = vmatpush1.msra.mxu0 %v118
    %142 = vmatprep.subr.mxu0 0.0
    %143 = vmatpush1.msra.mxu0 %v119
    %144 = vmatprep.subr.mxu0 0.0
    %145 = vmatpush1.msra.mxu0 %v120
    %146 = vmatprep.subr.mxu0 0.0
    %147 = vmatpush1.msra.mxu0 %v121
    %148 = vmatprep.subr.mxu0 0.0
    %149 = vmatpush1.msra.mxu0 %v122
    %150 = vmatprep.subr.mxu0 0.0
    %151 = vmatpush1.msra.mxu0 %v123
    %152 = vmatprep.subr.mxu0 0.0
    %153 = vmatpush1.msra.mxu0 %v124
    %154 = vmatprep.subr.mxu0 0.0
    %155 = vmatpush1.msra.mxu0 %v125
    %156 = vmatprep.subr.mxu0 0.0
    %157 = vmatpush1.msra.mxu0 %v126
    %158 = vmatprep.subr.mxu0 0.0
    %159 = vmatpush1.msra.mxu0 %v127
    %160 = vmatprep.subr.mxu0 0.0
    %161 = vmatpush1.msra.mxu0 %v128
    %162 = vmatprep.subr.mxu0 0.0
    %163 = vmatpush1.msra.mxu0 %v129
    %164 = vmatprep.subr.mxu0 0.0
    %165 = vmatpush1.msra.mxu0 %v138
    %166 = vmatprep.subr.mxu0 0.0
    %167 = vmatpush1.msra.mxu0 0.0
    %168 = vmatprep.subr.mxu0 0.0
    %169 = vmatpush1.msra.mxu0 0.0
    %170 = vmatprep.subr.mxu0 0.0
    %171 = vmatpush1.msra.mxu0 0.0
    %172 = vmatprep.subr.mxu0 0.0
    %173 = vmatpush1.msra.mxu0 0.0
    %174 = vmatprep.subr.mxu0 0.0
    %175 = vmatpush1.msra.mxu0 0.0
    %176 = vmatprep.subr.mxu0 0.0
    %177 = vmatpush1.msra.mxu0 0.0
    %178 = vmatprep.subr.mxu0 0.0
    %179 = vmatpush1.msra.mxu0 0.0
    %180 = vmatprep.subr.mxu0 0.0
    %181 = vmatpush1.msra.mxu0 0.0
    %182 = vmatprep.subr.mxu0 0.0
    %183 = vmatpush1.msra.mxu0 0.0
    %184 = vmatprep.subr.mxu0 0.0
    %185 = vmatpush1.msra.mxu0 0.0
    %186 = vmatprep.subr.mxu0 0.0
    %187 = vmatpush1.msra.mxu0 0.0
    %188 = vmatprep.subr.mxu0 0.0
    %189 = vmatpush1.msra.mxu0 0.0
    %190 = vmatprep.subr.mxu0 0.0
    %191 = vmatpush1.msra.mxu0 0.0
    %192 = vmatprep.subr.mxu0 0.0
    %193 = vmatpush1.msra.mxu0 0.0
    %194 = vmatprep.subr.mxu0 0.0
    %195 = vmatpush1.msra.mxu0 0.0
    %196 = vmatprep.subr.mxu0 0.0
    %197 = vmatpush1.msra.mxu0 0.0
    %198 = vmatprep.subr.mxu0 0.0
    %199 = vmatpush1.msra.mxu0 0.0
    %200 = vmatprep.subr.mxu0 0.0
    %201 = vmatpush1.msra.mxu0 0.0
    %202 = vmatprep.subr.mxu0 0.0
    %203 = vmatpush1.msra.mxu0 0.0
    %204 = vmatprep.mubr.f32.mxu0 0.0
    %205 = vmatmul.mubr.f32.gmra.mrb[0].mxu0 %v134
    %v206 = vpop.f32.mrb[0].mxu0
    %v207 = vadd.f32 %v131, %v206
    %v208 = vpop.f32.mrb[0].mxu0
    %209 = vdwg.mxu0
    %v210 = vld [vmem:[%s4] sm:$0x1]
    %v211 = vlaneseq
    %v212 = vshrl.u32 %v211, 7
    %v213 = vsub.s32 0, %v212
    %v214 = vrot.slane %v210, %v213
    %v215 = vadd.f32 %v207, %v214
    %v216 = vld [vmem:[%s5] sm:$0x1]
    %v217 = vld [vmem:[%s6] sm:$0x1]
    %vm218 = vcmask 261120
    %v219 = vsel %vm218, %v215, 0.0
    %220 = vadd.xlane.f32.xlu0 %v219
    %v221 = vpop.xlane.xlu0 %220
    %v222 = vrcp.pop 32.0
    %v223 = vmul.f32 %v221, %v222
    %v224 = vsub.f32 %v215, %v223
    %v225 = vmul.f32 %v224, %v224
    %v226 = vsel %vm218, %v225, 0.0
    %227 = vadd.xlane.f32.xlu0 %v226
    %v228 = vpop.xlane.xlu0 %227
    %v229 = vmul.f32 %v228, %v222
    %v230 = vadd.f32 %v229, 1e-12
    %v231 = vrsqrt.pop %v230
    %v232 = vmul.f32 %v224, %v231
    %v234 = vlaneseq
    %v235 = vshrl.u32 %v234, 7
    %v236 = vsub.s32 0, %v235
    %v237 = vrot.slane %v216, %v236
    %v239 = vmul.f32 %v232, %v237
    %v241 = vlaneseq
    %v242 = vshrl.u32 %v241, 7
    %v243 = vsub.s32 0, %v242
    %v244 = vrot.slane %v217, %v243
    %v246 = vadd.f32 %v239, %v244
    %s247 = sld [smem:[#allocation4]]
    %p248 = scmp.eq.s32.totalorder %s247, 0
    %s249 = scalar_select %p248, -10000.0, 0.0
    %vm250 = vcmp.eq.s32.totalorder %v114, 0
    %v251 = vstv %s249
    %v252 = vsel %vm250, %v251, 0.0
    %s253 = sld [smem:[#allocation4 + $0x1]]
    %p254 = scmp.eq.s32.totalorder %s253, 0
    %s255 = scalar_select %p254, -10000.0, 0.0
    %vm256 = vcmp.eq.s32.totalorder %v114, 1
    %v257 = vstv %s255
    %v258 = vsel %vm256, %v257, %v252
    %s259 = sld [smem:[#allocation4 + $0x2]]
    %p260 = scmp.eq.s32.totalorder %s259, 0
    %s261 = scalar_select %p260, -10000.0, 0.0
    %vm262 = vcmp.eq.s32.totalorder %v114, 2
    %v263 = vstv %s261
    %v264 = vsel %vm262, %v263, %v258
    %s265 = sld [smem:[#allocation4 + $0x3]]
    %p266 = scmp.eq.s32.totalorder %s265, 0
    %s267 = scalar_select %p266, -10000.0, 0.0
    %vm268 = vcmp.eq.s32.totalorder %v114, 3
    %v269 = vstv %s267
    %v270 = vsel %vm268, %v269, %v264
    %s271 = sld [smem:[#allocation4 + $0x4]]
    %p272 = scmp.eq.s32.totalorder %s271, 0
    %s273 = scalar_select %p272, -10000.0, 0.0
    %vm274 = vcmp.eq.s32.totalorder %v114, 4
    %v275 = vstv %s273
    %v276 = vsel %vm274, %v275, %v270
    %s277 = sld [smem:[#allocation4 + $0x5]]
    %p278 = scmp.eq.s32.totalorder %s277, 0
    %s279 = scalar_select %p278, -10000.0, 0.0
    %vm280 = vcmp.eq.s32.totalorder %v114, 5
    %v281 = vstv %s279
    %v282 = vsel %vm280, %v281, %v276
    %s283 = sld [smem:[#allocation4 + $0x6]]
    %p284 = scmp.eq.s32.totalorder %s283, 0
    %s285 = scalar_select %p284, -10000.0, 0.0
    %vm286 = vcmp.eq.s32.totalorder %v114, 6
    %v287 = vstv %s285
    %v288 = vsel %vm286, %v287, %v282
    %s289 = sld [smem:[#allocation4 + $0x7]]
    %p290 = scmp.eq.s32.totalorder %s289, 0
    %s291 = scalar_select %p290, -10000.0, 0.0
    %vm292 = vcmp.eq.s32.totalorder %v114, 7
    %v293 = vstv %s291
    %v294 = vsel %vm292, %v293, %v288
    %v295 = vpack.c.bf16 %v246, %v246
    %v296 = vld [vmem:[%s7] sm:$0xf]
    %v297 = vld [vmem:[%s7 + $0x4] sm:$0xf]
    %v298 = vld [vmem:[%s7 + $0x8] sm:$0xf]
    %v299 = vld [vmem:[%s7 + $0xc] sm:$0xf]
    %v300 = vld [vmem:[%s8] sm:$0x1]
    %v302 = vlaneseq
    %v303 = vshrl.u32 %v302, 7
    %v304 = vsub.s32 0, %v303
    %v305 = vrot.slane %v300, %v304
    %v311 = vunpack.c.l.b16 %v296
    %v312 = vunpack.c.l.b16 %v297
    %v313 = vunpack.c.l.b16 %v298
    %v314 = vunpack.c.l.b16 %v299
    %v315 = vpack.c.b16 %v312, %v311
    %v316 = vpack.c.b16 %v314, %v313
    %v320 = vsel %vm218, %v295, 0
    %322 = vmatprep.subr.bf16.mxu0 0
    %323 = vmatpush1.bf16.msra.mxu0 %v315
    %324 = vmatprep.subr.bf16.mxu0 0
    %325 = vmatpush1.bf16.msra.mxu0 %v316
    %326 = vmatprep.subr.bf16.mxu0 0
    %327 = vmatpush1.bf16.msra.mxu0 0
    %328 = vmatprep.subr.bf16.mxu0 0
    %329 = vmatpush1.bf16.msra.mxu0 0
    %330 = vmatprep.subr.bf16.mxu0 0
    %331 = vmatpush1.bf16.msra.mxu0 0
    %332 = vmatprep.subr.bf16.mxu0 0
    %333 = vmatpush1.bf16.msra.mxu0 0
    %334 = vmatprep.subr.bf16.mxu0 0
    %335 = vmatpush1.bf16.msra.mxu0 0
    %336 = vmatprep.subr.bf16.mxu0 0
    %337 = vmatpush1.bf16.msra.mxu0 0
    %338 = vmatprep.subr.bf16.mxu0 0
    %339 = vmatpush1.bf16.msra.mxu0 0
    %340 = vmatprep.subr.bf16.mxu0 0
    %341 = vmatpush1.bf16.msra.mxu0 0
    %342 = vmatprep.subr.bf16.mxu0 0
    %343 = vmatpush1.bf16.msra.mxu0 0
    %344 = vmatprep.subr.bf16.mxu0 0
    %345 = vmatpush1.bf16.msra.mxu0 0
    %346 = vmatprep.subr.bf16.mxu0 0
    %347 = vmatpush1.bf16.msra.mxu0 0
    %348 = vmatprep.subr.bf16.mxu0 0
    %349 = vmatpush1.bf16.msra.mxu0 0
    %350 = vmatprep.subr.bf16.mxu0 0
    %351 = vmatpush1.bf16.msra.mxu0 0
    %352 = vmatprep.subr.bf16.mxu0 0
    %353 = vmatpush1.bf16.msra.mxu0 0
    %354 = vmatprep.mubr.bf16.mxu0 0
    %355 = vmatmul.mubr.bf16.gmra.mrb[0].mxu0 %v320
    %v356 = vpop.f32.mrb[0].mxu0
    %v357 = vadd.f32 %v305, %v356
    %v358 = vpop.f32.mrb[0].mxu0
    %v359 = vpop.f32.mrb[0].mxu0
    %v360 = vpop.f32.mrb[0].mxu0
    %361 = vdwg.mxu0
    %363 = vrot.lane.b32.xlu0 %v357, 120
    %v364 = vpop.permute.xlu0 %363
    %366 = vrot.lane.b32.xlu0 %v357, 112
    %v367 = vpop.permute.xlu0 %366
    %369 = vrot.lane.b32.xlu0 %v357, 104
    %v370 = vpop.permute.xlu0 %369
    %v372 = vpack.c.bf16 %v357, %v357
    %v373 = vpack.c.bf16 %v364, %v364
    %v374 = vpack.c.bf16 %v367, %v367
    %v375 = vpack.c.bf16 %v370, %v370
    %377 = vrot.lane.b32.xlu0 %v372, 96
    %v378 = vpop.permute.xlu0 %377
    %vm379 = vcmask 64512
    %v381 = vsel %vm379, %v372, 0
    %v384 = vsel %vm379, %v378, 0
    %386 = vmatprep.subr.bf16.mxu0 0
    %387 = vmatpush1.bf16.xpose.msra.mxu0 %v384
    %388 = vmatprep.subr.bf16.mxu0 0
    %389 = vmatpush1.bf16.xpose.msra.mxu0 0
    %390 = vmatprep.subr.bf16.mxu0 0
    %391 = vmatpush1.bf16.xpose.msra.mxu0 0
    %392 = vmatprep.subr.bf16.mxu0 0
    %393 = vmatpush1.bf16.xpose.msra.mxu0 0
    %394 = vmatprep.subr.bf16.mxu0 0
    %395 = vmatpush1.bf16.xpose.msra.mxu0 0
    %396 = vmatprep.subr.bf16.mxu0 0
    %397 = vmatpush1.bf16.xpose.msra.mxu0 0
    %398 = vmatprep.subr.bf16.mxu0 0
    %399 = vmatpush1.bf16.xpose.msra.mxu0 0
    %400 = vmatprep.subr.bf16.mxu0 0
    %401 = vmatpush1.bf16.xpose.msra.mxu0 0
    %402 = vmatprep.subr.bf16.mxu0 0
    %403 = vmatpush1.bf16.xpose.msra.mxu0 0
    %404 = vmatprep.subr.bf16.mxu0 0
    %405 = vmatpush1.bf16.xpose.msra.mxu0 0
    %406 = vmatprep.subr.bf16.mxu0 0
    %407 = vmatpush1.bf16.xpose.msra.mxu0 0
    %408 = vmatprep.subr.bf16.mxu0 0
    %409 = vmatpush1.bf16.xpose.msra.mxu0 0
    %410 = vmatprep.subr.bf16.mxu0 0
    %411 = vmatpush1.bf16.xpose.msra.mxu0 0
    %412 = vmatprep.subr.bf16.mxu0 0
    %413 = vmatpush1.bf16.xpose.msra.mxu0 0
    %414 = vmatprep.subr.bf16.mxu0 0
    %415 = vmatpush1.bf16.xpose.msra.mxu0 0
    %416 = vmatprep.subr.bf16.mxu0 0
    %417 = vmatpush1.bf16.xpose.msra.mxu0 0
    %418 = vmatprep.mubr.bf16.mxu0 0
    %419 = vmatmul.mubr.bf16.gmra.mrb[0].mxu0 %v381
    %v420 = vpop.f32.mrb[0].mxu0
    %v421 = vadd.f32 0.0, %v420
    %v422 = vpop.f32.mrb[0].mxu0
    %v423 = vpop.f32.mrb[0].mxu0
    %v424 = vpop.f32.mrb[0].mxu0
    %425 = vdwg.mxu0
    %427 = vrot.lane.b32.xlu0 %v373, 96
    %v428 = vpop.permute.xlu0 %427
    %v430 = vsel %vm379, %v373, 0
    %v433 = vsel %vm379, %v428, 0
    %435 = vmatprep.subr.bf16.mxu0 0
    %436 = vmatpush1.bf16.xpose.msra.mxu0 %v433
    %437 = vmatprep.subr.bf16.mxu0 0
    %438 = vmatpush1.bf16.xpose.msra.mxu0 0
    %439 = vmatprep.subr.bf16.mxu0 0
    %440 = vmatpush1.bf16.xpose.msra.mxu0 0
    %441 = vmatprep.subr.bf16.mxu0 0
    %442 = vmatpush1.bf16.xpose.msra.mxu0 0
    %443 = vmatprep.subr.bf16.mxu0 0
    %444 = vmatpush1.bf16.xpose.msra.mxu0 0
    %445 = vmatprep.subr.bf16.mxu0 0
    %446 = vmatpush1.bf16.xpose.msra.mxu0 0
    %447 = vmatprep.subr.bf16.mxu0 0
    %448 = vmatpush1.bf16.xpose.msra.mxu0 0
    %449 = vmatprep.subr.bf16.mxu0 0
    %450 = vmatpush1.bf16.xpose.msra.mxu0 0
    %451 = vmatprep.subr.bf16.mxu0 0
    %452 = vmatpush1.bf16.xpose.msra.mxu0 0
    %453 = vmatprep.subr.bf16.mxu0 0
    %454 = vmatpush1.bf16.xpose.msra.mxu0 0
    %455 = vmatprep.subr.bf16.mxu0 0
    %456 = vmatpush1.bf16.xpose.msra.mxu0 0
    %457 = vmatprep.subr.bf16.mxu0 0
    %458 = vmatpush1.bf16.xpose.msra.mxu0 0
    %459 = vmatprep.subr.bf16.mxu0 0
    %460 = vmatpush1.bf16.xpose.msra.mxu0 0
    %461 = vmatprep.subr.bf16.mxu0 0
    %462 = vmatpush1.bf16.xpose.msra.mxu0 0
    %463 = vmatprep.subr.bf16.mxu0 0
    %464 = vmatpush1.bf16.xpose.msra.mxu0 0
    %465 = vmatprep.subr.bf16.mxu0 0
    %466 = vmatpush1.bf16.xpose.msra.mxu0 0
    %467 = vmatprep.mubr.bf16.mxu0 0
    %468 = vmatmul.mubr.bf16.gmra.mrb[0].mxu0 %v430
    %v469 = vpop.f32.mrb[0].mxu0
    %v470 = vadd.f32 0.0, %v469
    %v471 = vpop.f32.mrb[0].mxu0
    %v472 = vpop.f32.mrb[0].mxu0
    %v473 = vpop.f32.mrb[0].mxu0
    %474 = vdwg.mxu0
    %476 = vrot.lane.b32.xlu0 %v374, 96
    %v477 = vpop.permute.xlu0 %476
    %v479 = vsel %vm379, %v374, 0
    %v482 = vsel %vm379, %v477, 0
    %484 = vmatprep.subr.bf16.mxu0 0
    %485 = vmatpush1.bf16.xpose.msra.mxu0 %v482
    %486 = vmatprep.subr.bf16.mxu0 0
    %487 = vmatpush1.bf16.xpose.msra.mxu0 0
    %488 = vmatprep.subr.bf16.mxu0 0
    %489 = vmatpush1.bf16.xpose.msra.mxu0 0
    %490 = vmatprep.subr.bf16.mxu0 0
    %491 = vmatpush1.bf16.xpose.msra.mxu0 0
    %492 = vmatprep.subr.bf16.mxu0 0
    %493 = vmatpush1.bf16.xpose.msra.mxu0 0
    %494 = vmatprep.subr.bf16.mxu0 0
    %495 = vmatpush1.bf16.xpose.msra.mxu0 0
    %496 = vmatprep.subr.bf16.mxu0 0
    %497 = vmatpush1.bf16.xpose.msra.mxu0 0
    %498 = vmatprep.subr.bf16.mxu0 0
    %499 = vmatpush1.bf16.xpose.msra.mxu0 0
    %500 = vmatprep.subr.bf16.mxu0 0
    %501 = vmatpush1.bf16.xpose.msra.mxu0 0
    %502 = vmatprep.subr.bf16.mxu0 0
    %503 = vmatpush1.bf16.xpose.msra.mxu0 0
    %504 = vmatprep.subr.bf16.mxu0 0
    %505 = vmatpush1.bf16.xpose.msra.mxu0 0
    %506 = vmatprep.subr.bf16.mxu0 0
    %507 = vmatpush1.bf16.xpose.msra.mxu0 0
    %508 = vmatprep.subr.bf16.mxu0 0
    %509 = vmatpush1.bf16.xpose.msra.mxu0 0
    %510 = vmatprep.subr.bf16.mxu0 0
    %511 = vmatpush1.bf16.xpose.msra.mxu0 0
    %512 = vmatprep.subr.bf16.mxu0 0
    %513 = vmatpush1.bf16.xpose.msra.mxu0 0
    %514 = vmatprep.subr.bf16.mxu0 0
    %515 = vmatpush1.bf16.xpose.msra.mxu0 0
    %516 = vmatprep.mubr.bf16.mxu0 0
    %517 = vmatmul.mubr.bf16.gmra.mrb[0].mxu0 %v479
    %v518 = vpop.f32.mrb[0].mxu0
    %v519 = vadd.f32 0.0, %v518
    %v520 = vpop.f32.mrb[0].mxu0
    %v521 = vpop.f32.mrb[0].mxu0
    %v522 = vpop.f32.mrb[0].mxu0
    %523 = vdwg.mxu0
    %525 = vrot.lane.b32.xlu0 %v375, 96
    %v526 = vpop.permute.xlu0 %525
    %v528 = vsel %vm379, %v375, 0
    %v531 = vsel %vm379, %v526, 0
    %533 = vmatprep.subr.bf16.mxu0 0
    %534 = vmatpush1.bf16.xpose.msra.mxu0 %v531
    %535 = vmatprep.subr.bf16.mxu0 0
    %536 = vmatpush1.bf16.xpose.msra.mxu0 0
    %537 = vmatprep.subr.bf16.mxu0 0
    %538 = vmatpush1.bf16.xpose.msra.mxu0 0
    %539 = vmatprep.subr.bf16.mxu0 0
    %540 = vmatpush1.bf16.xpose.msra.mxu0 0
    %541 = vmatprep.subr.bf16.mxu0 0
    %542 = vmatpush1.bf16.xpose.msra.mxu0 0
    %543 = vmatprep.subr.bf16.mxu0 0
    %544 = vmatpush1.bf16.xpose.msra.mxu0 0
    %545 = vmatprep.subr.bf16.mxu0 0
    %546 = vmatpush1.bf16.xpose.msra.mxu0 0
    %547 = vmatprep.subr.bf16.mxu0 0
    %548 = vmatpush1.bf16.xpose.msra.mxu0 0
    %549 = vmatprep.subr.bf16.mxu0 0
    %550 = vmatpush1.bf16.xpose.msra.mxu0 0
    %551 = vmatprep.subr.bf16.mxu0 0
    %552 = vmatpush1.bf16.xpose.msra.mxu0 0
    %553 = vmatprep.subr.bf16.mxu0 0
    %554 = vmatpush1.bf16.xpose.msra.mxu0 0
    %555 = vmatprep.subr.bf16.mxu0 0
    %556 = vmatpush1.bf16.xpose.msra.mxu0 0
    %557 = vmatprep.subr.bf16.mxu0 0
    %558 = vmatpush1.bf16.xpose.msra.mxu0 0
    %559 = vmatprep.subr.bf16.mxu0 0
    %560 = vmatpush1.bf16.xpose.msra.mxu0 0
    %561 = vmatprep.subr.bf16.mxu0 0
    %562 = vmatpush1.bf16.xpose.msra.mxu0 0
    %563 = vmatprep.subr.bf16.mxu0 0
    %564 = vmatpush1.bf16.xpose.msra.mxu0 0
    %565 = vmatprep.mubr.bf16.mxu0 0
    %566 = vmatmul.mubr.bf16.gmra.mrb[0].mxu0 %v528
    %v567 = vpop.f32.mrb[0].mxu0
    %v568 = vadd.f32 0.0, %v567
    %v569 = vpop.f32.mrb[0].mxu0
    %v570 = vpop.f32.mrb[0].mxu0
    %v571 = vpop.f32.mrb[0].mxu0
    %572 = vdwg.mxu0
    %v573 = vmul.f32 %v421, 0.35355338
    %v574 = vmul.f32 %v470, 0.35355338
    %v575 = vmul.f32 %v519, 0.35355338
    %v576 = vmul.f32 %v568, 0.35355338
    %v577 = vadd.f32 %v573, %v294
    %v578 = vadd.f32 %v574, %v294
    %v579 = vadd.f32 %v575, %v294
    %v580 = vadd.f32 %v576, %v294
    %v581 = vsel %vm379, %v577, -inf
    %582 = vmax.xlane.f32.xlu0 %v581
    %v583 = vpop.xlane.xlu0 %582
    %v584 = vsel %vm379, %v578, -inf
    %585 = vmax.xlane.f32.xlu0 %v584
    %v586 = vpop.xlane.xlu0 %585
    %v587 = vsel %vm379, %v579, -inf
    %588 = vmax.xlane.f32.xlu0 %v587
    %v589 = vpop.xlane.xlu0 %588
    %v590 = vsel %vm379, %v580, -inf
    %591 = vmax.xlane.f32.xlu0 %v590
    %v592 = vpop.xlane.xlu0 %591
    %v593 = vsub.f32 %v577, %v583
    %v594 = vsub.f32 %v578, %v586
    %v595 = vsub.f32 %v579, %v589
    %v596 = vsub.f32 %v580, %v592
    %v597 = vmul.f32 %v593, 1.442695
    %v598 = vpow.pop %v597
    %v599 = vmul.f32 %v594, 1.442695
    %v600 = vpow.pop %v599
    %v601 = vmul.f32 %v595, 1.442695
    %v602 = vpow.pop %v601
    %v603 = vmul.f32 %v596, 1.442695
    %v604 = vpow.pop %v603
    %v605 = vsel %vm379, %v598, 0.0
    %606 = vadd.xlane.f32.xlu0 %v605
    %v607 = vpop.xlane.xlu0 %606
    %v608 = vsel %vm379, %v600, 0.0
    %609 = vadd.xlane.f32.xlu0 %v608
    %v610 = vpop.xlane.xlu0 %609
    %v611 = vsel %vm379, %v602, 0.0
    %612 = vadd.xlane.f32.xlu0 %v611
    %v613 = vpop.xlane.xlu0 %612
    %v614 = vsel %vm379, %v604, 0.0
    %615 = vadd.xlane.f32.xlu0 %v614
    %v616 = vpop.xlane.xlu0 %615
    %v617 = vrcp.pop %v607
    %v618 = vrcp.pop %v610
    %v619 = vrcp.pop %v613
    %v620 = vrcp.pop %v616
    %v621 = vmul.f32 %v598, %v617
    %v622 = vmul.f32 %v600, %v618
    %v623 = vmul.f32 %v602, %v619
    %v624 = vmul.f32 %v604, %v620
    %v625 = vpack.c.bf16 %v621, %v621
    %v626 = vpack.c.bf16 %v622, %v622
    %v627 = vpack.c.bf16 %v623, %v623
    %v628 = vpack.c.bf16 %v624, %v624
    %629 = vrot.lane.b32.xlu0 %v372, 64
    %v630 = vpop.permute.xlu0 %629
    %v632 = vsel %vm379, %v625, 0
    %v635 = vsel %vm136, %v630, 0
    %637 = vmatprep.subr.bf16.mxu0 0
    %638 = vmatpush1.bf16.msra.mxu0 %v635
    %639 = vmatprep.subr.bf16.mxu0 0
    %640 = vmatpush1.bf16.msra.mxu0 0
    %641 = vmatprep.subr.bf16.mxu0 0
    %642 = vmatpush1.bf16.msra.mxu0 0
    %643 = vmatprep.subr.bf16.mxu0 0
    %644 = vmatpush1.bf16.msra.mxu0 0
    %645 = vmatprep.subr.bf16.mxu0 0
    %646 = vmatpush1.bf16.msra.mxu0 0
    %647 = vmatprep.subr.bf16.mxu0 0
    %648 = vmatpush1.bf16.msra.mxu0 0
    %649 = vmatprep.subr.bf16.mxu0 0
    %650 = vmatpush1.bf16.msra.mxu0 0
    %651 = vmatprep.subr.bf16.mxu0 0
    %652 = vmatpush1.bf16.msra.mxu0 0
    %653 = vmatprep.subr.bf16.mxu0 0
    %654 = vmatpush1.bf16.msra.mxu0 0
    %655 = vmatprep.subr.bf16.mxu0 0
    %656 = vmatpush1.bf16.msra.mxu0 0
    %657 = vmatprep.subr.bf16.mxu0 0
    %658 = vmatpush1.bf16.msra.mxu0 0
    %659 = vmatprep.subr.bf16.mxu0 0
    %660 = vmatpush1.bf16.msra.mxu0 0
    %661 = vmatprep.subr.bf16.mxu0 0
    %662 = vmatpush1.bf16.msra.mxu0 0
    %663 = vmatprep.subr.bf16.mxu0 0
    %664 = vmatpush1.bf16.msra.mxu0 0
    %665 = vmatprep.subr.bf16.mxu0 0
    %666 = vmatpush1.bf16.msra.mxu0 0
    %667 = vmatprep.subr.bf16.mxu0 0
    %668 = vmatpush1.bf16.msra.mxu0 0
    %669 = vmatprep.mubr.bf16.mxu0 0
    %670 = vmatmul.mubr.bf16.gmra.mrb[0].mxu0 %v632
    %v671 = vpop.f32.mrb[0].mxu0
    %v672 = vadd.f32 0.0, %v671
    %v673 = vpop.f32.mrb[0].mxu0
    %v674 = vpop.f32.mrb[0].mxu0
    %v675 = vpop.f32.mrb[0].mxu0
    %676 = vdwg.mxu0
    %677 = vrot.lane.b32.xlu0 %v373, 64
    %v678 = vpop.permute.xlu0 %677
    %v680 = vsel %vm379, %v626, 0
    %v683 = vsel %vm136, %v678, 0
    %685 = vmatprep.subr.bf16.mxu0 0
    %686 = vmatpush1.bf16.msra.mxu0 %v683
    %687 = vmatprep.subr.bf16.mxu0 0
    %688 = vmatpush1.bf16.msra.mxu0 0
    %689 = vmatprep.subr.bf16.mxu0 0
    %690 = vmatpush1.bf16.msra.mxu0 0
    %691 = vmatprep.subr.bf16.mxu0 0
    %692 = vmatpush1.bf16.msra.mxu0 0
    %693 = vmatprep.subr.bf16.mxu0 0
    %694 = vmatpush1.bf16.msra.mxu0 0
    %695 = vmatprep.subr.bf16.mxu0 0
    %696 = vmatpush1.bf16.msra.mxu0 0
    %697 = vmatprep.subr.bf16.mxu0 0
    %698 = vmatpush1.bf16.msra.mxu0 0
    %699 = vmatprep.subr.bf16.mxu0 0
    %700 = vmatpush1.bf16.msra.mxu0 0
    %701 = vmatprep.subr.bf16.mxu0 0
    %702 = vmatpush1.bf16.msra.mxu0 0
    %703 = vmatprep.subr.bf16.mxu0 0
    %704 = vmatpush1.bf16.msra.mxu0 0
    %705 = vmatprep.subr.bf16.mxu0 0
    %706 = vmatpush1.bf16.msra.mxu0 0
    %707 = vmatprep.subr.bf16.mxu0 0
    %708 = vmatpush1.bf16.msra.mxu0 0
    %709 = vmatprep.subr.bf16.mxu0 0
    %710 = vmatpush1.bf16.msra.mxu0 0
    %711 = vmatprep.subr.bf16.mxu0 0
    %712 = vmatpush1.bf16.msra.mxu0 0
    %713 = vmatprep.subr.bf16.mxu0 0
    %714 = vmatpush1.bf16.msra.mxu0 0
    %715 = vmatprep.subr.bf16.mxu0 0
    %716 = vmatpush1.bf16.msra.mxu0 0
    %717 = vmatprep.mubr.bf16.mxu0 0
    %718 = vmatmul.mubr.bf16.gmra.mrb[0].mxu0 %v680
    %v719 = vpop.f32.mrb[0].mxu0
    %v720 = vadd.f32 0.0, %v719
    %v721 = vpop.f32.mrb[0].mxu0
    %v722 = vpop.f32.mrb[0].mxu0
    %v723 = vpop.f32.mrb[0].mxu0
    %724 = vdwg.mxu0
    %725 = vrot.lane.b32.xlu0 %v374, 64
    %v726 = vpop.permute.xlu0 %725
    %v728 = vsel %vm379, %v627, 0
    %v731 = vsel %vm136, %v726, 0
    %733 = vmatprep.subr.bf16.mxu0 0
    %734 = vmatpush1.bf16.msra.mxu0 %v731
    %735 = vmatprep.subr.bf16.mxu0 0
    %736 = vmatpush1.bf16.msra.mxu0 0
    %737 = vmatprep.subr.bf16.mxu0 0
    %738 = vmatpush1.bf16.msra.mxu0 0
    %739 = vmatprep.subr.bf16.mxu0 0
    %740 = vmatpush1.bf16.msra.mxu0 0
    %741 = vmatprep.subr.bf16.mxu0 0
    %742 = vmatpush1.bf16.msra.mxu0 0
    %743 = vmatprep.subr.bf16.mxu0 0
    %744 = vmatpush1.bf16.msra.mxu0 0
    %745 = vmatprep.subr.bf16.mxu0 0
    %746 = vmatpush1.bf16.msra.mxu0 0
    %747 = vmatprep.subr.bf16.mxu0 0
    %748 = vmatpush1.bf16.msra.mxu0 0
    %749 = vmatprep.subr.bf16.mxu0 0
    %750 = vmatpush1.bf16.msra.mxu0 0
    %751 = vmatprep.subr.bf16.mxu0 0
    %752 = vmatpush1.bf16.msra.mxu0 0
    %753 = vmatprep.subr.bf16.mxu0 0
    %754 = vmatpush1.bf16.msra.mxu0 0
    %755 = vmatprep.subr.bf16.mxu0 0
    %756 = vmatpush1.bf16.msra.mxu0 0
    %757 = vmatprep.subr.bf16.mxu0 0
    %758 = vmatpush1.bf16.msra.mxu0 0
    %759 = vmatprep.subr.bf16.mxu0 0
    %760 = vmatpush1.bf16.msra.mxu0 0
    %761 = vmatprep.subr.bf16.mxu0 0
    %762 = vmatpush1.bf16.msra.mxu0 0
    %763 = vmatprep.subr.bf16.mxu0 0
    %764 = vmatpush1.bf16.msra.mxu0 0
    %765 = vmatprep.mubr.bf16.mxu0 0
    %766 = vmatmul.mubr.bf16.gmra.mrb[0].mxu0 %v728
    %v767 = vpop.f32.mrb[0].mxu0
    %v768 = vadd.f32 0.0, %v767
    %v769 = vpop.f32.mrb[0].mxu0
    %v770 = vpop.f32.mrb[0].mxu0
    %v771 = vpop.f32.mrb[0].mxu0
    %772 = vdwg.mxu0
    %773 = vrot.lane.b32.xlu0 %v375, 64
    %v774 = vpop.permute.xlu0 %773
    %v776 = vsel %vm379, %v628, 0
    %v779 = vsel %vm136, %v774, 0
    %781 = vmatprep.subr.bf16.mxu0 0
    %782 = vmatpush1.bf16.msra.mxu0 %v779
    %783 = vmatprep.subr.bf16.mxu0 0
    %784 = vmatpush1.bf16.msra.mxu0 0
    %785 = vmatprep.subr.bf16.mxu0 0
    %786 = vmatpush1.bf16.msra.mxu0 0
    %787 = vmatprep.subr.bf16.mxu0 0
    %788 = vmatpush1.bf16.msra.mxu0 0
    %789 = vmatprep.subr.bf16.mxu0 0
    %790 = vmatpush1.bf16.msra.mxu0 0
    %791 = vmatprep.subr.bf16.mxu0 0
    %792 = vmatpush1.bf16.msra.mxu0 0
    %793 = vmatprep.subr.bf16.mxu0 0
    %794 = vmatpush1.bf16.msra.mxu0 0
    %795 = vmatprep.subr.bf16.mxu0 0
    %796 = vmatpush1.bf16.msra.mxu0 0
    %797 = vmatprep.subr.bf16.mxu0 0
    %798 = vmatpush1.bf16.msra.mxu0 0
    %799 = vmatprep.subr.bf16.mxu0 0
    %800 = vmatpush1.bf16.msra.mxu0 0
    %801 = vmatprep.subr.bf16.mxu0 0
    %802 = vmatpush1.bf16.msra.mxu0 0
    %803 = vmatprep.subr.bf16.mxu0 0
    %804 = vmatpush1.bf16.msra.mxu0 0
    %805 = vmatprep.subr.bf16.mxu0 0
    %806 = vmatpush1.bf16.msra.mxu0 0
    %807 = vmatprep.subr.bf16.mxu0 0
    %808 = vmatpush1.bf16.msra.mxu0 0
    %809 = vmatprep.subr.bf16.mxu0 0
    %810 = vmatpush1.bf16.msra.mxu0 0
    %811 = vmatprep.subr.bf16.mxu0 0
    %812 = vmatpush1.bf16.msra.mxu0 0
    %813 = vmatprep.mubr.bf16.mxu0 0
    %814 = vmatmul.mubr.bf16.gmra.mrb[0].mxu0 %v776
    %v815 = vpop.f32.mrb[0].mxu0
    %v816 = vadd.f32 0.0, %v815
    %v817 = vpop.f32.mrb[0].mxu0
    %v818 = vpop.f32.mrb[0].mxu0
    %v819 = vpop.f32.mrb[0].mxu0
    %820 = vdwg.mxu0
    %822 = vrot.lane.b32.xlu0 %v720, 8
    %v823 = vpop.permute.xlu0 %822
    %826 = vrot.lane.b32.xlu0 %v768, 16
    %v827 = vpop.permute.xlu0 %826
    %830 = vrot.lane.b32.xlu0 %v816, 24
    %v831 = vpop.permute.xlu0 %830
    %v833 = vsel %vm379, %v672, %v823
    %vm834 = vcmask 130048
    %v835 = vsel %vm834, %v833, %v827
    %vm836 = vcmask 195584
    %v837 = vsel %vm836, %v835, %v831
    %v838 = vpack.c.bf16 %v837, %v837
    %v839 = vld [vmem:[%s9] sm:$0xf]
    %v840 = vld [vmem:[%s9 + $0x4] sm:$0xf]
    %v841 = vld [vmem:[%s9 + $0x8] sm:$0xf]
    %v842 = vld [vmem:[%s9 + $0xc] sm:$0xf]
    %v843 = vld [vmem:[%s10] sm:$0x1]
    %v845 = vlaneseq
    %v846 = vshrl.u32 %v845, 7
    %v847 = vsub.s32 0, %v846
    %v848 = vrot.slane %v843, %v847
    %v854 = vunpack.c.l.b16 %v839
    %v855 = vunpack.c.l.b16 %v840
    %v856 = vunpack.c.l.b16 %v841
    %v857 = vunpack.c.l.b16 %v842
    %v858 = vpack.c.b16 %v855, %v854
    %v859 = vpack.c.b16 %v857, %v856
    %v863 = vsel %vm218, %v838, 0
    %865 = vmatprep.subr.bf16.mxu0 0
    %866 = vmatpush1.bf16.msra.mxu0 %v858
    %867 = vmatprep.subr.bf16.mxu0 0
    %868 = vmatpush1.bf16.msra.mxu0 %v859
    %869 = vmatprep.subr.bf16.mxu0 0
    %870 = vmatpush1.bf16.msra.mxu0 0
    %871 = vmatprep.subr.bf16.mxu0 0
    %872 = vmatpush1.bf16.msra.mxu0 0
    %873 = vmatprep.subr.bf16.mxu0 0
    %874 = vmatpush1.bf16.msra.mxu0 0
    %875 = vmatprep.subr.bf16.mxu0 0
    %876 = vmatpush1.bf16.msra.mxu0 0
    %877 = vmatprep.subr.bf16.mxu0 0
    %878 = vmatpush1.bf16.msra.mxu0 0
    %879 = vmatprep.subr.bf16.mxu0 0
    %880 = vmatpush1.bf16.msra.mxu0 0
    %881 = vmatprep.subr.bf16.mxu0 0
    %882 = vmatpush1.bf16.msra.mxu0 0
    %883 = vmatprep.subr.bf16.mxu0 0
    %884 = vmatpush1.bf16.msra.mxu0 0
    %885 = vmatprep.subr.bf16.mxu0 0
    %886 = vmatpush1.bf16.msra.mxu0 0
    %887 = vmatprep.subr.bf16.mxu0 0
    %888 = vmatpush1.bf16.msra.mxu0 0
    %889 = vmatprep.subr.bf16.mxu0 0
    %890 = vmatpush1.bf16.msra.mxu0 0
    %891 = vmatprep.subr.bf16.mxu0 0
    %892 = vmatpush1.bf16.msra.mxu0 0
    %893 = vmatprep.subr.bf16.mxu0 0
    %894 = vmatpush1.bf16.msra.mxu0 0
    %895 = vmatprep.subr.bf16.mxu0 0
    %896 = vmatpush1.bf16.msra.mxu0 0
    %897 = vmatprep.mubr.bf16.mxu0 0
    %898 = vmatmul.mubr.bf16.gmra.mrb[0].mxu0 %v863
    %v899 = vpop.f32.mrb[0].mxu0
    %v900 = vadd.f32 %v848, %v899
    %v901 = vpop.f32.mrb[0].mxu0
    %v902 = vpop.f32.mrb[0].mxu0
    %v903 = vpop.f32.mrb[0].mxu0
    %904 = vdwg.mxu0
    %v905 = vadd.f32 %v900, %v246
    %v906 = vld [vmem:[%s11] sm:$0x1]
    %v907 = vld [vmem:[%s12] sm:$0x1]
    %v908 = vsel %vm218, %v905, 0.0
    %909 = vadd.xlane.f32.xlu0 %v908
    %v910 = vpop.xlane.xlu0 %909
    %v911 = vmul.f32 %v910, %v222
    %v912 = vsub.f32 %v905, %v911
    %v913 = vmul.f32 %v912, %v912
    %v914 = vsel %vm218, %v913, 0.0
    %915 = vadd.xlane.f32.xlu0 %v914
    %v916 = vpop.xlane.xlu0 %915
    %v917 = vmul.f32 %v916, %v222
    %v918 = vadd.f32 %v917, 1e-12
    %v919 = vrsqrt.pop %v918
    %v920 = vmul.f32 %v912, %v919
    %v922 = vlaneseq
    %v923 = vshrl.u32 %v922, 7
    %v924 = vsub.s32 0, %v923
    %v925 = vrot.slane %v906, %v924
    %v927 = vmul.f32 %v920, %v925
    %v929 = vlaneseq
    %v930 = vshrl.u32 %v929, 7
    %v931 = vsub.s32 0, %v930
    %v932 = vrot.slane %v907, %v931
    %v934 = vadd.f32 %v927, %v932
    %v935 = vpack.c.bf16 %v934, %v934
    %v936 = vld [vmem:[%s13] sm:$0xf]
    %v937 = vld [vmem:[%s13 + $0x4] sm:$0xf]
    %v938 = vld [vmem:[%s13 + $0x8] sm:$0xf]
    %v939 = vld [vmem:[%s13 + $0xc] sm:$0xf]
    %v940 = vld [vmem:[%s14] sm:$0x1]
    %v942 = vlaneseq
    %v943 = vshrl.u32 %v942, 7
    %v944 = vsub.s32 0, %v943
    %v945 = vrot.slane %v940, %v944
    %v951 = vunpack.c.l.b16 %v936
    %v952 = vunpack.c.l.b16 %v937
    %v953 = vunpack.c.l.b16 %v938
    %v954 = vunpack.c.l.b16 %v939
    %v955 = vpack.c.b16 %v952, %v951
    %v956 = vpack.c.b16 %v954, %v953
    %v960 = vsel %vm218, %v935, 0
    %962 = vmatprep.subr.bf16.mxu0 0
    %963 = vmatpush1.bf16.msra.mxu0 %v955
    %964 = vmatprep.subr.bf16.mxu0 0
    %965 = vmatpush1.bf16.msra.mxu0 %v956
    %966 = vmatprep.subr.bf16.mxu0 0
    %967 = vmatpush1.bf16.msra.mxu0 0
    %968 = vmatprep.subr.bf16.mxu0 0
    %969 = vmatpush1.bf16.msra.mxu0 0
    %970 = vmatprep.subr.bf16.mxu0 0
    %971 = vmatpush1.bf16.msra.mxu0 0
    %972 = vmatprep.subr.bf16.mxu0 0
    %973 = vmatpush1.bf16.msra.mxu0 0
    %974 = vmatprep.subr.bf16.mxu0 0
    %975 = vmatpush1.bf16.msra.mxu0 0
    %976 = vmatprep.subr.bf16.mxu0 0
    %977 = vmatpush1.bf16.msra.mxu0 0
    %978 = vmatprep.subr.bf16.mxu0 0
    %979 = vmatpush1.bf16.msra.mxu0 0
    %980 = vmatprep.subr.bf16.mxu0 0
    %981 = vmatpush1.bf16.msra.mxu0 0
    %982 = vmatprep.subr.bf16.mxu0 0
    %983 = vmatpush1.bf16.msra.mxu0 0
    %984 = vmatprep.subr.bf16.mxu0 0
    %985 = vmatpush1.bf16.msra.mxu0 0
    %986 = vmatprep.subr.bf16.mxu0 0
    %987 = vmatpush1.bf16.msra.mxu0 0
    %988 = vmatprep.subr.bf16.mxu0 0
    %989 = vmatpush1.bf16.msra.mxu0 0
    %990 = vmatprep.subr.bf16.mxu0 0
    %991 = vmatpush1.bf16.msra.mxu0 0
    %992 = vmatprep.subr.bf16.mxu0 0
    %993 = vmatpush1.bf16.msra.mxu0 0
    %994 = vmatprep.mubr.bf16.mxu0 0
    %995 = vmatmul.mubr.bf16.gmra.mrb[0].mxu0 %v960
    %v996 = vpop.f32.mrb[0].mxu0
    %v997 = vadd.f32 %v945, %v996
    %v998 = vpop.f32.mrb[0].mxu0
    %v999 = vpop.f32.mrb[0].mxu0
    %v1000 = vpop.f32.mrb[0].mxu0
    %1001 = vdwg.mxu0
    %v1002 = vmul.f32 %v997, 0.5
    %v1003 = vmul.f32 %v997, 0.70710677
    %v1004 = verf.f32.pop %v1003
    %v1005 = vadd.f32 %v1004, 1.0
    %v1006 = vmul.f32 %v1002, %v1005
    %v1007 = vpack.c.bf16 %v1006, %v1006
    %v1008 = vld [vmem:[%s15] sm:$0xf]
    %v1009 = vld [vmem:[%s15 + $0x4] sm:$0xf]
    %v1010 = vld [vmem:[%s15 + $0x8] sm:$0xf]
    %v1011 = vld [vmem:[%s15 + $0xc] sm:$0xf]
    %v1012 = vld [vmem:[%s15 + $0x10] sm:$0xf]
    %v1013 = vld [vmem:[%s15 + $0x14] sm:$0xf]
    %v1014 = vld [vmem:[%s15 + $0x18] sm:$0xf]
    %v1015 = vld [vmem:[%s15 + $0x1c] sm:$0xf]
    %v1016 = vld [vmem:[%s16] sm:$0x1]
    %v1018 = vlaneseq
    %v1019 = vshrl.u32 %v1018, 7
    %v1020 = vsub.s32 0, %v1019
    %v1021 = vrot.slane %v1016, %v1020
    %v1031 = vunpack.c.l.b16 %v1008
    %v1032 = vunpack.c.l.b16 %v1009
    %v1033 = vunpack.c.l.b16 %v1010
    %v1034 = vunpack.c.l.b16 %v1011
    %v1035 = vunpack.c.l.b16 %v1012
    %v1036 = vunpack.c.l.b16 %v1013
    %v1037 = vunpack.c.l.b16 %v1014
    %v1038 = vunpack.c.l.b16 %v1015
    %v1039 = vpack.c.b16 %v1032, %v1031
    %v1040 = vpack.c.b16 %v1034, %v1033
    %v1041 = vpack.c.b16 %v1036, %v1035
    %v1042 = vpack.c.b16 %v1038, %v1037
    %vm1047 = vcmask 523264
    %v1049 = vsel %vm1047, %v1007, 0
    %1051 = vmatprep.subr.bf16.mxu0 0
    %1052 = vmatpush1.bf16.msra.mxu0 %v1039
    %1053 = vmatprep.subr.bf16.mxu0 0
    %1054 = vmatpush1.bf16.msra.mxu0 %v1040
    %1055 = vmatprep.subr.bf16.mxu0 0
    %1056 = vmatpush1.bf16.msra.mxu0 %v1041
    %1057 = vmatprep.subr.bf16.mxu0 0
    %1058 = vmatpush1.bf16.msra.mxu0 %v1042
    %1059 = vmatprep.subr.bf16.mxu0 0
    %1060 = vmatpush1.bf16.msra.mxu0 0
    %1061 = vmatprep.subr.bf16.mxu0 0
    %1062 = vmatpush1.bf16.msra.mxu0 0
    %1063 = vmatprep.subr.bf16.mxu0 0
    %1064 = vmatpush1.bf16.msra.mxu0 0
    %1065 = vmatprep.subr.bf16.mxu0 0
    %1066 = vmatpush1.bf16.msra.mxu0 0
    %1067 = vmatprep.subr.bf16.mxu0 0
    %1068 = vmatpush1.bf16.msra.mxu0 0
    %1069 = vmatprep.subr.bf16.mxu0 0
    %1070 = vmatpush1.bf16.msra.mxu0 0
    %1071 = vmatprep.subr.bf16.mxu0 0
    %1072 = vmatpush1.bf16.msra.mxu0 0
    %1073 = vmatprep.subr.bf16.mxu0 0
    %1074 = vmatpush1.bf16.msra.mxu0 0
    %1075 = vmatprep.subr.bf16.mxu0 0
    %1076 = vmatpush1.bf16.msra.mxu0 0
    %1077 = vmatprep.subr.bf16.mxu0 0
    %1078 = vmatpush1.bf16.msra.mxu0 0
    %1079 = vmatprep.subr.bf16.mxu0 0
    %1080 = vmatpush1.bf16.msra.mxu0 0
    %1081 = vmatprep.subr.bf16.mxu0 0
    %1082 = vmatpush1.bf16.msra.mxu0 0
    %1083 = vmatprep.mubr.bf16.mxu0 0
    %1084 = vmatmul.mubr.bf16.gmra.mrb[0].mxu0 %v1049
    %v1085 = vpop.f32.mrb[0].mxu0
    %v1086 = vadd.f32 %v1021, %v1085
    %v1087 = vpop.f32.mrb[0].mxu0
    %v1088 = vpop.f32.mrb[0].mxu0
    %v1089 = vpop.f32.mrb[0].mxu0
    %1090 = vdwg.mxu0
    %v1091 = vadd.f32 %v1086, %v934
    %v1092 = vld [vmem:[%s17] sm:$0x1]
    %v1093 = vld [vmem:[%s18] sm:$0x1]
    %v1094 = vsel %vm218, %v1091, 0.0
    %1095 = vadd.xlane.f32.xlu0 %v1094
    %v1096 = vpop.xlane.xlu0 %1095
    %v1097 = vmul.f32 %v1096, %v222
    %v1098 = vsub.f32 %v1091, %v1097
    %v1099 = vmul.f32 %v1098, %v1098
    %v1100 = vsel %vm218, %v1099, 0.0
    %1101 = vadd.xlane.f32.xlu0 %v1100
    %v1102 = vpop.xlane.xlu0 %1101
    %v1103 = vmul.f32 %v1102, %v222
    %v1104 = vadd.f32 %v1103, 1e-12
    %v1105 = vrsqrt.pop %v1104
    %v1106 = vmul.f32 %v1098, %v1105
    %v1108 = vlaneseq
    %v1109 = vshrl.u32 %v1108, 7
    %v1110 = vsub.s32 0, %v1109
    %v1111 = vrot.slane %v1092, %v1110
    %v1113 = vmul.f32 %v1106, %v1111
    %v1115 = vlaneseq
    %v1116 = vshrl.u32 %v1115, 7
    %v1117 = vsub.s32 0, %v1116
    %v1118 = vrot.slane %v1093, %v1117
    %v1120 = vadd.f32 %v1113, %v1118
    %v1121 = vpack.c.bf16 %v1120, %v1120
    %s1122 = scalar_lea.vmem %s7, 16
    %v1123 = vld [vmem:[%s1122] sm:$0xf]
    %v1124 = vld [vmem:[%s1122 + $0x4] sm:$0xf]
    %v1125 = vld [vmem:[%s1122 + $0x8] sm:$0xf]
    %v1126 = vld [vmem:[%s1122 + $0xc] sm:$0xf]
    %s1127 = scalar_lea.vmem %s8, 1
    %v1128 = vld [vmem:[%s1127] sm:$0x1]
    %v1130 = vlaneseq
    %v1131 = vshrl.u32 %v1130, 7
    %v1132 = vsub.s32 0, %v1131
    %v1133 = vrot.slane %v1128, %v1132
    %v1139 = vunpack.c.l.b16 %v1123
    %v1140 = vunpack.c.l.b16 %v1124
    %v1141 = vunpack.c.l.b16 %v1125
    %v1142 = vunpack.c.l.b16 %v1126
    %v1143 = vpack.c.b16 %v1140, %v1139
    %v1144 = vpack.c.b16 %v1142, %v1141
    %v1148 = vsel %vm218, %v1121, 0
    %1150 = vmatprep.subr.bf16.mxu0 0
    %1151 = vmatpush1.bf16.msra.mxu0 %v1143
    %1152 = vmatprep.subr.bf16.mxu0 0
    %1153 = vmatpush1.bf16.msra.mxu0 %v1144
    %1154 = vmatprep.subr.bf16.mxu0 0
    %1155 = vmatpush1.bf16.msra.mxu0 0
    %1156 = vmatprep.subr.bf16.mxu0 0
    %1157 = vmatpush1.bf16.msra.mxu0 0
    %1158 = vmatprep.subr.bf16.mxu0 0
    %1159 = vmatpush1.bf16.msra.mxu0 0
    %1160 = vmatprep.subr.bf16.mxu0 0
    %1161 = vmatpush1.bf16.msra.mxu0 0
    %1162 = vmatprep.subr.bf16.mxu0 0
    %1163 = vmatpush1.bf16.msra.mxu0 0
    %1164 = vmatprep.subr.bf16.mxu0 0
    %1165 = vmatpush1.bf16.msra.mxu0 0
    %1166 = vmatprep.subr.bf16.mxu0 0
    %1167 = vmatpush1.bf16.msra.mxu0 0
    %1168 = vmatprep.subr.bf16.mxu0 0
    %1169 = vmatpush1.bf16.msra.mxu0 0
    %1170 = vmatprep.subr.bf16.mxu0 0
    %1171 = vmatpush1.bf16.msra.mxu0 0
    %1172 = vmatprep.subr.bf16.mxu0 0
    %1173 = vmatpush1.bf16.msra.mxu0 0
    %1174 = vmatprep.subr.bf16.mxu0 0
    %1175 = vmatpush1.bf16.msra.mxu0 0
    %1176 = vmatprep.subr.bf16.mxu0 0
    %1177 = vmatpush1.bf16.msra.mxu0 0
    %1178 = vmatprep.subr.bf16.mxu0 0
    %1179 = vmatpush1.bf16.msra.mxu0 0
    %1180 = vmatprep.subr.bf16.mxu0 0
    %1181 = vmatpush1.bf16.msra.mxu0 0
    %1182 = vmatprep.mubr.bf16.mxu0 0
    %1183 = vmatmul.mubr.bf16.gmra.mrb[0].mxu0 %v1148
    %v1184 = vpop.f32.mrb[0].mxu0
    %v1185 = vadd.f32 %v1133, %v1184
    %v1186 = vpop.f32.mrb[0].mxu0
    %v1187 = vpop.f32.mrb[0].mxu0
    %v1188 = vpop.f32.mrb[0].mxu0
    %1189 = vdwg.mxu0
    %1191 = vrot.lane.b32.xlu0 %v1185, 120
    %v1192 = vpop.permute.xlu0 %1191
    %1194 = vrot.lane.b32.xlu0 %v1185, 112
    %v1195 = vpop.permute.xlu0 %1194
    %1197 = vrot.lane.b32.xlu0 %v1185, 104
    %v1198 = vpop.permute.xlu0 %1197
    %v1200 = vpack.c.bf16 %v1185, %v1185
    %v1201 = vpack.c.bf16 %v1192, %v1192
    %v1202 = vpack.c.bf16 %v1195, %v1195
    %v1203 = vpack.c.bf16 %v1198, %v1198
    %1205 = vrot.lane.b32.xlu0 %v1200, 96
    %v1206 = vpop.permute.xlu0 %1205
    %v1208 = vsel %vm379, %v1200, 0
    %v1211 = vsel %vm379, %v1206, 0
    %1213 = vmatprep.subr.bf16.mxu0 0
    %1214 = vmatpush1.bf16.xpose.msra.mxu0 %v1211
    %1215 = vmatprep.subr.bf16.mxu0 0
    %1216 = vmatpush1.bf16.xpose.msra.mxu0 0
    %1217 = vmatprep.subr.bf16.mxu0 0
    %1218 = vmatpush1.bf16.xpose.msra.mxu0 0
    %1219 = vmatprep.subr.bf16.mxu0 0
    %1220 = vmatpush1.bf16.xpose.msra.mxu0 0
    %1221 = vmatprep.subr.bf16.mxu0 0
    %1222 = vmatpush1.bf16.xpose.msra.mxu0 0
    %1223 = vmatprep.subr.bf16.mxu0 0
    %1224 = vmatpush1.bf16.xpose.msra.mxu0 0
    %1225 = vmatprep.subr.bf16.mxu0 0
    %1226 = vmatpush1.bf16.xpose.msra.mxu0 0
    %1227 = vmatprep.subr.bf16.mxu0 0
    %1228 = vmatpush1.bf16.xpose.msra.mxu0 0
    %1229 = vmatprep.subr.bf16.mxu0 0
    %1230 = vmatpush1.bf16.xpose.msra.mxu0 0
    %1231 = vmatprep.subr.bf16.mxu0 0
    %1232 = vmatpush1.bf16.xpose.msra.mxu0 0
    %1233 = vmatprep.subr.bf16.mxu0 0
    %1234 = vmatpush1.bf16.xpose.msra.mxu0 0
    %1235 = vmatprep.subr.bf16.mxu0 0
    %1236 = vmatpush1.bf16.xpose.msra.mxu0 0
    %1237 = vmatprep.subr.bf16.mxu0 0
    %1238 = vmatpush1.bf16.xpose.msra.mxu0 0
    %1239 = vmatprep.subr.bf16.mxu0 0
    %1240 = vmatpush1.bf16.xpose.msra.mxu0 0
    %1241 = vmatprep.subr.bf16.mxu0 0
    %1242 = vmatpush1.bf16.xpose.msra.mxu0 0
    %1243 = vmatprep.subr.bf16.mxu0 0
    %1244 = vmatpush1.bf16.xpose.msra.mxu0 0
    %1245 = vmatprep.mubr.bf16.mxu0 0
    %1246 = vmatmul.mubr.bf16.gmra.mrb[0].mxu0 %v1208
    %v1247 = vpop.f32.mrb[0].mxu0
    %v1248 = vadd.f32 0.0, %v1247
    %v1249 = vpop.f32.mrb[0].mxu0
    %v1250 = vpop.f32.mrb[0].mxu0
    %v1251 = vpop.f32.mrb[0].mxu0
    %1252 = vdwg.mxu0
    %1254 = vrot.lane.b32.xlu0 %v1201, 96
    %v1255 = vpop.permute.xlu0 %1254
    %v1257 = vsel %vm379, %v1201, 0
    %v1260 = vsel %vm379, %v1255, 0
    %1262 = vmatprep.subr.bf16.mxu0 0
    %1263 = vmatpush1.bf16.xpose.msra.mxu0 %v1260
    %1264 = vmatprep.subr.bf16.mxu0 0
    %1265 = vmatpush1.bf16.xpose.msra.mxu0 0
    %1266 = vmatprep.subr.bf16.mxu0 0
    %1267 = vmatpush1.bf16.xpose.msra.mxu0 0
    %1268 = vmatprep.subr.bf16.mxu0 0
    %1269 = vmatpush1.bf16.xpose.msra.mxu0 0
    %1270 = vmatprep.subr.bf16.mxu0 0
    %1271 = vmatpush1.bf16.xpose.msra.mxu0 0
    %1272 = vmatprep.subr.bf16.mxu0 0
    %1273 = vmatpush1.bf16.xpose.msra.mxu0 0
    %1274 = vmatprep.subr.bf16.mxu0 0
    %1275 = vmatpush1.bf16.xpose.msra.mxu0 0
    %1276 = vmatprep.subr.bf16.mxu0 0
    %1277 = vmatpush1.bf16.xpose.msra.mxu0 0
    %1278 = vmatprep.subr.bf16.mxu0 0
    %1279 = vmatpush1.bf16.xpose.msra.mxu0 0
    %1280 = vmatprep.subr.bf16.mxu0 0
    %1281 = vmatpush1.bf16.xpose.msra.mxu0 0
    %1282 = vmatprep.subr.bf16.mxu0 0
    %1283 = vmatpush1.bf16.xpose.msra.mxu0 0
    %1284 = vmatprep.subr.bf16.mxu0 0
    %1285 = vmatpush1.bf16.xpose.msra.mxu0 0
    %1286 = vmatprep.subr.bf16.mxu0 0
    %1287 = vmatpush1.bf16.xpose.msra.mxu0 0
    %1288 = vmatprep.subr.bf16.mxu0 0
    %1289 = vmatpush1.bf16.xpose.msra.mxu0 0
    %1290 = vmatprep.subr.bf16.mxu0 0
    %1291 = vmatpush1.bf16.xpose.msra.mxu0 0
    %1292 = vmatprep.subr.bf16.mxu0 0
    %1293 = vmatpush1.bf16.xpose.msra.mxu0 0
    %1294 = vmatprep.mubr.bf16.mxu0 0
    %1295 = vmatmul.mubr.bf16.gmra.mrb[0].mxu0 %v1257
    %v1296 = vpop.f32.mrb[0].mxu0
    %v1297 = vadd.f32 0.0, %v1296
    %v1298 = vpop.f32.mrb[0].mxu0
    %v1299 = vpop.f32.mrb[0].mxu0
    %v1300 = vpop.f32.mrb[0].mxu0
    %1301 = vdwg.mxu0
    %1303 = vrot.lane.b32.xlu0 %v1202, 96
    %v1304 = vpop.permute.xlu0 %1303
    %v1306 = vsel %vm379, %v1202, 0
    %v1309 = vsel %vm379, %v1304, 0
    %1311 = vmatprep.subr.bf16.mxu0 0
    %1312 = vmatpush1.bf16.xpose.msra.mxu0 %v1309
    %1313 = vmatprep.subr.bf16.mxu0 0
    %1314 = vmatpush1.bf16.xpose.msra.mxu0 0
    %1315 = vmatprep.subr.bf16.mxu0 0
    %1316 = vmatpush1.bf16.xpose.msra.mxu0 0
    %1317 = vmatprep.subr.bf16.mxu0 0
    %1318 = vmatpush1.bf16.xpose.msra.mxu0 0
    %1319 = vmatprep.subr.bf16.mxu0 0
    %1320 = vmatpush1.bf16.xpose.msra.mxu0 0
    %1321 = vmatprep.subr.bf16.mxu0 0
    %1322 = vmatpush1.bf16.xpose.msra.mxu0 0
    %1323 = vmatprep.subr.bf16.mxu0 0
    %1324 = vmatpush1.bf16.xpose.msra.mxu0 0
    %1325 = vmatprep.subr.bf16.mxu0 0
    %1326 = vmatpush1.bf16.xpose.msra.mxu0 0
    %1327 = vmatprep.subr.bf16.mxu0 0
    %1328 = vmatpush1.bf16.xpose.msra.mxu0 0
    %1329 = vmatprep.subr.bf16.mxu0 0
    %1330 = vmatpush1.bf16.xpose.msra.mxu0 0
    %1331 = vmatprep.subr.bf16.mxu0 0
    %1332 = vmatpush1.bf16.xpose.msra.mxu0 0
    %1333 = vmatprep.subr.bf16.mxu0 0
    %1334 = vmatpush1.bf16.xpose.msra.mxu0 0
    %1335 = vmatprep.subr.bf16.mxu0 0
    %1336 = vmatpush1.bf16.xpose.msra.mxu0 0
    %1337 = vmatprep.subr.bf16.mxu0 0
    %1338 = vmatpush1.bf16.xpose.msra.mxu0 0
    %1339 = vmatprep.subr.bf16.mxu0 0
    %1340 = vmatpush1.bf16.xpose.msra.mxu0 0
    %1341 = vmatprep.subr.bf16.mxu0 0
    %1342 = vmatpush1.bf16.xpose.msra.mxu0 0
    %1343 = vmatprep.mubr.bf16.mxu0 0
    %1344 = vmatmul.mubr.bf16.gmra.mrb[0].mxu0 %v1306
    %v1345 = vpop.f32.mrb[0].mxu0
    %v1346 = vadd.f32 0.0, %v1345
    %v1347 = vpop.f32.mrb[0].mxu0
    %v1348 = vpop.f32.mrb[0].mxu0
    %v1349 = vpop.f32.mrb[0].mxu0
    %1350 = vdwg.mxu0
    %1352 = vrot.lane.b32.xlu0 %v1203, 96
    %v1353 = vpop.permute.xlu0 %1352
    %v1355 = vsel %vm379, %v1203, 0
    %v1358 = vsel %vm379, %v1353, 0
    %1360 = vmatprep.subr.bf16.mxu0 0
    %1361 = vmatpush1.bf16.xpose.msra.mxu0 %v1358
    %1362 = vmatprep.subr.bf16.mxu0 0
    %1363 = vmatpush1.bf16.xpose.msra.mxu0 0
    %1364 = vmatprep.subr.bf16.mxu0 0
    %1365 = vmatpush1.bf16.xpose.msra.mxu0 0
    %1366 = vmatprep.subr.bf16.mxu0 0
    %1367 = vmatpush1.bf16.xpose.msra.mxu0 0
    %1368 = vmatprep.subr.bf16.mxu0 0
    %1369 = vmatpush1.bf16.xpose.msra.mxu0 0
    %1370 = vmatprep.subr.bf16.mxu0 0
    %1371 = vmatpush1.bf16.xpose.msra.mxu0 0
    %1372 = vmatprep.subr.bf16.mxu0 0
    %1373 = vmatpush1.bf16.xpose.msra.mxu0 0
    %1374 = vmatprep.subr.bf16.mxu0 0
    %1375 = vmatpush1.bf16.xpose.msra.mxu0 0
    %1376 = vmatprep.subr.bf16.mxu0 0
    %1377 = vmatpush1.bf16.xpose.msra.mxu0 0
    %1378 = vmatprep.subr.bf16.mxu0 0
    %1379 = vmatpush1.bf16.xpose.msra.mxu0 0
    %1380 = vmatprep.subr.bf16.mxu0 0
    %1381 = vmatpush1.bf16.xpose.msra.mxu0 0
    %1382 = vmatprep.subr.bf16.mxu0 0
    %1383 = vmatpush1.bf16.xpose.msra.mxu0 0
    %1384 = vmatprep.subr.bf16.mxu0 0
    %1385 = vmatpush1.bf16.xpose.msra.mxu0 0
    %1386 = vmatprep.subr.bf16.mxu0 0
    %1387 = vmatpush1.bf16.xpose.msra.mxu0 0
    %1388 = vmatprep.subr.bf16.mxu0 0
    %1389 = vmatpush1.bf16.xpose.msra.mxu0 0
    %1390 = vmatprep.subr.bf16.mxu0 0
    %1391 = vmatpush1.bf16.xpose.msra.mxu0 0
    %1392 = vmatprep.mubr.bf16.mxu0 0
    %1393 = vmatmul.mubr.bf16.gmra.mrb[0].mxu0 %v1355
    %v1394 = vpop.f32.mrb[0].mxu0
    %v1395 = vadd.f32 0.0, %v1394
    %v1396 = vpop.f32.mrb[0].mxu0
    %v1397 = vpop.f32.mrb[0].mxu0
    %v1398 = vpop.f32.mrb[0].mxu0
    %1399 = vdwg.mxu0
    %v1400 = vmul.f32 %v1248, 0.35355338
    %v1401 = vmul.f32 %v1297, 0.35355338
    %v1402 = vmul.f32 %v1346, 0.35355338
    %v1403 = vmul.f32 %v1395, 0.35355338
    %v1404 = vadd.f32 %v1400, %v294
    %v1405 = vadd.f32 %v1401, %v294
    %v1406 = vadd.f32 %v1402, %v294
    %v1407 = vadd.f32 %v1403, %v294
    %v1408 = vsel %vm379, %v1404, -inf
    %1409 = vmax.xlane.f32.xlu0 %v1408
    %v1410 = vpop.xlane.xlu0 %1409
    %v1411 = vsel %vm379, %v1405, -inf
    %1412 = vmax.xlane.f32.xlu0 %v1411
    %v1413 = vpop.xlane.xlu0 %1412
    %v1414 = vsel %vm379, %v1406, -inf
    %1415 = vmax.xlane.f32.xlu0 %v1414
    %v1416 = vpop.xlane.xlu0 %1415
    %v1417 = vsel %vm379, %v1407, -inf
    %1418 = vmax.xlane.f32.xlu0 %v1417
    %v1419 = vpop.xlane.xlu0 %1418
    %v1420 = vsub.f32 %v1404, %v1410
    %v1421 = vsub.f32 %v1405, %v1413
    %v1422 = vsub.f32 %v1406, %v1416
    %v1423 = vsub.f32 %v1407, %v1419
    %v1424 = vmul.f32 %v1420, 1.442695
    %v1425 = vpow.pop %v1424
    %v1426 = vmul.f32 %v1421, 1.442695
    %v1427 = vpow.pop %v1426
    %v1428 = vmul.f32 %v1422, 1.442695
    %v1429 = vpow.pop %v1428
    %v1430 = vmul.f32 %v1423, 1.442695
    %v1431 = vpow.pop %v1430
    %v1432 = vsel %vm379, %v1425, 0.0
    %1433 = vadd.xlane.f32.xlu0 %v1432
    %v1434 = vpop.xlane.xlu0 %1433
    %v1435 = vsel %vm379, %v1427, 0.0
    %1436 = vadd.xlane.f32.xlu0 %v1435
    %v1437 = vpop.xlane.xlu0 %1436
    %v1438 = vsel %vm379, %v1429, 0.0
    %1439 = vadd.xlane.f32.xlu0 %v1438
    %v1440 = vpop.xlane.xlu0 %1439
    %v1441 = vsel %vm379, %v1431, 0.0
    %1442 = vadd.xlane.f32.xlu0 %v1441
    %v1443 = vpop.xlane.xlu0 %1442
    %v1444 = vrcp.pop %v1434
    %v1445 = vrcp.pop %v1437
    %v1446 = vrcp.pop %v1440
    %v1447 = vrcp.pop %v1443
    %v1448 = vmul.f32 %v1425, %v1444
    %v1449 = vmul.f32 %v1427, %v1445
    %v1450 = vmul.f32 %v1429, %v1446
    %v1451 = vmul.f32 %v1431, %v1447
    %v1452 = vpack.c.bf16 %v1448, %v1448
    %v1453 = vpack.c.bf16 %v1449, %v1449
    %v1454 = vpack.c.bf16 %v1450, %v1450
    %v1455 = vpack.c.bf16 %v1451, %v1451
    %1456 = vrot.lane.b32.xlu0 %v1200, 64
    %v1457 = vpop.permute.xlu0 %1456
    %v1459 = vsel %vm379, %v1452, 0
    %v1462 = vsel %vm136, %v1457, 0
    %1464 = vmatprep.subr.bf16.mxu0 0
    %1465 = vmatpush1.bf16.msra.mxu0 %v1462
    %1466 = vmatprep.subr.bf16.mxu0 0
    %1467 = vmatpush1.bf16.msra.mxu0 0
    %1468 = vmatprep.subr.bf16.mxu0 0
    %1469 = vmatpush1.bf16.msra.mxu0 0
    %1470 = vmatprep.subr.bf16.mxu0 0
    %1471 = vmatpush1.bf16.msra.mxu0 0
    %1472 = vmatprep.subr.bf16.mxu0 0
    %1473 = vmatpush1.bf16.msra.mxu0 0
    %1474 = vmatprep.subr.bf16.mxu0 0
    %1475 = vmatpush1.bf16.msra.mxu0 0
    %1476 = vmatprep.subr.bf16.mxu0 0
    %1477 = vmatpush1.bf16.msra.mxu0 0
    %1478 = vmatprep.subr.bf16.mxu0 0
    %1479 = vmatpush1.bf16.msra.mxu0 0
    %1480 = vmatprep.subr.bf16.mxu0 0
    %1481 = vmatpush1.bf16.msra.mxu0 0
    %1482 = vmatprep.subr.bf16.mxu0 0
    %1483 = vmatpush1.bf16.msra.mxu0 0
    %1484 = vmatprep.subr.bf16.mxu0 0
    %1485 = vmatpush1.bf16.msra.mxu0 0
    %1486 = vmatprep.subr.bf16.mxu0 0
    %1487 = vmatpush1.bf16.msra.mxu0 0
    %1488 = vmatprep.subr.bf16.mxu0 0
    %1489 = vmatpush1.bf16.msra.mxu0 0
    %1490 = vmatprep.subr.bf16.mxu0 0
    %1491 = vmatpush1.bf16.msra.mxu0 0
    %1492 = vmatprep.subr.bf16.mxu0 0
    %1493 = vmatpush1.bf16.msra.mxu0 0
    %1494 = vmatprep.subr.bf16.mxu0 0
    %1495 = vmatpush1.bf16.msra.mxu0 0
    %1496 = vmatprep.mubr.bf16.mxu0 0
    %1497 = vmatmul.mubr.bf16.gmra.mrb[0].mxu0 %v1459
    %v1498 = vpop.f32.mrb[0].mxu0
    %v1499 = vadd.f32 0.0, %v1498
    %v1500 = vpop.f32.mrb[0].mxu0
    %v1501 = vpop.f32.mrb[0].mxu0
    %v1502 = vpop.f32.mrb[0].mxu0
    %1503 = vdwg.mxu0
    %1504 = vrot.lane.b32.xlu0 %v1201, 64
    %v1505 = vpop.permute.xlu0 %1504
    %v1507 = vsel %vm379, %v1453, 0
    %v1510 = vsel %vm136, %v1505, 0
    %1512 = vmatprep.subr.bf16.mxu0 0
    %1513 = vmatpush1.bf16.msra.mxu0 %v1510
    %1514 = vmatprep.subr.bf16.mxu0 0
    %1515 = vmatpush1.bf16.msra.mxu0 0
    %1516 = vmatprep.subr.bf16.mxu0 0
    %1517 = vmatpush1.bf16.msra.mxu0 0
    %1518 = vmatprep.subr.bf16.mxu0 0
    %1519 = vmatpush1.bf16.msra.mxu0 0
    %1520 = vmatprep.subr.bf16.mxu0 0
    %1521 = vmatpush1.bf16.msra.mxu0 0
    %1522 = vmatprep.subr.bf16.mxu0 0
    %1523 = vmatpush1.bf16.msra.mxu0 0
    %1524 = vmatprep.subr.bf16.mxu0 0
    %1525 = vmatpush1.bf16.msra.mxu0 0
    %1526 = vmatprep.subr.bf16.mxu0 0
    %1527 = vmatpush1.bf16.msra.mxu0 0
    %1528 = vmatprep.subr.bf16.mxu0 0
    %1529 = vmatpush1.bf16.msra.mxu0 0
    %1530 = vmatprep.subr.bf16.mxu0 0
    %1531 = vmatpush1.bf16.msra.mxu0 0
    %1532 = vmatprep.subr.bf16.mxu0 0
    %1533 = vmatpush1.bf16.msra.mxu0 0
    %1534 = vmatprep.subr.bf16.mxu0 0
    %1535 = vmatpush1.bf16.msra.mxu0 0
    %1536 = vmatprep.subr.bf16.mxu0 0
    %1537 = vmatpush1.bf16.msra.mxu0 0
    %1538 = vmatprep.subr.bf16.mxu0 0
    %1539 = vmatpush1.bf16.msra.mxu0 0
    %1540 = vmatprep.subr.bf16.mxu0 0
    %1541 = vmatpush1.bf16.msra.mxu0 0
    %1542 = vmatprep.subr.bf16.mxu0 0
    %1543 = vmatpush1.bf16.msra.mxu0 0
    %1544 = vmatprep.mubr.bf16.mxu0 0
    %1545 = vmatmul.mubr.bf16.gmra.mrb[0].mxu0 %v1507
    %v1546 = vpop.f32.mrb[0].mxu0
    %v1547 = vadd.f32 0.0, %v1546
    %v1548 = vpop.f32.mrb[0].mxu0
    %v1549 = vpop.f32.mrb[0].mxu0
    %v1550 = vpop.f32.mrb[0].mxu0
    %1551 = vdwg.mxu0
    %1552 = vrot.lane.b32.xlu0 %v1202, 64
    %v1553 = vpop.permute.xlu0 %1552
    %v1555 = vsel %vm379, %v1454, 0
    %v1558 = vsel %vm136, %v1553, 0
    %1560 = vmatprep.subr.bf16.mxu0 0
    %1561 = vmatpush1.bf16.msra.mxu0 %v1558
    %1562 = vmatprep.subr.bf16.mxu0 0
    %1563 = vmatpush1.bf16.msra.mxu0 0
    %1564 = vmatprep.subr.bf16.mxu0 0
    %1565 = vmatpush1.bf16.msra.mxu0 0
    %1566 = vmatprep.subr.bf16.mxu0 0
    %1567 = vmatpush1.bf16.msra.mxu0 0
    %1568 = vmatprep.subr.bf16.mxu0 0
    %1569 = vmatpush1.bf16.msra.mxu0 0
    %1570 = vmatprep.subr.bf16.mxu0 0
    %1571 = vmatpush1.bf16.msra.mxu0 0
    %1572 = vmatprep.subr.bf16.mxu0 0
    %1573 = vmatpush1.bf16.msra.mxu0 0
    %1574 = vmatprep.subr.bf16.mxu0 0
    %1575 = vmatpush1.bf16.msra.mxu0 0
    %1576 = vmatprep.subr.bf16.mxu0 0
    %1577 = vmatpush1.bf16.msra.mxu0 0
    %1578 = vmatprep.subr.bf16.mxu0 0
    %1579 = vmatpush1.bf16.msra.mxu0 0
    %1580 = vmatprep.subr.bf16.mxu0 0
    %1581 = vmatpush1.bf16.msra.mxu0 0
    %1582 = vmatprep.subr.bf16.mxu0 0
    %1583 = vmatpush1.bf16.msra.mxu0 0
    %1584 = vmatprep.subr.bf16.mxu0 0
    %1585 = vmatpush1.bf16.msra.mxu0 0
    %1586 = vmatprep.subr.bf16.mxu0 0
    %1587 = vmatpush1.bf16.msra.mxu0 0
    %1588 = vmatprep.subr.bf16.mxu0 0
    %1589 = vmatpush1.bf16.msra.mxu0 0
    %1590 = vmatprep.subr.bf16.mxu0 0
    %1591 = vmatpush1.bf16.msra.mxu0 0
    %1592 = vmatprep.mubr.bf16.mxu0 0
    %1593 = vmatmul.mubr.bf16.gmra.mrb[0].mxu0 %v1555
    %v1594 = vpop.f32.mrb[0].mxu0
    %v1595 = vadd.f32 0.0, %v1594
    %v1596 = vpop.f32.mrb[0].mxu0
    %v1597 = vpop.f32.mrb[0].mxu0
    %v1598 = vpop.f32.mrb[0].mxu0
    %1599 = vdwg.mxu0
    %1600 = vrot.lane.b32.xlu0 %v1203, 64
    %v1601 = vpop.permute.xlu0 %1600
    %v1603 = vsel %vm379, %v1455, 0
    %v1606 = vsel %vm136, %v1601, 0
    %1608 = vmatprep.subr.bf16.mxu0 0
    %1609 = vmatpush1.bf16.msra.mxu0 %v1606
    %1610 = vmatprep.subr.bf16.mxu0 0
    %1611 = vmatpush1.bf16.msra.mxu0 0
    %1612 = vmatprep.subr.bf16.mxu0 0
    %1613 = vmatpush1.bf16.msra.mxu0 0
    %1614 = vmatprep.subr.bf16.mxu0 0
    %1615 = vmatpush1.bf16.msra.mxu0 0
    %1616 = vmatprep.subr.bf16.mxu0 0
    %1617 = vmatpush1.bf16.msra.mxu0 0
    %1618 = vmatprep.subr.bf16.mxu0 0
    %1619 = vmatpush1.bf16.msra.mxu0 0
    %1620 = vmatprep.subr.bf16.mxu0 0
    %1621 = vmatpush1.bf16.msra.mxu0 0
    %1622 = vmatprep.subr.bf16.mxu0 0
    %1623 = vmatpush1.bf16.msra.mxu0 0
    %1624 = vmatprep.subr.bf16.mxu0 0
    %1625 = vmatpush1.bf16.msra.mxu0 0
    %1626 = vmatprep.subr.bf16.mxu0 0
    %1627 = vmatpush1.bf16.msra.mxu0 0
    %1628 = vmatprep.subr.bf16.mxu0 0
    %1629 = vmatpush1.bf16.msra.mxu0 0
    %1630 = vmatprep.subr.bf16.mxu0 0
    %1631 = vmatpush1.bf16.msra.mxu0 0
    %1632 = vmatprep.subr.bf16.mxu0 0
    %1633 = vmatpush1.bf16.msra.mxu0 0
    %1634 = vmatprep.subr.bf16.mxu0 0
    %1635 = vmatpush1.bf16.msra.mxu0 0
    %1636 = vmatprep.subr.bf16.mxu0 0
    %1637 = vmatpush1.bf16.msra.mxu0 0
    %1638 = vmatprep.subr.bf16.mxu0 0
    %1639 = vmatpush1.bf16.msra.mxu0 0
    %1640 = vmatprep.mubr.bf16.mxu0 0
    %1641 = vmatmul.mubr.bf16.gmra.mrb[0].mxu0 %v1603
    %v1642 = vpop.f32.mrb[0].mxu0
    %v1643 = vadd.f32 0.0, %v1642
    %v1644 = vpop.f32.mrb[0].mxu0
    %v1645 = vpop.f32.mrb[0].mxu0
    %v1646 = vpop.f32.mrb[0].mxu0
    %1647 = vdwg.mxu0
    %1649 = vrot.lane.b32.xlu0 %v1547, 8
    %v1650 = vpop.permute.xlu0 %1649
    %1653 = vrot.lane.b32.xlu0 %v1595, 16
    %v1654 = vpop.permute.xlu0 %1653
    %1657 = vrot.lane.b32.xlu0 %v1643, 24
    %v1658 = vpop.permute.xlu0 %1657
    %v1660 = vsel %vm379, %v1499, %v1650
    %v1661 = vsel %vm834, %v1660, %v1654
    %v1662 = vsel %vm836, %v1661, %v1658
    %v1663 = vpack.c.bf16 %v1662, %v1662
    %s1664 = scalar_lea.vmem %s9, 16
    %v1665 = vld [vmem:[%s1664] sm:$0xf]
    %v1666 = vld [vmem:[%s1664 + $0x4] sm:$0xf]
    %v1667 = vld [vmem:[%s1664 + $0x8] sm:$0xf]
    %v1668 = vld [vmem:[%s1664 + $0xc] sm:$0xf]
    %s1669 = scalar_lea.vmem %s10, 1
    %v1670 = vld [vmem:[%s1669] sm:$0x1]
    %v1672 = vlaneseq
    %v1673 = vshrl.u32 %v1672, 7
    %v1674 = vsub.s32 0, %v1673
    %v1675 = vrot.slane %v1670, %v1674
    %v1681 = vunpack.c.l.b16 %v1665
    %v1682 = vunpack.c.l.b16 %v1666
    %v1683 = vunpack.c.l.b16 %v1667
    %v1684 = vunpack.c.l.b16 %v1668
    %v1685 = vpack.c.b16 %v1682, %v1681
    %v1686 = vpack.c.b16 %v1684, %v1683
    %v1690 = vsel %vm218, %v1663, 0
    %1692 = vmatprep.subr.bf16.mxu0 0
    %1693 = vmatpush1.bf16.msra.mxu0 %v1685
    %1694 = vmatprep.subr.bf16.mxu0 0
    %1695 = vmatpush1.bf16.msra.mxu0 %v1686
    %1696 = vmatprep.subr.bf16.mxu0 0
    %1697 = vmatpush1.bf16.msra.mxu0 0
    %1698 = vmatprep.subr.bf16.mxu0 0
    %1699 = vmatpush1.bf16.msra.mxu0 0
    %1700 = vmatprep.subr.bf16.mxu0 0
    %1701 = vmatpush1.bf16.msra.mxu0 0
    %1702 = vmatprep.subr.bf16.mxu0 0
    %1703 = vmatpush1.bf16.msra.mxu0 0
    %1704 = vmatprep.subr.bf16.mxu0 0
    %1705 = vmatpush1.bf16.msra.mxu0 0
    %1706 = vmatprep.subr.bf16.mxu0 0
    %1707 = vmatpush1.bf16.msra.mxu0 0
    %1708 = vmatprep.subr.bf16.mxu0 0
    %1709 = vmatpush1.bf16.msra.mxu0 0
    %1710 = vmatprep.subr.bf16.mxu0 0
    %1711 = vmatpush1.bf16.msra.mxu0 0
    %1712 = vmatprep.subr.bf16.mxu0 0
    %1713 = vmatpush1.bf16.msra.mxu0 0
    %1714 = vmatprep.subr.bf16.mxu0 0
    %1715 = vmatpush1.bf16.msra.mxu0 0
    %1716 = vmatprep.subr.bf16.mxu0 0
    %1717 = vmatpush1.bf16.msra.mxu0 0
    %1718 = vmatprep.subr.bf16.mxu0 0
    %1719 = vmatpush1.bf16.msra.mxu0 0
    %1720 = vmatprep.subr.bf16.mxu0 0
    %1721 = vmatpush1.bf16.msra.mxu0 0
    %1722 = vmatprep.subr.bf16.mxu0 0
    %1723 = vmatpush1.bf16.msra.mxu0 0
    %1724 = vmatprep.mubr.bf16.mxu0 0
    %1725 = vmatmul.mubr.bf16.gmra.mrb[0].mxu0 %v1690
    %v1726 = vpop.f32.mrb[0].mxu0
    %v1727 = vadd.f32 %v1675, %v1726
    %v1728 = vpop.f32.mrb[0].mxu0
    %v1729 = vpop.f32.mrb[0].mxu0
    %v1730 = vpop.f32.mrb[0].mxu0
    %1731 = vdwg.mxu0
    %v1732 = vadd.f32 %v1727, %v1120
    %s1733 = scalar_lea.vmem %s11, 1
    %v1734 = vld [vmem:[%s1733] sm:$0x1]
    %s1735 = scalar_lea.vmem %s12, 1
    %v1736 = vld [vmem:[%s1735] sm:$0x1]
    %v1737 = vsel %vm218, %v1732, 0.0
    %1738 = vadd.xlane.f32.xlu0 %v1737
    %v1739 = vpop.xlane.xlu0 %1738
    %v1740 = vmul.f32 %v1739, %v222
    %v1741 = vsub.f32 %v1732, %v1740
    %v1742 = vmul.f32 %v1741, %v1741
    %v1743 = vsel %vm218, %v1742, 0.0
    %1744 = vadd.xlane.f32.xlu0 %v1743
    %v1745 = vpop.xlane.xlu0 %1744
    %v1746 = vmul.f32 %v1745, %v222
    %v1747 = vadd.f32 %v1746, 1e-12
    %v1748 = vrsqrt.pop %v1747
    %v1749 = vmul.f32 %v1741, %v1748
    %v1751 = vlaneseq
    %v1752 = vshrl.u32 %v1751, 7
    %v1753 = vsub.s32 0, %v1752
    %v1754 = vrot.slane %v1734, %v1753
    %v1756 = vmul.f32 %v1749, %v1754
    %v1758 = vlaneseq
    %v1759 = vshrl.u32 %v1758, 7
    %v1760 = vsub.s32 0, %v1759
    %v1761 = vrot.slane %v1736, %v1760
    %v1763 = vadd.f32 %v1756, %v1761
    %v1764 = vpack.c.bf16 %v1763, %v1763
    %s1765 = scalar_lea.vmem %s13, 16
    %v1766 = vld [vmem:[%s1765] sm:$0xf]
    %v1767 = vld [vmem:[%s1765 + $0x4] sm:$0xf]
    %v1768 = vld [vmem:[%s1765 + $0x8] sm:$0xf]
    %v1769 = vld [vmem:[%s1765 + $0xc] sm:$0xf]
    %s1770 = scalar_lea.vmem %s14, 1
    %v1771 = vld [vmem:[%s1770] sm:$0x1]
    %v1773 = vlaneseq
    %v1774 = vshrl.u32 %v1773, 7
    %v1775 = vsub.s32 0, %v1774
    %v1776 = vrot.slane %v1771, %v1775
    %v1782 = vunpack.c.l.b16 %v1766
    %v1783 = vunpack.c.l.b16 %v1767
    %v1784 = vunpack.c.l.b16 %v1768
    %v1785 = vunpack.c.l.b16 %v1769
    %v1786 = vpack.c.b16 %v1783, %v1782
    %v1787 = vpack.c.b16 %v1785, %v1784
    %v1791 = vsel %vm218, %v1764, 0
    %1793 = vmatprep.subr.bf16.mxu0 0
    %1794 = vmatpush1.bf16.msra.mxu0 %v1786
    %1795 = vmatprep.subr.bf16.mxu0 0
    %1796 = vmatpush1.bf16.msra.mxu0 %v1787
    %1797 = vmatprep.subr.bf16.mxu0 0
    %1798 = vmatpush1.bf16.msra.mxu0 0
    %1799 = vmatprep.subr.bf16.mxu0 0
    %1800 = vmatpush1.bf16.msra.mxu0 0
    %1801 = vmatprep.subr.bf16.mxu0 0
    %1802 = vmatpush1.bf16.msra.mxu0 0
    %1803 = vmatprep.subr.bf16.mxu0 0
    %1804 = vmatpush1.bf16.msra.mxu0 0
    %1805 = vmatprep.subr.bf16.mxu0 0
    %1806 = vmatpush1.bf16.msra.mxu0 0
    %1807 = vmatprep.subr.bf16.mxu0 0
    %1808 = vmatpush1.bf16.msra.mxu0 0
    %1809 = vmatprep.subr.bf16.mxu0 0
    %1810 = vmatpush1.bf16.msra.mxu0 0
    %1811 = vmatprep.subr.bf16.mxu0 0
    %1812 = vmatpush1.bf16.msra.mxu0 0
    %1813 = vmatprep.subr.bf16.mxu0 0
    %1814 = vmatpush1.bf16.msra.mxu0 0
    %1815 = vmatprep.subr.bf16.mxu0 0
    %1816 = vmatpush1.bf16.msra.mxu0 0
    %1817 = vmatprep.subr.bf16.mxu0 0
    %1818 = vmatpush1.bf16.msra.mxu0 0
    %1819 = vmatprep.subr.bf16.mxu0 0
    %1820 = vmatpush1.bf16.msra.mxu0 0
    %1821 = vmatprep.subr.bf16.mxu0 0
    %1822 = vmatpush1.bf16.msra.mxu0 0
    %1823 = vmatprep.subr.bf16.mxu0 0
    %1824 = vmatpush1.bf16.msra.mxu0 0
    %1825 = vmatprep.mubr.bf16.mxu0 0
    %1826 = vmatmul.mubr.bf16.gmra.mrb[0].mxu0 %v1791
    %v1827 = vpop.f32.mrb[0].mxu0
    %v1828 = vadd.f32 %v1776, %v1827
    %v1829 = vpop.f32.mrb[0].mxu0
    %v1830 = vpop.f32.mrb[0].mxu0
    %v1831 = vpop.f32.mrb[0].mxu0
    %1832 = vdwg.mxu0
    %v1833 = vmul.f32 %v1828, 0.5
    %v1834 = vmul.f32 %v1828, 0.70710677
    %v1835 = verf.f32.pop %v1834
    %v1836 = vadd.f32 %v1835, 1.0
    %v1837 = vmul.f32 %v1833, %v1836
    %v1838 = vpack.c.bf16 %v1837, %v1837
    %s1839 = scalar_lea.vmem %s15, 32
    %v1840 = vld [vmem:[%s1839] sm:$0xf]
    %v1841 = vld [vmem:[%s1839 + $0x4] sm:$0xf]
    %v1842 = vld [vmem:[%s1839 + $0x8] sm:$0xf]
    %v1843 = vld [vmem:[%s1839 + $0xc] sm:$0xf]
    %v1844 = vld [vmem:[%s1839 + $0x10] sm:$0xf]
    %v1845 = vld [vmem:[%s1839 + $0x14] sm:$0xf]
    %v1846 = vld [vmem:[%s1839 + $0x18] sm:$0xf]
    %v1847 = vld [vmem:[%s1839 + $0x1c] sm:$0xf]
    %s1848 = scalar_lea.vmem %s16, 1
    %v1849 = vld [vmem:[%s1848] sm:$0x1]
    %v1851 = vlaneseq
    %v1852 = vshrl.u32 %v1851, 7
    %v1853 = vsub.s32 0, %v1852
    %v1854 = vrot.slane %v1849, %v1853
    %v1864 = vunpack.c.l.b16 %v1840
    %v1865 = vunpack.c.l.b16 %v1841
    %v1866 = vunpack.c.l.b16 %v1842
    %v1867 = vunpack.c.l.b16 %v1843
    %v1868 = vunpack.c.l.b16 %v1844
    %v1869 = vunpack.c.l.b16 %v1845
    %v1870 = vunpack.c.l.b16 %v1846
    %v1871 = vunpack.c.l.b16 %v1847
    %v1872 = vpack.c.b16 %v1865, %v1864
    %v1873 = vpack.c.b16 %v1867, %v1866
    %v1874 = vpack.c.b16 %v1869, %v1868
    %v1875 = vpack.c.b16 %v1871, %v1870
    %v1881 = vsel %vm1047, %v1838, 0
    %1883 = vmatprep.subr.bf16.mxu0 0
    %1884 = vmatpush1.bf16.msra.mxu0 %v1872
    %1885 = vmatprep.subr.bf16.mxu0 0
    %1886 = vmatpush1.bf16.msra.mxu0 %v1873
    %1887 = vmatprep.subr.bf16.mxu0 0
    %1888 = vmatpush1.bf16.msra.mxu0 %v1874
    %1889 = vmatprep.subr.bf16.mxu0 0
    %1890 = vmatpush1.bf16.msra.mxu0 %v1875
    %1891 = vmatprep.subr.bf16.mxu0 0
    %1892 = vmatpush1.bf16.msra.mxu0 0
    %1893 = vmatprep.subr.bf16.mxu0 0
    %1894 = vmatpush1.bf16.msra.mxu0 0
    %1895 = vmatprep.subr.bf16.mxu0 0
    %1896 = vmatpush1.bf16.msra.mxu0 0
    %1897 = vmatprep.subr.bf16.mxu0 0
    %1898 = vmatpush1.bf16.msra.mxu0 0
    %1899 = vmatprep.subr.bf16.mxu0 0
    %1900 = vmatpush1.bf16.msra.mxu0 0
    %1901 = vmatprep.subr.bf16.mxu0 0
    %1902 = vmatpush1.bf16.msra.mxu0 0
    %1903 = vmatprep.subr.bf16.mxu0 0
    %1904 = vmatpush1.bf16.msra.mxu0 0
    %1905 = vmatprep.subr.bf16.mxu0 0
    %1906 = vmatpush1.bf16.msra.mxu0 0
    %1907 = vmatprep.subr.bf16.mxu0 0
    %1908 = vmatpush1.bf16.msra.mxu0 0
    %1909 = vmatprep.subr.bf16.mxu0 0
    %1910 = vmatpush1.bf16.msra.mxu0 0
    %1911 = vmatprep.subr.bf16.mxu0 0
    %1912 = vmatpush1.bf16.msra.mxu0 0
    %1913 = vmatprep.subr.bf16.mxu0 0
    %1914 = vmatpush1.bf16.msra.mxu0 0
    %1915 = vmatprep.mubr.bf16.mxu0 0
    %1916 = vmatmul.mubr.bf16.gmra.mrb[0].mxu0 %v1881
    %v1917 = vpop.f32.mrb[0].mxu0
    %v1918 = vadd.f32 %v1854, %v1917
    %v1919 = vpop.f32.mrb[0].mxu0
    %v1920 = vpop.f32.mrb[0].mxu0
    %v1921 = vpop.f32.mrb[0].mxu0
    %1922 = vdwg.mxu0
    %v1923 = vadd.f32 %v1918, %v1763
    %s1924 = scalar_lea.vmem %s17, 1
    %v1925 = vld [vmem:[%s1924] sm:$0x1]
    %s1926 = scalar_lea.vmem %s18, 1
    %v1927 = vld [vmem:[%s1926] sm:$0x1]
    %v1928 = vsel %vm218, %v1923, 0.0
    %1929 = vadd.xlane.f32.xlu0 %v1928
    %v1930 = vpop.xlane.xlu0 %1929
    %v1931 = vmul.f32 %v1930, %v222
    %v1932 = vsub.f32 %v1923, %v1931
    %v1933 = vmul.f32 %v1932, %v1932
    %v1934 = vsel %vm218, %v1933, 0.0
    %1935 = vadd.xlane.f32.xlu0 %v1934
    %v1936 = vpop.xlane.xlu0 %1935
    %v1937 = vmul.f32 %v1936, %v222
    %v1938 = vadd.f32 %v1937, 1e-12
    %v1939 = vrsqrt.pop %v1938
    %v1940 = vmul.f32 %v1932, %v1939
    %v1942 = vlaneseq
    %v1943 = vshrl.u32 %v1942, 7
    %v1944 = vsub.s32 0, %v1943
    %v1945 = vrot.slane %v1925, %v1944
    %v1947 = vmul.f32 %v1940, %v1945
    %v1949 = vlaneseq
    %v1950 = vshrl.u32 %v1949, 7
    %v1951 = vsub.s32 0, %v1950
    %v1952 = vrot.slane %v1927, %v1951
    %v1954 = vadd.f32 %v1947, %v1952
    %1955 = vst.msk [vmem:[#allocation5] sm:$0xff] %vm218, %v1954
    %v1956 = vpack.c.bf16 %v1954, %v1954
    %v1957 = vld [vmem:[%s19] sm:$0xf]
    %v1958 = vld [vmem:[%s19 + $0x4] sm:$0xf]
    %v1959 = vld [vmem:[%s19 + $0x8] sm:$0xf]
    %v1960 = vld [vmem:[%s19 + $0xc] sm:$0xf]
    %v1961 = vld [vmem:[%s20] sm:$0x1]
    %v1966 = vunpack.c.l.b16 %v1957
    %v1967 = vunpack.c.l.b16 %v1958
    %v1968 = vunpack.c.l.b16 %v1959
    %v1969 = vunpack.c.l.b16 %v1960
    %v1970 = vpack.c.b16 %v1967, %v1966
    %v1971 = vpack.c.b16 %v1969, %v1968
    %v1975 = vsel %vm218, %v1956, 0
    %1977 = vmatprep.subr.bf16.mxu0 0
    %1978 = vmatpush1.bf16.msra.mxu0 %v1970
    %1979 = vmatprep.subr.bf16.mxu0 0
    %1980 = vmatpush1.bf16.msra.mxu0 %v1971
    %1981 = vmatprep.subr.bf16.mxu0 0
    %1982 = vmatpush1.bf16.msra.mxu0 0
    %1983 = vmatprep.subr.bf16.mxu0 0
    %1984 = vmatpush1.bf16.msra.mxu0 0
    %1985 = vmatprep.subr.bf16.mxu0 0
    %1986 = vmatpush1.bf16.msra.mxu0 0
    %1987 = vmatprep.subr.bf16.mxu0 0
    %1988 = vmatpush1.bf16.msra.mxu0 0
    %1989 = vmatprep.subr.bf16.mxu0 0
    %1990 = vmatpush1.bf16.msra.mxu0 0
    %1991 = vmatprep.subr.bf16.mxu0 0
    %1992 = vmatpush1.bf16.msra.mxu0 0
    %1993 = vmatprep.subr.bf16.mxu0 0
    %1994 = vmatpush1.bf16.msra.mxu0 0
    %1995 = vmatprep.subr.bf16.mxu0 0
    %1996 = vmatpush1.bf16.msra.mxu0 0
    %1997 = vmatprep.subr.bf16.mxu0 0
    %1998 = vmatpush1.bf16.msra.mxu0 0
    %1999 = vmatprep.subr.bf16.mxu0 0
    %2000 = vmatpush1.bf16.msra.mxu0 0
    %2001 = vmatprep.subr.bf16.mxu0 0
    %2002 = vmatpush1.bf16.msra.mxu0 0
    %2003 = vmatprep.subr.bf16.mxu0 0
    %2004 = vmatpush1.bf16.msra.mxu0 0
    %2005 = vmatprep.subr.bf16.mxu0 0
    %2006 = vmatpush1.bf16.msra.mxu0 0
    %2007 = vmatprep.subr.bf16.mxu0 0
    %2008 = vmatpush1.bf16.msra.mxu0 0
    %2009 = vmatprep.mubr.bf16.mxu0 0
    %2010 = vmatmul.mubr.bf16.gmra.mrb[0].mxu0 %v1975
    %v2011 = vpop.f32.mrb[0].mxu0
    %v2012 = vadd.f32 %v1961, %v2011
    %v2013 = vpop.f32.mrb[0].mxu0
    %v2014 = vpop.f32.mrb[0].mxu0
    %v2015 = vpop.f32.mrb[0].mxu0
    %2016 = vdwg.mxu0
    %v2017 = vtanh.pop %v2012
    %vm2018 = vcmask 253952
    %2019 = vst.msk [vmem:[#allocation7] sm:$0x1] %vm2018, %v2017
    // Predicated region
    $region78: #{bert_forward.1} parent=1 // pred_check
      _
    $region79: #{bert_forward.1} parent=1 // pred_check_branch
      %2021 = sbr.rel (0) target = $region81
    $region80: #{bert_forward.1} parent=1 // pred_region
      %s2023 = ssub.s32 128, 128
      %2024 = vsyncadd [#allocation6], %s2023
      %s2026 = sshll.u32 [#allocation5], 4
      %s2027 = int_to_ptr.vmem [resolvable:$true] %s2026
      %2029 = dma.vmem_to_hbm [thread:$0]  %s2027, 128, %s21, [#allocation6]
    $region81: #{bert_forward.1} parent=1 // pred_fallthru
      _
    // Predicated region
    $region82: #{bert_forward.1} parent=1 // pred_check
      _
    $region83: #{bert_forward.1} parent=1 // pred_check_branch
      %2031 = sbr.rel (0) target = $region85
    $region84: #{bert_forward.1} parent=1 // pred_region
      %s2033 = ssub.s32 16, 16
      %2034 = vsyncadd [#allocation8], %s2033
      %s2036 = sshll.u32 [#allocation7], 4
      %s2037 = int_to_ptr.vmem [resolvable:$true] %s2036
      %2039 = dma.vmem_to_hbm [thread:$0]  %s2037, 16, %s22, [#allocation8]
    $region85: #{bert_forward.1} parent=1 // pred_fallthru
      _
    // Predicated region
    $region86: #{bert_forward.1} parent=1 // pred_check
      _
    $region87: #{bert_forward.1} parent=1 // pred_check_branch
      %2041 = sbr.rel (0) target = $region89
    $region88: #{bert_forward.1} parent=1 // pred_region
      %2042 = dma.done [#allocation6], 128
    $region89: #{bert_forward.1} parent=1 // pred_fallthru
      _
    // Predicated region
    $region90: #{bert_forward.1} parent=1 // pred_check
      _
    $region91: #{bert_forward.1} parent=1 // pred_check_branch
      %2044 = sbr.rel (0) target = $region93
    $region92: #{bert_forward.1} parent=1 // pred_region
      %2045 = dma.done [#allocation8], 16
    $region93: #{bert_forward.1} parent=1 // pred_fallthru
      _
    %2046 = vsyncpa [#allocation6], 1
    %2047 = vsyncpa [#allocation8], 1

</llo_original>
